<compile_context>
chip_gen: v6e
topology: v6e:2x2x1
jax: 0.10.0
libtpu: 0.0.40
codegen_flags: <defaults>
</compile_context>

<pallas_src>
import jax
import jax.numpy as jnp
from jax.experimental import pallas as pl
from jax.experimental.pallas import tpu as pltpu  # noqa: F401  (see v7x TODO above)

NEG_INF = -1000000.0


# ----------------------------------------------------------------------------
# Fused kernel: BiGRU encoder (both classifiers) + masked max-pool + heads.
# Single invocation (no grid); all operands are whole-array VMEM blocks.
# ----------------------------------------------------------------------------
def fused_matching_kernel(x_ref, m_ref, pen_ref,
                          wih_ref, bih_ref,
                          whf_ref, whb_ref, bhf_ref, bhb_ref,
                          wpred_ref, bpred_ref, out_ref):
    L, Btot, H = m_ref.shape            # H = hidden_dim; Btot = 2*B (q rows, p rows)
    Hh = H // 2                         # per-direction hidden size
    B = Btot // 2

    # ---- hoisted input projection: ONE bf16 MXU matmul, f32 accumulate ------
    # x is already time-major (L*2B, E) and pre-masked (emb * z) in the wrapper.
    # Output columns: [fwd: r_E,r_Ea,u_E,u_Ea,n_E,n_Ea | bwd: same], each Hh wide.
    gx = (jnp.dot(x_ref[...], wih_ref[...],
                  preferred_element_type=jnp.float32) + bih_ref[...])
    gx = gx.reshape(L, Btot, 6 * H)
    # one-time split into per-direction halves (no per-gate copies in the loop)
    gx_f = gx[:, :, :3 * H]             # (L, 2B, 3H)
    gx_b = gx[:, :, 3 * H:]             # (L, 2B, 3H)

    m_all = m_ref[...]                  # (L, 2B, H) mask, pre-broadcast over lanes
    pen_all = pen_ref[...]              # (L, 2B, H) (1 - mask*z) * NEG_INF

    def scan_dir(gx_d, whh, bhh, reverse):
        """Mask-gated GRU scan over time for one direction, BOTH classifiers.

        h lanes = [h_E (Hh) | h_Ea (Hh)]; whh is block-diagonal (H, 3H) so a
        single bf16 dot per step produces r/u/n gates for both classifiers.
        Returns the fused masked max-pool (2B, H); hiddens never materialize.
        """
        h = jnp.zeros((Btot, H), jnp.float32)
        pooled = jnp.full((Btot, H), -jnp.inf, jnp.float32)
        ts = range(L - 1, -1, -1) if reverse else range(L)
        for t in ts:                    # L is small & static -> unrolled
            # TODO(synk): for L >> 16 switch to lax.fori_loop(unroll=k) to
            # bound live ranges; at L=8 the static unroll is fine.
            g_x = gx_d[t]               # (2B, 3H)
            g_h = jnp.dot(h.astype(jnp.bfloat16), whh,
                          preferred_element_type=jnp.float32) + bhh
            r = jax.nn.sigmoid(g_x[:, :H] + g_h[:, :H])
            u = jax.nn.sigmoid(g_x[:, H:2 * H] + g_h[:, H:2 * H])
            n = jnp.tanh(g_x[:, 2 * H:] + r * g_h[:, 2 * H:])
            m = m_all[t]                # (2B, H)
            # mask-gated recurrence == pack_padded semantics for prefix masks.
            h = m * ((1.0 - u) * n + u * h) + (1.0 - m) * h
            # fused masked max-pool (no HBM round trip for hiddens).
            pooled = jnp.maximum(pooled, m * h + pen_all[t])
        return pooled

    pooled_f = scan_dir(gx_f, whf_ref[...], bhf_ref[...], reverse=False)
    pooled_b = scan_dir(gx_b, whb_ref[...], bhb_ref[...], reverse=True)

    # ---- heads: ONE (B, 4H=128) x (128, num_labels) bf16 dot per classifier -
    wp = wpred_ref[...]                 # (2, 4H, num_labels) bf16
    bp = bpred_ref[...]                 # (2, 1, num_labels)  f32
    for c in range(2):                  # classifier 0 = E, 1 = E_anti
        sl = slice(c * Hh, (c + 1) * Hh)
        q_max = jnp.concatenate([pooled_f[:B, sl], pooled_b[:B, sl]], axis=1)
        p_max = jnp.concatenate([pooled_f[B:, sl], pooled_b[B:, sl]], axis=1)
        feats = jnp.concatenate(
            [q_max, p_max, q_max * p_max, jnp.abs(q_max - p_max)], axis=1)
        logits = jnp.dot(feats.astype(jnp.bfloat16), wp[c],
                         preferred_element_type=jnp.float32) + bp[c]
        out_ref[c, :, :] = logits       # (B, num_labels)


# ----------------------------------------------------------------------------
# Parameter packing (PyTorch-convention shapes -> fused kernel layout)
# ----------------------------------------------------------------------------
def _pack_params(pE, pEa, hidden_dim):
    H = hidden_dim
    Hh = H // 2
    classifiers = (pE, pEa)

    # Fused input projection (E, 6*H); column layout per direction half:
    # [r_E, r_Ea, u_E, u_Ea, n_E, n_Ea], each Hh wide.  PyTorch GRU weight_ih
    # rows are [W_ir; W_iz; W_in] stacked, each (Hh, E).
    wih_cols, bih_cols = [], []
    for d in ('f', 'b'):
        for g in range(3):
            for p in classifiers:
                wih_cols.append(p[f'w_ih_{d}'][g * Hh:(g + 1) * Hh, :].T)
                bih_cols.append(p[f'b_ih_{d}'][g * Hh:(g + 1) * Hh])
    wih = jnp.concatenate(wih_cols, axis=1)           # (E, 6H)
    bih = jnp.concatenate(bih_cols)[None, :]          # (1, 6H)

    # Per-direction block-diagonal recurrent weights (H, 3H):
    # rows = [h_E | h_Ea]; cols = [r_E, r_Ea, u_E, u_Ea, n_E, n_Ea].
    def recur(d):
        w = jnp.zeros((H, 3 * H), jnp.float32)
        b_cols = []
        for g in range(3):
            for c, p in enumerate(classifiers):
                blk = p[f'w_hh_{d}'][g * Hh:(g + 1) * Hh, :].T      # (Hh, Hh)
                col0 = g * H + c * Hh
                w = w.at[c * Hh:(c + 1) * Hh, col0:col0 + Hh].set(blk)
                b_cols.append(p[f'b_hh_{d}'][g * Hh:(g + 1) * Hh])
        return w, jnp.concatenate(b_cols)[None, :]
    whh_f, bhh_f = recur('f')
    whh_b, bhh_b = recur('b')

    # Predictor: (2, 4H, num_labels); row order matches the feature concat
    # [q_max(fwd|bwd), p_max, q*p, |q-p|].
    wpred = jnp.stack([p['w_pred'].T for p in classifiers])
    bpred = jnp.stack([p['b_pred'][None, :] for p in classifiers])
    return wih, bih, whh_f, whh_b, bhh_f, bhh_b, wpred, bpred


# ----------------------------------------------------------------------------
# Forward wrapper: ONE grid-less pallas_call covers q+p, both GRU directions,
# both classifiers (E / E_anti) and both heads.
# ----------------------------------------------------------------------------
def rationale3player_forward(model, q_ids, p_ids, z_q, z_p, q_mask, p_mask,
                             p_sort_idx=None, revert_p_idx=None):
    # TODO(synk): Rationale3PlayerMatchingModel.forward(x, mask) is `pass` in
    # the reference; we expose the E / E_anti classifier forward passes.
    # p_sort_idx / revert_p_idx are accepted for interface parity but unused:
    # the mask-gated recurrence does not need pack_padded's length sorting.
    del p_sort_idx, revert_p_idx
    # TODO(synk): the reference feeds the same z to E and E_anti here; the
    # anti-rationale complement (1 - z), if any, is applied by the caller.
    emb_tab = model['embeddings']
    B, L = q_ids.shape
    E = emb_tab.shape[1]
    H = model['hidden_dim']
    nl = model['num_labels']
    Btot = 2 * B

    # q/p batch-axis fusion + embedding lookup (XLA glue)
    ids = jnp.concatenate([q_ids, p_ids], axis=0)          # (2B, L)
    z = jnp.concatenate([z_q, z_p], axis=0)                # (2B, L)
    mask = jnp.concatenate([q_mask, p_mask], axis=0)       # (2B, L)
    emb = jnp.take(emb_tab, ids, axis=0)                   # (2B, L, E)

    # classifier-invariant prep hoisted out of the kernel:
    #   masked input, time-major layout, bf16 pre-cast (halves the largest DMA)
    x = (emb * z[:, :, None]).transpose(1, 0, 2).reshape(L * Btot, E)
    x = x.astype(jnp.bfloat16)
    #   mask and max-pool penalty, time-major and pre-broadcast over lanes so
    #   per-step kernel reads are plain first-axis loads (no relayout).
    m_bcast = jnp.broadcast_to(mask.T[:, :, None], (L, Btot, H)).astype(jnp.float32)
    pen = ((1.0 - mask * z) * NEG_INF).T
    pen_bcast = jnp.broadcast_to(pen[:, :, None], (L, Btot, H)).astype(jnp.float32)

    wih, bih, whh_f, whh_b, bhh_f, bhh_b, wpred, bpred = _pack_params(
        model['E'], model['E_anti'], H)
    # bf16 MXU operands, f32 accumulation (biases stay f32)
    wih = wih.astype(jnp.bfloat16)
    whh_f = whh_f.astype(jnp.bfloat16)
    whh_b = whh_b.astype(jnp.bfloat16)
    wpred = wpred.astype(jnp.bfloat16)

    out = pl.pallas_call(
        fused_matching_kernel,
        out_shape=jax.ShapeDtypeStruct((2, B, nl), jnp.float32),
    )(x, m_bcast, pen_bcast, wih, bih, whh_f, whh_b, bhh_f, bhh_b, wpred, bpred)
    return out[0], out[1]


# ----------------------------------------------------------------------------
# Pure-f32 JAX reference (for tolerance checking the bf16 kernel)
# ----------------------------------------------------------------------------
def _reference_forward(model, q_ids, p_ids, z_q, z_p, q_mask, p_mask):
    emb_tab = model['embeddings']
    H = model['hidden_dim']
    Hh = H // 2

    def gru_dir(x, mask, w_ih, w_hh, b_ih, b_hh, reverse):
        Bb, L, _ = x.shape
        h = jnp.zeros((Bb, Hh), jnp.float32)
        hs = [None] * L
        ts = range(L - 1, -1, -1) if reverse else range(L)
        for t in ts:
            gi = x[:, t, :] @ w_ih.T + b_ih
            gh = h @ w_hh.T + b_hh
            r = jax.nn.sigmoid(gi[:, :Hh] + gh[:, :Hh])
            u = jax.nn.sigmoid(gi[:, Hh:2 * Hh] + gh[:, Hh:2 * Hh])
            n = jnp.tanh(gi[:, 2 * Hh:] + r * gh[:, 2 * Hh:])
            m = mask[:, t:t + 1]
            h = m * ((1.0 - u) * n + u * h) + (1.0 - m) * h
            hs[t] = h
        return jnp.stack(hs, axis=1)                       # (B, L, Hh)

    def classify(p, q_emb, p_emb, zq, zp, qm, pm):
        def enc_pool(emb, z, mask):
            xin = emb * z[:, :, None]
            hf = gru_dir(xin, mask, p['w_ih_f'], p['w_hh_f'],
                         p['b_ih_f'], p['b_hh_f'], False)
            hb = gru_dir(xin, mask, p['w_ih_b'], p['w_hh_b'],
                         p['b_ih_b'], p['b_hh_b'], True)
            hid = jnp.concatenate([hf, hb], axis=-1) * mask[:, :, None]
            penv = ((1.0 - mask * z) * NEG_INF)[:, :, None]
            return jnp.max(hid + penv, axis=1)             # (B, H)
        qmax = enc_pool(q_emb, zq, qm)
        pmax = enc_pool(p_emb, zp, pm)
        feats = jnp.concatenate(
            [qmax, pmax, qmax * pmax, jnp.abs(qmax - pmax)], axis=1)
        return feats @ p['w_pred'].T + p['b_pred']

    q_emb = jnp.take(emb_tab, q_ids, axis=0)
    p_emb = jnp.take(emb_tab, p_ids, axis=0)
    return (classify(model['E'], q_emb, p_emb, z_q, z_p, q_mask, p_mask),
            classify(model['E_anti'], q_emb, p_emb, z_q, z_p, q_mask, p_mask))


# ----------------------------------------------------------------------------
# Deterministic parameter init (PyTorch-convention shapes)
# ----------------------------------------------------------------------------
def init_classifier_params(key, embedding_dim, hidden_dim, num_labels):
    Hh = hidden_dim // 2
    ks = jax.random.split(key, 10)
    s = 0.1
    return {
        # nn.GRU(input_dim, hidden_dim//2, bidirectional=True)
        'w_ih_f': jax.random.normal(ks[0], (3 * Hh, embedding_dim), jnp.float32) * s,
        'w_hh_f': jax.random.normal(ks[1], (3 * Hh, Hh), jnp.float32) * s,
        'b_ih_f': jax.random.normal(ks[2], (3 * Hh,), jnp.float32) * s,
        'b_hh_f': jax.random.normal(ks[3], (3 * Hh,), jnp.float32) * s,
        'w_ih_b': jax.random.normal(ks[4], (3 * Hh, embedding_dim), jnp.float32) * s,
        'w_hh_b': jax.random.normal(ks[5], (3 * Hh, Hh), jnp.float32) * s,
        'b_ih_b': jax.random.normal(ks[6], (3 * Hh,), jnp.float32) * s,
        'b_hh_b': jax.random.normal(ks[7], (3 * Hh,), jnp.float32) * s,
        # nn.Linear(hidden_dim * 4, num_labels)
        'w_pred': jax.random.normal(ks[8], (num_labels, 4 * hidden_dim), jnp.float32) * s,
        'b_pred': jax.random.normal(ks[9], (num_labels,), jnp.float32) * s,
    }


if __name__ == "__main__":
    vocab_size, embedding_dim = 50, 32
    hidden_dim, num_labels = 32, 2
    B, L = 2, 8

    key = jax.random.PRNGKey(0)
    k_emb, k_e, k_ea, k_q, k_p, k_zq, k_zp = jax.random.split(key, 7)

    model = {
        'embeddings': jax.random.normal(k_emb, (vocab_size, embedding_dim),
                                        jnp.float32) * 0.1,
        'E': init_classifier_params(k_e, embedding_dim, hidden_dim, num_labels),
        'E_anti': init_classifier_params(k_ea, embedding_dim, hidden_dim, num_labels),
        'hidden_dim': hidden_dim,
        'num_labels': num_labels,
    }

    q_ids = jax.random.randint(k_q, (B, L), 0, vocab_size)
    p_ids = jax.random.randint(k_p, (B, L), 0, vocab_size)

    q_lens = jnp.array([8, 5])
    p_lens = jnp.array([6, 8])
    pos = jnp.arange(L)[None, :]
    q_mask = (pos < q_lens[:, None]).astype(jnp.float32)
    p_mask = (pos < p_lens[:, None]).astype(jnp.float32)

    z_q = (jax.random.uniform(k_zq, (B, L)) > 0.3).astype(jnp.float32) * q_mask
    z_p = (jax.random.uniform(k_zp, (B, L)) > 0.3).astype(jnp.float32) * p_mask
    # keep at least one selected token per row so pooled features stay O(1)
    # and the f32-reference tolerance check below is meaningful
    z_q = z_q.at[:, 0].set(1.0)
    z_p = z_p.at[:, 0].set(1.0)

    e_pred, e_anti_pred = rationale3player_forward(
        model, q_ids, p_ids, z_q, z_p, q_mask, p_mask)
    jax.block_until_ready((e_pred, e_anti_pred))
    assert e_pred.shape == (B, num_labels)
    assert e_anti_pred.shape == (B, num_labels)

    # tolerance check against a pure-f32 JAX reference (kernel uses bf16 MXU
    # operands with f32 accumulation -> loose tolerance)
    ref_e, ref_ea = _reference_forward(
        model, q_ids, p_ids, z_q, z_p, q_mask, p_mask)
    assert jnp.allclose(e_pred, ref_e, atol=1e-1, rtol=1e-1)
    assert jnp.allclose(e_anti_pred, ref_ea, atol=1e-1, rtol=1e-1)

    print("KERNEL_OK")
</pallas_src>

<mosaic_0001>
module attributes {stable_mosaic.version = 11 : i64} {
  func.func @fused_matching_kernel(%arg0: memref<32x32xbf16, #tpu.memory_space<vmem>>, %arg1: memref<8x4x32xf32, #tpu.memory_space<vmem>>, %arg2: memref<8x4x32xf32, #tpu.memory_space<vmem>>, %arg3: memref<32x192xbf16, #tpu.memory_space<vmem>>, %arg4: memref<1x192xf32, #tpu.memory_space<vmem>>, %arg5: memref<32x96xbf16, #tpu.memory_space<vmem>>, %arg6: memref<32x96xbf16, #tpu.memory_space<vmem>>, %arg7: memref<1x96xf32, #tpu.memory_space<vmem>>, %arg8: memref<1x96xf32, #tpu.memory_space<vmem>>, %arg9: memref<2x128x2xbf16, #tpu.memory_space<vmem>>, %arg10: memref<2x1x2xf32, #tpu.memory_space<vmem>>, %arg11: memref<2x2x2xf32, #tpu.memory_space<vmem>>) attributes {dimension_semantics = [], scalar_prefetch = 0 : i64, scratch_operands = 0 : i64, tpu.core_type = #tpu.core_type<tc>} {
    %c0 = arith.constant 0 : index
    %c0_0 = arith.constant 0 : index
    %0 = vector.load %arg0[%c0, %c0_0] : memref<32x32xbf16, #tpu.memory_space<vmem>>, vector<32x32xbf16>
    %c0_1 = arith.constant 0 : index
    %c0_2 = arith.constant 0 : index
    %1 = vector.load %arg3[%c0_1, %c0_2] : memref<32x192xbf16, #tpu.memory_space<vmem>>, vector<32x192xbf16>
    %cst = arith.constant dense<0.000000e+00> : vector<32x192xf32>
    %2 = tpu.matmul %0, %1, %cst {dimension_numbers = #tpu.dot_dimension_numbers<[1], [0], [0], [1], [0, 0, 1, 1], [], []>} : vector<32x32xbf16>, vector<32x192xbf16>, vector<32x192xf32> -> vector<32x192xf32>
    %c0_3 = arith.constant 0 : index
    %c0_4 = arith.constant 0 : index
    %3 = vector.load %arg4[%c0_3, %c0_4] : memref<1x192xf32, #tpu.memory_space<vmem>>, vector<1x192xf32>
    %4 = vector.broadcast %3 : vector<1x192xf32> to vector<32x192xf32>
    %5 = arith.addf %2, %4 : vector<32x192xf32>
    %6 = vector.shape_cast %5 : vector<32x192xf32> to vector<8x4x192xf32>
    %7 = vector.extract_strided_slice %6 {offsets = [0, 0, 0], sizes = [8, 4, 96], strides = [1, 1, 1]} : vector<8x4x192xf32> to vector<8x4x96xf32>
    %8 = vector.extract_strided_slice %6 {offsets = [0, 0, 96], sizes = [8, 4, 96], strides = [1, 1, 1]} : vector<8x4x192xf32> to vector<8x4x96xf32>
    %c0_5 = arith.constant 0 : index
    %c0_6 = arith.constant 0 : index
    %c0_7 = arith.constant 0 : index
    %9 = vector.load %arg1[%c0_5, %c0_6, %c0_7] : memref<8x4x32xf32, #tpu.memory_space<vmem>>, vector<8x4x32xf32>
    %c0_8 = arith.constant 0 : index
    %c0_9 = arith.constant 0 : index
    %c0_10 = arith.constant 0 : index
    %10 = vector.load %arg2[%c0_8, %c0_9, %c0_10] : memref<8x4x32xf32, #tpu.memory_space<vmem>>, vector<8x4x32xf32>
    %c0_11 = arith.constant 0 : index
    %c0_12 = arith.constant 0 : index
    %11 = vector.load %arg5[%c0_11, %c0_12] : memref<32x96xbf16, #tpu.memory_space<vmem>>, vector<32x96xbf16>
    %c0_13 = arith.constant 0 : index
    %c0_14 = arith.constant 0 : index
    %12 = vector.load %arg7[%c0_13, %c0_14] : memref<1x96xf32, #tpu.memory_space<vmem>>, vector<1x96xf32>
    %cst_15 = arith.constant 0.000000e+00 : f32
    %13 = vector.broadcast %cst_15 : f32 to vector<4x32xf32>
    %cst_16 = arith.constant 0xFF800000 : f32
    %14 = vector.broadcast %cst_16 : f32 to vector<4x32xf32>
    %15 = vector.extract_strided_slice %7 {offsets = [0, 0, 0], sizes = [1, 4, 96], strides = [1, 1, 1]} : vector<8x4x96xf32> to vector<1x4x96xf32>
    %16 = vector.shape_cast %15 : vector<1x4x96xf32> to vector<4x96xf32>
    %17 = arith.truncf %13 : vector<4x32xf32> to vector<4x32xbf16>
    %cst_17 = arith.constant dense<0.000000e+00> : vector<4x96xf32>
    %18 = tpu.matmul %17, %11, %cst_17 {dimension_numbers = #tpu.dot_dimension_numbers<[1], [0], [0], [1], [0, 0, 1, 1], [], []>} : vector<4x32xbf16>, vector<32x96xbf16>, vector<4x96xf32> -> vector<4x96xf32>
    %19 = vector.broadcast %12 : vector<1x96xf32> to vector<4x96xf32>
    %20 = arith.addf %18, %19 : vector<4x96xf32>
    %21 = vector.extract_strided_slice %16 {offsets = [0, 0], sizes = [4, 32], strides = [1, 1]} : vector<4x96xf32> to vector<4x32xf32>
    %22 = vector.extract_strided_slice %20 {offsets = [0, 0], sizes = [4, 32], strides = [1, 1]} : vector<4x96xf32> to vector<4x32xf32>
    %23 = arith.addf %21, %22 : vector<4x32xf32>
    %24 = arith.negf %23 : vector<4x32xf32>
    %25 = math.exp %24 : vector<4x32xf32>
    %cst_18 = arith.constant 1.000000e+00 : f32
    %26 = vector.broadcast %cst_18 : f32 to vector<4x32xf32>
    %27 = arith.addf %26, %25 : vector<4x32xf32>
    %28 = arith.divf %26, %27 : vector<4x32xf32>
    %29 = vector.extract_strided_slice %16 {offsets = [0, 32], sizes = [4, 32], strides = [1, 1]} : vector<4x96xf32> to vector<4x32xf32>
    %30 = vector.extract_strided_slice %20 {offsets = [0, 32], sizes = [4, 32], strides = [1, 1]} : vector<4x96xf32> to vector<4x32xf32>
    %31 = arith.addf %29, %30 : vector<4x32xf32>
    %32 = arith.negf %31 : vector<4x32xf32>
    %33 = math.exp %32 : vector<4x32xf32>
    %cst_19 = arith.constant 1.000000e+00 : f32
    %34 = vector.broadcast %cst_19 : f32 to vector<4x32xf32>
    %35 = arith.addf %34, %33 : vector<4x32xf32>
    %36 = arith.divf %34, %35 : vector<4x32xf32>
    %37 = vector.extract_strided_slice %16 {offsets = [0, 64], sizes = [4, 32], strides = [1, 1]} : vector<4x96xf32> to vector<4x32xf32>
    %38 = vector.extract_strided_slice %20 {offsets = [0, 64], sizes = [4, 32], strides = [1, 1]} : vector<4x96xf32> to vector<4x32xf32>
    %39 = arith.mulf %28, %38 : vector<4x32xf32>
    %40 = arith.addf %37, %39 : vector<4x32xf32>
    %41 = math.tanh %40 : vector<4x32xf32>
    %42 = vector.extract_strided_slice %9 {offsets = [0, 0, 0], sizes = [1, 4, 32], strides = [1, 1, 1]} : vector<8x4x32xf32> to vector<1x4x32xf32>
    %43 = vector.shape_cast %42 : vector<1x4x32xf32> to vector<4x32xf32>
    %cst_20 = arith.constant 1.000000e+00 : f32
    %44 = vector.broadcast %cst_20 : f32 to vector<4x32xf32>
    %45 = arith.subf %44, %36 : vector<4x32xf32>
    %46 = arith.mulf %45, %41 : vector<4x32xf32>
    %47 = arith.mulf %36, %13 : vector<4x32xf32>
    %48 = arith.addf %46, %47 : vector<4x32xf32>
    %49 = arith.mulf %43, %48 : vector<4x32xf32>
    %cst_21 = arith.constant 1.000000e+00 : f32
    %50 = vector.broadcast %cst_21 : f32 to vector<4x32xf32>
    %51 = arith.subf %50, %43 : vector<4x32xf32>
    %52 = arith.mulf %51, %13 : vector<4x32xf32>
    %53 = arith.addf %49, %52 : vector<4x32xf32>
    %54 = arith.mulf %43, %53 : vector<4x32xf32>
    %55 = vector.extract_strided_slice %10 {offsets = [0, 0, 0], sizes = [1, 4, 32], strides = [1, 1, 1]} : vector<8x4x32xf32> to vector<1x4x32xf32>
    %56 = vector.shape_cast %55 : vector<1x4x32xf32> to vector<4x32xf32>
    %57 = arith.addf %54, %56 : vector<4x32xf32>
    %58 = arith.maximumf %14, %57 : vector<4x32xf32>
    %59 = vector.extract_strided_slice %7 {offsets = [1, 0, 0], sizes = [1, 4, 96], strides = [1, 1, 1]} : vector<8x4x96xf32> to vector<1x4x96xf32>
    %60 = vector.shape_cast %59 : vector<1x4x96xf32> to vector<4x96xf32>
    %61 = arith.truncf %53 : vector<4x32xf32> to vector<4x32xbf16>
    %cst_22 = arith.constant dense<0.000000e+00> : vector<4x96xf32>
    %62 = tpu.matmul %61, %11, %cst_22 {dimension_numbers = #tpu.dot_dimension_numbers<[1], [0], [0], [1], [0, 0, 1, 1], [], []>} : vector<4x32xbf16>, vector<32x96xbf16>, vector<4x96xf32> -> vector<4x96xf32>
    %63 = vector.broadcast %12 : vector<1x96xf32> to vector<4x96xf32>
    %64 = arith.addf %62, %63 : vector<4x96xf32>
    %65 = vector.extract_strided_slice %60 {offsets = [0, 0], sizes = [4, 32], strides = [1, 1]} : vector<4x96xf32> to vector<4x32xf32>
    %66 = vector.extract_strided_slice %64 {offsets = [0, 0], sizes = [4, 32], strides = [1, 1]} : vector<4x96xf32> to vector<4x32xf32>
    %67 = arith.addf %65, %66 : vector<4x32xf32>
    %68 = arith.negf %67 : vector<4x32xf32>
    %69 = math.exp %68 : vector<4x32xf32>
    %cst_23 = arith.constant 1.000000e+00 : f32
    %70 = vector.broadcast %cst_23 : f32 to vector<4x32xf32>
    %71 = arith.addf %70, %69 : vector<4x32xf32>
    %72 = arith.divf %70, %71 : vector<4x32xf32>
    %73 = vector.extract_strided_slice %60 {offsets = [0, 32], sizes = [4, 32], strides = [1, 1]} : vector<4x96xf32> to vector<4x32xf32>
    %74 = vector.extract_strided_slice %64 {offsets = [0, 32], sizes = [4, 32], strides = [1, 1]} : vector<4x96xf32> to vector<4x32xf32>
    %75 = arith.addf %73, %74 : vector<4x32xf32>
    %76 = arith.negf %75 : vector<4x32xf32>
    %77 = math.exp %76 : vector<4x32xf32>
    %cst_24 = arith.constant 1.000000e+00 : f32
    %78 = vector.broadcast %cst_24 : f32 to vector<4x32xf32>
    %79 = arith.addf %78, %77 : vector<4x32xf32>
    %80 = arith.divf %78, %79 : vector<4x32xf32>
    %81 = vector.extract_strided_slice %60 {offsets = [0, 64], sizes = [4, 32], strides = [1, 1]} : vector<4x96xf32> to vector<4x32xf32>
    %82 = vector.extract_strided_slice %64 {offsets = [0, 64], sizes = [4, 32], strides = [1, 1]} : vector<4x96xf32> to vector<4x32xf32>
    %83 = arith.mulf %72, %82 : vector<4x32xf32>
    %84 = arith.addf %81, %83 : vector<4x32xf32>
    %85 = math.tanh %84 : vector<4x32xf32>
    %86 = vector.extract_strided_slice %9 {offsets = [1, 0, 0], sizes = [1, 4, 32], strides = [1, 1, 1]} : vector<8x4x32xf32> to vector<1x4x32xf32>
    %87 = vector.shape_cast %86 : vector<1x4x32xf32> to vector<4x32xf32>
    %cst_25 = arith.constant 1.000000e+00 : f32
    %88 = vector.broadcast %cst_25 : f32 to vector<4x32xf32>
    %89 = arith.subf %88, %80 : vector<4x32xf32>
    %90 = arith.mulf %89, %85 : vector<4x32xf32>
    %91 = arith.mulf %80, %53 : vector<4x32xf32>
    %92 = arith.addf %90, %91 : vector<4x32xf32>
    %93 = arith.mulf %87, %92 : vector<4x32xf32>
    %cst_26 = arith.constant 1.000000e+00 : f32
    %94 = vector.broadcast %cst_26 : f32 to vector<4x32xf32>
    %95 = arith.subf %94, %87 : vector<4x32xf32>
    %96 = arith.mulf %95, %53 : vector<4x32xf32>
    %97 = arith.addf %93, %96 : vector<4x32xf32>
    %98 = arith.mulf %87, %97 : vector<4x32xf32>
    %99 = vector.extract_strided_slice %10 {offsets = [1, 0, 0], sizes = [1, 4, 32], strides = [1, 1, 1]} : vector<8x4x32xf32> to vector<1x4x32xf32>
    %100 = vector.shape_cast %99 : vector<1x4x32xf32> to vector<4x32xf32>
    %101 = arith.addf %98, %100 : vector<4x32xf32>
    %102 = arith.maximumf %58, %101 : vector<4x32xf32>
    %103 = vector.extract_strided_slice %7 {offsets = [2, 0, 0], sizes = [1, 4, 96], strides = [1, 1, 1]} : vector<8x4x96xf32> to vector<1x4x96xf32>
    %104 = vector.shape_cast %103 : vector<1x4x96xf32> to vector<4x96xf32>
    %105 = arith.truncf %97 : vector<4x32xf32> to vector<4x32xbf16>
    %cst_27 = arith.constant dense<0.000000e+00> : vector<4x96xf32>
    %106 = tpu.matmul %105, %11, %cst_27 {dimension_numbers = #tpu.dot_dimension_numbers<[1], [0], [0], [1], [0, 0, 1, 1], [], []>} : vector<4x32xbf16>, vector<32x96xbf16>, vector<4x96xf32> -> vector<4x96xf32>
    %107 = vector.broadcast %12 : vector<1x96xf32> to vector<4x96xf32>
    %108 = arith.addf %106, %107 : vector<4x96xf32>
    %109 = vector.extract_strided_slice %104 {offsets = [0, 0], sizes = [4, 32], strides = [1, 1]} : vector<4x96xf32> to vector<4x32xf32>
    %110 = vector.extract_strided_slice %108 {offsets = [0, 0], sizes = [4, 32], strides = [1, 1]} : vector<4x96xf32> to vector<4x32xf32>
    %111 = arith.addf %109, %110 : vector<4x32xf32>
    %112 = arith.negf %111 : vector<4x32xf32>
    %113 = math.exp %112 : vector<4x32xf32>
    %cst_28 = arith.constant 1.000000e+00 : f32
    %114 = vector.broadcast %cst_28 : f32 to vector<4x32xf32>
    %115 = arith.addf %114, %113 : vector<4x32xf32>
    %116 = arith.divf %114, %115 : vector<4x32xf32>
    %117 = vector.extract_strided_slice %104 {offsets = [0, 32], sizes = [4, 32], strides = [1, 1]} : vector<4x96xf32> to vector<4x32xf32>
    %118 = vector.extract_strided_slice %108 {offsets = [0, 32], sizes = [4, 32], strides = [1, 1]} : vector<4x96xf32> to vector<4x32xf32>
    %119 = arith.addf %117, %118 : vector<4x32xf32>
    %120 = arith.negf %119 : vector<4x32xf32>
    %121 = math.exp %120 : vector<4x32xf32>
    %cst_29 = arith.constant 1.000000e+00 : f32
    %122 = vector.broadcast %cst_29 : f32 to vector<4x32xf32>
    %123 = arith.addf %122, %121 : vector<4x32xf32>
    %124 = arith.divf %122, %123 : vector<4x32xf32>
    %125 = vector.extract_strided_slice %104 {offsets = [0, 64], sizes = [4, 32], strides = [1, 1]} : vector<4x96xf32> to vector<4x32xf32>
    %126 = vector.extract_strided_slice %108 {offsets = [0, 64], sizes = [4, 32], strides = [1, 1]} : vector<4x96xf32> to vector<4x32xf32>
    %127 = arith.mulf %116, %126 : vector<4x32xf32>
    %128 = arith.addf %125, %127 : vector<4x32xf32>
    %129 = math.tanh %128 : vector<4x32xf32>
    %130 = vector.extract_strided_slice %9 {offsets = [2, 0, 0], sizes = [1, 4, 32], strides = [1, 1, 1]} : vector<8x4x32xf32> to vector<1x4x32xf32>
    %131 = vector.shape_cast %130 : vector<1x4x32xf32> to vector<4x32xf32>
    %cst_30 = arith.constant 1.000000e+00 : f32
    %132 = vector.broadcast %cst_30 : f32 to vector<4x32xf32>
    %133 = arith.subf %132, %124 : vector<4x32xf32>
    %134 = arith.mulf %133, %129 : vector<4x32xf32>
    %135 = arith.mulf %124, %97 : vector<4x32xf32>
    %136 = arith.addf %134, %135 : vector<4x32xf32>
    %137 = arith.mulf %131, %136 : vector<4x32xf32>
    %cst_31 = arith.constant 1.000000e+00 : f32
    %138 = vector.broadcast %cst_31 : f32 to vector<4x32xf32>
    %139 = arith.subf %138, %131 : vector<4x32xf32>
    %140 = arith.mulf %139, %97 : vector<4x32xf32>
    %141 = arith.addf %137, %140 : vector<4x32xf32>
    %142 = arith.mulf %131, %141 : vector<4x32xf32>
    %143 = vector.extract_strided_slice %10 {offsets = [2, 0, 0], sizes = [1, 4, 32], strides = [1, 1, 1]} : vector<8x4x32xf32> to vector<1x4x32xf32>
    %144 = vector.shape_cast %143 : vector<1x4x32xf32> to vector<4x32xf32>
    %145 = arith.addf %142, %144 : vector<4x32xf32>
    %146 = arith.maximumf %102, %145 : vector<4x32xf32>
    %147 = vector.extract_strided_slice %7 {offsets = [3, 0, 0], sizes = [1, 4, 96], strides = [1, 1, 1]} : vector<8x4x96xf32> to vector<1x4x96xf32>
    %148 = vector.shape_cast %147 : vector<1x4x96xf32> to vector<4x96xf32>
    %149 = arith.truncf %141 : vector<4x32xf32> to vector<4x32xbf16>
    %cst_32 = arith.constant dense<0.000000e+00> : vector<4x96xf32>
    %150 = tpu.matmul %149, %11, %cst_32 {dimension_numbers = #tpu.dot_dimension_numbers<[1], [0], [0], [1], [0, 0, 1, 1], [], []>} : vector<4x32xbf16>, vector<32x96xbf16>, vector<4x96xf32> -> vector<4x96xf32>
    %151 = vector.broadcast %12 : vector<1x96xf32> to vector<4x96xf32>
    %152 = arith.addf %150, %151 : vector<4x96xf32>
    %153 = vector.extract_strided_slice %148 {offsets = [0, 0], sizes = [4, 32], strides = [1, 1]} : vector<4x96xf32> to vector<4x32xf32>
    %154 = vector.extract_strided_slice %152 {offsets = [0, 0], sizes = [4, 32], strides = [1, 1]} : vector<4x96xf32> to vector<4x32xf32>
    %155 = arith.addf %153, %154 : vector<4x32xf32>
    %156 = arith.negf %155 : vector<4x32xf32>
    %157 = math.exp %156 : vector<4x32xf32>
    %cst_33 = arith.constant 1.000000e+00 : f32
    %158 = vector.broadcast %cst_33 : f32 to vector<4x32xf32>
    %159 = arith.addf %158, %157 : vector<4x32xf32>
    %160 = arith.divf %158, %159 : vector<4x32xf32>
    %161 = vector.extract_strided_slice %148 {offsets = [0, 32], sizes = [4, 32], strides = [1, 1]} : vector<4x96xf32> to vector<4x32xf32>
    %162 = vector.extract_strided_slice %152 {offsets = [0, 32], sizes = [4, 32], strides = [1, 1]} : vector<4x96xf32> to vector<4x32xf32>
    %163 = arith.addf %161, %162 : vector<4x32xf32>
    %164 = arith.negf %163 : vector<4x32xf32>
    %165 = math.exp %164 : vector<4x32xf32>
    %cst_34 = arith.constant 1.000000e+00 : f32
    %166 = vector.broadcast %cst_34 : f32 to vector<4x32xf32>
    %167 = arith.addf %166, %165 : vector<4x32xf32>
    %168 = arith.divf %166, %167 : vector<4x32xf32>
    %169 = vector.extract_strided_slice %148 {offsets = [0, 64], sizes = [4, 32], strides = [1, 1]} : vector<4x96xf32> to vector<4x32xf32>
    %170 = vector.extract_strided_slice %152 {offsets = [0, 64], sizes = [4, 32], strides = [1, 1]} : vector<4x96xf32> to vector<4x32xf32>
    %171 = arith.mulf %160, %170 : vector<4x32xf32>
    %172 = arith.addf %169, %171 : vector<4x32xf32>
    %173 = math.tanh %172 : vector<4x32xf32>
    %174 = vector.extract_strided_slice %9 {offsets = [3, 0, 0], sizes = [1, 4, 32], strides = [1, 1, 1]} : vector<8x4x32xf32> to vector<1x4x32xf32>
    %175 = vector.shape_cast %174 : vector<1x4x32xf32> to vector<4x32xf32>
    %cst_35 = arith.constant 1.000000e+00 : f32
    %176 = vector.broadcast %cst_35 : f32 to vector<4x32xf32>
    %177 = arith.subf %176, %168 : vector<4x32xf32>
    %178 = arith.mulf %177, %173 : vector<4x32xf32>
    %179 = arith.mulf %168, %141 : vector<4x32xf32>
    %180 = arith.addf %178, %179 : vector<4x32xf32>
    %181 = arith.mulf %175, %180 : vector<4x32xf32>
    %cst_36 = arith.constant 1.000000e+00 : f32
    %182 = vector.broadcast %cst_36 : f32 to vector<4x32xf32>
    %183 = arith.subf %182, %175 : vector<4x32xf32>
    %184 = arith.mulf %183, %141 : vector<4x32xf32>
    %185 = arith.addf %181, %184 : vector<4x32xf32>
    %186 = arith.mulf %175, %185 : vector<4x32xf32>
    %187 = vector.extract_strided_slice %10 {offsets = [3, 0, 0], sizes = [1, 4, 32], strides = [1, 1, 1]} : vector<8x4x32xf32> to vector<1x4x32xf32>
    %188 = vector.shape_cast %187 : vector<1x4x32xf32> to vector<4x32xf32>
    %189 = arith.addf %186, %188 : vector<4x32xf32>
    %190 = arith.maximumf %146, %189 : vector<4x32xf32>
    %191 = vector.extract_strided_slice %7 {offsets = [4, 0, 0], sizes = [1, 4, 96], strides = [1, 1, 1]} : vector<8x4x96xf32> to vector<1x4x96xf32>
    %192 = vector.shape_cast %191 : vector<1x4x96xf32> to vector<4x96xf32>
    %193 = arith.truncf %185 : vector<4x32xf32> to vector<4x32xbf16>
    %cst_37 = arith.constant dense<0.000000e+00> : vector<4x96xf32>
    %194 = tpu.matmul %193, %11, %cst_37 {dimension_numbers = #tpu.dot_dimension_numbers<[1], [0], [0], [1], [0, 0, 1, 1], [], []>} : vector<4x32xbf16>, vector<32x96xbf16>, vector<4x96xf32> -> vector<4x96xf32>
    %195 = vector.broadcast %12 : vector<1x96xf32> to vector<4x96xf32>
    %196 = arith.addf %194, %195 : vector<4x96xf32>
    %197 = vector.extract_strided_slice %192 {offsets = [0, 0], sizes = [4, 32], strides = [1, 1]} : vector<4x96xf32> to vector<4x32xf32>
    %198 = vector.extract_strided_slice %196 {offsets = [0, 0], sizes = [4, 32], strides = [1, 1]} : vector<4x96xf32> to vector<4x32xf32>
    %199 = arith.addf %197, %198 : vector<4x32xf32>
    %200 = arith.negf %199 : vector<4x32xf32>
    %201 = math.exp %200 : vector<4x32xf32>
    %cst_38 = arith.constant 1.000000e+00 : f32
    %202 = vector.broadcast %cst_38 : f32 to vector<4x32xf32>
    %203 = arith.addf %202, %201 : vector<4x32xf32>
    %204 = arith.divf %202, %203 : vector<4x32xf32>
    %205 = vector.extract_strided_slice %192 {offsets = [0, 32], sizes = [4, 32], strides = [1, 1]} : vector<4x96xf32> to vector<4x32xf32>
    %206 = vector.extract_strided_slice %196 {offsets = [0, 32], sizes = [4, 32], strides = [1, 1]} : vector<4x96xf32> to vector<4x32xf32>
    %207 = arith.addf %205, %206 : vector<4x32xf32>
    %208 = arith.negf %207 : vector<4x32xf32>
    %209 = math.exp %208 : vector<4x32xf32>
    %cst_39 = arith.constant 1.000000e+00 : f32
    %210 = vector.broadcast %cst_39 : f32 to vector<4x32xf32>
    %211 = arith.addf %210, %209 : vector<4x32xf32>
    %212 = arith.divf %210, %211 : vector<4x32xf32>
    %213 = vector.extract_strided_slice %192 {offsets = [0, 64], sizes = [4, 32], strides = [1, 1]} : vector<4x96xf32> to vector<4x32xf32>
    %214 = vector.extract_strided_slice %196 {offsets = [0, 64], sizes = [4, 32], strides = [1, 1]} : vector<4x96xf32> to vector<4x32xf32>
    %215 = arith.mulf %204, %214 : vector<4x32xf32>
    %216 = arith.addf %213, %215 : vector<4x32xf32>
    %217 = math.tanh %216 : vector<4x32xf32>
    %218 = vector.extract_strided_slice %9 {offsets = [4, 0, 0], sizes = [1, 4, 32], strides = [1, 1, 1]} : vector<8x4x32xf32> to vector<1x4x32xf32>
    %219 = vector.shape_cast %218 : vector<1x4x32xf32> to vector<4x32xf32>
    %cst_40 = arith.constant 1.000000e+00 : f32
    %220 = vector.broadcast %cst_40 : f32 to vector<4x32xf32>
    %221 = arith.subf %220, %212 : vector<4x32xf32>
    %222 = arith.mulf %221, %217 : vector<4x32xf32>
    %223 = arith.mulf %212, %185 : vector<4x32xf32>
    %224 = arith.addf %222, %223 : vector<4x32xf32>
    %225 = arith.mulf %219, %224 : vector<4x32xf32>
    %cst_41 = arith.constant 1.000000e+00 : f32
    %226 = vector.broadcast %cst_41 : f32 to vector<4x32xf32>
    %227 = arith.subf %226, %219 : vector<4x32xf32>
    %228 = arith.mulf %227, %185 : vector<4x32xf32>
    %229 = arith.addf %225, %228 : vector<4x32xf32>
    %230 = arith.mulf %219, %229 : vector<4x32xf32>
    %231 = vector.extract_strided_slice %10 {offsets = [4, 0, 0], sizes = [1, 4, 32], strides = [1, 1, 1]} : vector<8x4x32xf32> to vector<1x4x32xf32>
    %232 = vector.shape_cast %231 : vector<1x4x32xf32> to vector<4x32xf32>
    %233 = arith.addf %230, %232 : vector<4x32xf32>
    %234 = arith.maximumf %190, %233 : vector<4x32xf32>
    %235 = vector.extract_strided_slice %7 {offsets = [5, 0, 0], sizes = [1, 4, 96], strides = [1, 1, 1]} : vector<8x4x96xf32> to vector<1x4x96xf32>
    %236 = vector.shape_cast %235 : vector<1x4x96xf32> to vector<4x96xf32>
    %237 = arith.truncf %229 : vector<4x32xf32> to vector<4x32xbf16>
    %cst_42 = arith.constant dense<0.000000e+00> : vector<4x96xf32>
    %238 = tpu.matmul %237, %11, %cst_42 {dimension_numbers = #tpu.dot_dimension_numbers<[1], [0], [0], [1], [0, 0, 1, 1], [], []>} : vector<4x32xbf16>, vector<32x96xbf16>, vector<4x96xf32> -> vector<4x96xf32>
    %239 = vector.broadcast %12 : vector<1x96xf32> to vector<4x96xf32>
    %240 = arith.addf %238, %239 : vector<4x96xf32>
    %241 = vector.extract_strided_slice %236 {offsets = [0, 0], sizes = [4, 32], strides = [1, 1]} : vector<4x96xf32> to vector<4x32xf32>
    %242 = vector.extract_strided_slice %240 {offsets = [0, 0], sizes = [4, 32], strides = [1, 1]} : vector<4x96xf32> to vector<4x32xf32>
    %243 = arith.addf %241, %242 : vector<4x32xf32>
    %244 = arith.negf %243 : vector<4x32xf32>
    %245 = math.exp %244 : vector<4x32xf32>
    %cst_43 = arith.constant 1.000000e+00 : f32
    %246 = vector.broadcast %cst_43 : f32 to vector<4x32xf32>
    %247 = arith.addf %246, %245 : vector<4x32xf32>
    %248 = arith.divf %246, %247 : vector<4x32xf32>
    %249 = vector.extract_strided_slice %236 {offsets = [0, 32], sizes = [4, 32], strides = [1, 1]} : vector<4x96xf32> to vector<4x32xf32>
    %250 = vector.extract_strided_slice %240 {offsets = [0, 32], sizes = [4, 32], strides = [1, 1]} : vector<4x96xf32> to vector<4x32xf32>
    %251 = arith.addf %249, %250 : vector<4x32xf32>
    %252 = arith.negf %251 : vector<4x32xf32>
    %253 = math.exp %252 : vector<4x32xf32>
    %cst_44 = arith.constant 1.000000e+00 : f32
    %254 = vector.broadcast %cst_44 : f32 to vector<4x32xf32>
    %255 = arith.addf %254, %253 : vector<4x32xf32>
    %256 = arith.divf %254, %255 : vector<4x32xf32>
    %257 = vector.extract_strided_slice %236 {offsets = [0, 64], sizes = [4, 32], strides = [1, 1]} : vector<4x96xf32> to vector<4x32xf32>
    %258 = vector.extract_strided_slice %240 {offsets = [0, 64], sizes = [4, 32], strides = [1, 1]} : vector<4x96xf32> to vector<4x32xf32>
    %259 = arith.mulf %248, %258 : vector<4x32xf32>
    %260 = arith.addf %257, %259 : vector<4x32xf32>
    %261 = math.tanh %260 : vector<4x32xf32>
    %262 = vector.extract_strided_slice %9 {offsets = [5, 0, 0], sizes = [1, 4, 32], strides = [1, 1, 1]} : vector<8x4x32xf32> to vector<1x4x32xf32>
    %263 = vector.shape_cast %262 : vector<1x4x32xf32> to vector<4x32xf32>
    %cst_45 = arith.constant 1.000000e+00 : f32
    %264 = vector.broadcast %cst_45 : f32 to vector<4x32xf32>
    %265 = arith.subf %264, %256 : vector<4x32xf32>
    %266 = arith.mulf %265, %261 : vector<4x32xf32>
    %267 = arith.mulf %256, %229 : vector<4x32xf32>
    %268 = arith.addf %266, %267 : vector<4x32xf32>
    %269 = arith.mulf %263, %268 : vector<4x32xf32>
    %cst_46 = arith.constant 1.000000e+00 : f32
    %270 = vector.broadcast %cst_46 : f32 to vector<4x32xf32>
    %271 = arith.subf %270, %263 : vector<4x32xf32>
    %272 = arith.mulf %271, %229 : vector<4x32xf32>
    %273 = arith.addf %269, %272 : vector<4x32xf32>
    %274 = arith.mulf %263, %273 : vector<4x32xf32>
    %275 = vector.extract_strided_slice %10 {offsets = [5, 0, 0], sizes = [1, 4, 32], strides = [1, 1, 1]} : vector<8x4x32xf32> to vector<1x4x32xf32>
    %276 = vector.shape_cast %275 : vector<1x4x32xf32> to vector<4x32xf32>
    %277 = arith.addf %274, %276 : vector<4x32xf32>
    %278 = arith.maximumf %234, %277 : vector<4x32xf32>
    %279 = vector.extract_strided_slice %7 {offsets = [6, 0, 0], sizes = [1, 4, 96], strides = [1, 1, 1]} : vector<8x4x96xf32> to vector<1x4x96xf32>
    %280 = vector.shape_cast %279 : vector<1x4x96xf32> to vector<4x96xf32>
    %281 = arith.truncf %273 : vector<4x32xf32> to vector<4x32xbf16>
    %cst_47 = arith.constant dense<0.000000e+00> : vector<4x96xf32>
    %282 = tpu.matmul %281, %11, %cst_47 {dimension_numbers = #tpu.dot_dimension_numbers<[1], [0], [0], [1], [0, 0, 1, 1], [], []>} : vector<4x32xbf16>, vector<32x96xbf16>, vector<4x96xf32> -> vector<4x96xf32>
    %283 = vector.broadcast %12 : vector<1x96xf32> to vector<4x96xf32>
    %284 = arith.addf %282, %283 : vector<4x96xf32>
    %285 = vector.extract_strided_slice %280 {offsets = [0, 0], sizes = [4, 32], strides = [1, 1]} : vector<4x96xf32> to vector<4x32xf32>
    %286 = vector.extract_strided_slice %284 {offsets = [0, 0], sizes = [4, 32], strides = [1, 1]} : vector<4x96xf32> to vector<4x32xf32>
    %287 = arith.addf %285, %286 : vector<4x32xf32>
    %288 = arith.negf %287 : vector<4x32xf32>
    %289 = math.exp %288 : vector<4x32xf32>
    %cst_48 = arith.constant 1.000000e+00 : f32
    %290 = vector.broadcast %cst_48 : f32 to vector<4x32xf32>
    %291 = arith.addf %290, %289 : vector<4x32xf32>
    %292 = arith.divf %290, %291 : vector<4x32xf32>
    %293 = vector.extract_strided_slice %280 {offsets = [0, 32], sizes = [4, 32], strides = [1, 1]} : vector<4x96xf32> to vector<4x32xf32>
    %294 = vector.extract_strided_slice %284 {offsets = [0, 32], sizes = [4, 32], strides = [1, 1]} : vector<4x96xf32> to vector<4x32xf32>
    %295 = arith.addf %293, %294 : vector<4x32xf32>
    %296 = arith.negf %295 : vector<4x32xf32>
    %297 = math.exp %296 : vector<4x32xf32>
    %cst_49 = arith.constant 1.000000e+00 : f32
    %298 = vector.broadcast %cst_49 : f32 to vector<4x32xf32>
    %299 = arith.addf %298, %297 : vector<4x32xf32>
    %300 = arith.divf %298, %299 : vector<4x32xf32>
    %301 = vector.extract_strided_slice %280 {offsets = [0, 64], sizes = [4, 32], strides = [1, 1]} : vector<4x96xf32> to vector<4x32xf32>
    %302 = vector.extract_strided_slice %284 {offsets = [0, 64], sizes = [4, 32], strides = [1, 1]} : vector<4x96xf32> to vector<4x32xf32>
    %303 = arith.mulf %292, %302 : vector<4x32xf32>
    %304 = arith.addf %301, %303 : vector<4x32xf32>
    %305 = math.tanh %304 : vector<4x32xf32>
    %306 = vector.extract_strided_slice %9 {offsets = [6, 0, 0], sizes = [1, 4, 32], strides = [1, 1, 1]} : vector<8x4x32xf32> to vector<1x4x32xf32>
    %307 = vector.shape_cast %306 : vector<1x4x32xf32> to vector<4x32xf32>
    %cst_50 = arith.constant 1.000000e+00 : f32
    %308 = vector.broadcast %cst_50 : f32 to vector<4x32xf32>
    %309 = arith.subf %308, %300 : vector<4x32xf32>
    %310 = arith.mulf %309, %305 : vector<4x32xf32>
    %311 = arith.mulf %300, %273 : vector<4x32xf32>
    %312 = arith.addf %310, %311 : vector<4x32xf32>
    %313 = arith.mulf %307, %312 : vector<4x32xf32>
    %cst_51 = arith.constant 1.000000e+00 : f32
    %314 = vector.broadcast %cst_51 : f32 to vector<4x32xf32>
    %315 = arith.subf %314, %307 : vector<4x32xf32>
    %316 = arith.mulf %315, %273 : vector<4x32xf32>
    %317 = arith.addf %313, %316 : vector<4x32xf32>
    %318 = arith.mulf %307, %317 : vector<4x32xf32>
    %319 = vector.extract_strided_slice %10 {offsets = [6, 0, 0], sizes = [1, 4, 32], strides = [1, 1, 1]} : vector<8x4x32xf32> to vector<1x4x32xf32>
    %320 = vector.shape_cast %319 : vector<1x4x32xf32> to vector<4x32xf32>
    %321 = arith.addf %318, %320 : vector<4x32xf32>
    %322 = arith.maximumf %278, %321 : vector<4x32xf32>
    %323 = vector.extract_strided_slice %7 {offsets = [7, 0, 0], sizes = [1, 4, 96], strides = [1, 1, 1]} : vector<8x4x96xf32> to vector<1x4x96xf32>
    %324 = vector.shape_cast %323 : vector<1x4x96xf32> to vector<4x96xf32>
    %325 = arith.truncf %317 : vector<4x32xf32> to vector<4x32xbf16>
    %cst_52 = arith.constant dense<0.000000e+00> : vector<4x96xf32>
    %326 = tpu.matmul %325, %11, %cst_52 {dimension_numbers = #tpu.dot_dimension_numbers<[1], [0], [0], [1], [0, 0, 1, 1], [], []>} : vector<4x32xbf16>, vector<32x96xbf16>, vector<4x96xf32> -> vector<4x96xf32>
    %327 = vector.broadcast %12 : vector<1x96xf32> to vector<4x96xf32>
    %328 = arith.addf %326, %327 : vector<4x96xf32>
    %329 = vector.extract_strided_slice %324 {offsets = [0, 0], sizes = [4, 32], strides = [1, 1]} : vector<4x96xf32> to vector<4x32xf32>
    %330 = vector.extract_strided_slice %328 {offsets = [0, 0], sizes = [4, 32], strides = [1, 1]} : vector<4x96xf32> to vector<4x32xf32>
    %331 = arith.addf %329, %330 : vector<4x32xf32>
    %332 = arith.negf %331 : vector<4x32xf32>
    %333 = math.exp %332 : vector<4x32xf32>
    %cst_53 = arith.constant 1.000000e+00 : f32
    %334 = vector.broadcast %cst_53 : f32 to vector<4x32xf32>
    %335 = arith.addf %334, %333 : vector<4x32xf32>
    %336 = arith.divf %334, %335 : vector<4x32xf32>
    %337 = vector.extract_strided_slice %324 {offsets = [0, 32], sizes = [4, 32], strides = [1, 1]} : vector<4x96xf32> to vector<4x32xf32>
    %338 = vector.extract_strided_slice %328 {offsets = [0, 32], sizes = [4, 32], strides = [1, 1]} : vector<4x96xf32> to vector<4x32xf32>
    %339 = arith.addf %337, %338 : vector<4x32xf32>
    %340 = arith.negf %339 : vector<4x32xf32>
    %341 = math.exp %340 : vector<4x32xf32>
    %cst_54 = arith.constant 1.000000e+00 : f32
    %342 = vector.broadcast %cst_54 : f32 to vector<4x32xf32>
    %343 = arith.addf %342, %341 : vector<4x32xf32>
    %344 = arith.divf %342, %343 : vector<4x32xf32>
    %345 = vector.extract_strided_slice %324 {offsets = [0, 64], sizes = [4, 32], strides = [1, 1]} : vector<4x96xf32> to vector<4x32xf32>
    %346 = vector.extract_strided_slice %328 {offsets = [0, 64], sizes = [4, 32], strides = [1, 1]} : vector<4x96xf32> to vector<4x32xf32>
    %347 = arith.mulf %336, %346 : vector<4x32xf32>
    %348 = arith.addf %345, %347 : vector<4x32xf32>
    %349 = math.tanh %348 : vector<4x32xf32>
    %350 = vector.extract_strided_slice %9 {offsets = [7, 0, 0], sizes = [1, 4, 32], strides = [1, 1, 1]} : vector<8x4x32xf32> to vector<1x4x32xf32>
    %351 = vector.shape_cast %350 : vector<1x4x32xf32> to vector<4x32xf32>
    %cst_55 = arith.constant 1.000000e+00 : f32
    %352 = vector.broadcast %cst_55 : f32 to vector<4x32xf32>
    %353 = arith.subf %352, %344 : vector<4x32xf32>
    %354 = arith.mulf %353, %349 : vector<4x32xf32>
    %355 = arith.mulf %344, %317 : vector<4x32xf32>
    %356 = arith.addf %354, %355 : vector<4x32xf32>
    %357 = arith.mulf %351, %356 : vector<4x32xf32>
    %cst_56 = arith.constant 1.000000e+00 : f32
    %358 = vector.broadcast %cst_56 : f32 to vector<4x32xf32>
    %359 = arith.subf %358, %351 : vector<4x32xf32>
    %360 = arith.mulf %359, %317 : vector<4x32xf32>
    %361 = arith.addf %357, %360 : vector<4x32xf32>
    %362 = arith.mulf %351, %361 : vector<4x32xf32>
    %363 = vector.extract_strided_slice %10 {offsets = [7, 0, 0], sizes = [1, 4, 32], strides = [1, 1, 1]} : vector<8x4x32xf32> to vector<1x4x32xf32>
    %364 = vector.shape_cast %363 : vector<1x4x32xf32> to vector<4x32xf32>
    %365 = arith.addf %362, %364 : vector<4x32xf32>
    %366 = arith.maximumf %322, %365 : vector<4x32xf32>
    %c0_57 = arith.constant 0 : index
    %c0_58 = arith.constant 0 : index
    %367 = vector.load %arg6[%c0_57, %c0_58] : memref<32x96xbf16, #tpu.memory_space<vmem>>, vector<32x96xbf16>
    %c0_59 = arith.constant 0 : index
    %c0_60 = arith.constant 0 : index
    %368 = vector.load %arg8[%c0_59, %c0_60] : memref<1x96xf32, #tpu.memory_space<vmem>>, vector<1x96xf32>
    %cst_61 = arith.constant 0.000000e+00 : f32
    %369 = vector.broadcast %cst_61 : f32 to vector<4x32xf32>
    %cst_62 = arith.constant 0xFF800000 : f32
    %370 = vector.broadcast %cst_62 : f32 to vector<4x32xf32>
    %371 = vector.extract_strided_slice %8 {offsets = [7, 0, 0], sizes = [1, 4, 96], strides = [1, 1, 1]} : vector<8x4x96xf32> to vector<1x4x96xf32>
    %372 = vector.shape_cast %371 : vector<1x4x96xf32> to vector<4x96xf32>
    %373 = arith.truncf %369 : vector<4x32xf32> to vector<4x32xbf16>
    %cst_63 = arith.constant dense<0.000000e+00> : vector<4x96xf32>
    %374 = tpu.matmul %373, %367, %cst_63 {dimension_numbers = #tpu.dot_dimension_numbers<[1], [0], [0], [1], [0, 0, 1, 1], [], []>} : vector<4x32xbf16>, vector<32x96xbf16>, vector<4x96xf32> -> vector<4x96xf32>
    %375 = vector.broadcast %368 : vector<1x96xf32> to vector<4x96xf32>
    %376 = arith.addf %374, %375 : vector<4x96xf32>
    %377 = vector.extract_strided_slice %372 {offsets = [0, 0], sizes = [4, 32], strides = [1, 1]} : vector<4x96xf32> to vector<4x32xf32>
    %378 = vector.extract_strided_slice %376 {offsets = [0, 0], sizes = [4, 32], strides = [1, 1]} : vector<4x96xf32> to vector<4x32xf32>
    %379 = arith.addf %377, %378 : vector<4x32xf32>
    %380 = arith.negf %379 : vector<4x32xf32>
    %381 = math.exp %380 : vector<4x32xf32>
    %cst_64 = arith.constant 1.000000e+00 : f32
    %382 = vector.broadcast %cst_64 : f32 to vector<4x32xf32>
    %383 = arith.addf %382, %381 : vector<4x32xf32>
    %384 = arith.divf %382, %383 : vector<4x32xf32>
    %385 = vector.extract_strided_slice %372 {offsets = [0, 32], sizes = [4, 32], strides = [1, 1]} : vector<4x96xf32> to vector<4x32xf32>
    %386 = vector.extract_strided_slice %376 {offsets = [0, 32], sizes = [4, 32], strides = [1, 1]} : vector<4x96xf32> to vector<4x32xf32>
    %387 = arith.addf %385, %386 : vector<4x32xf32>
    %388 = arith.negf %387 : vector<4x32xf32>
    %389 = math.exp %388 : vector<4x32xf32>
    %cst_65 = arith.constant 1.000000e+00 : f32
    %390 = vector.broadcast %cst_65 : f32 to vector<4x32xf32>
    %391 = arith.addf %390, %389 : vector<4x32xf32>
    %392 = arith.divf %390, %391 : vector<4x32xf32>
    %393 = vector.extract_strided_slice %372 {offsets = [0, 64], sizes = [4, 32], strides = [1, 1]} : vector<4x96xf32> to vector<4x32xf32>
    %394 = vector.extract_strided_slice %376 {offsets = [0, 64], sizes = [4, 32], strides = [1, 1]} : vector<4x96xf32> to vector<4x32xf32>
    %395 = arith.mulf %384, %394 : vector<4x32xf32>
    %396 = arith.addf %393, %395 : vector<4x32xf32>
    %397 = math.tanh %396 : vector<4x32xf32>
    %398 = vector.extract_strided_slice %9 {offsets = [7, 0, 0], sizes = [1, 4, 32], strides = [1, 1, 1]} : vector<8x4x32xf32> to vector<1x4x32xf32>
    %399 = vector.shape_cast %398 : vector<1x4x32xf32> to vector<4x32xf32>
    %cst_66 = arith.constant 1.000000e+00 : f32
    %400 = vector.broadcast %cst_66 : f32 to vector<4x32xf32>
    %401 = arith.subf %400, %392 : vector<4x32xf32>
    %402 = arith.mulf %401, %397 : vector<4x32xf32>
    %403 = arith.mulf %392, %369 : vector<4x32xf32>
    %404 = arith.addf %402, %403 : vector<4x32xf32>
    %405 = arith.mulf %399, %404 : vector<4x32xf32>
    %cst_67 = arith.constant 1.000000e+00 : f32
    %406 = vector.broadcast %cst_67 : f32 to vector<4x32xf32>
    %407 = arith.subf %406, %399 : vector<4x32xf32>
    %408 = arith.mulf %407, %369 : vector<4x32xf32>
    %409 = arith.addf %405, %408 : vector<4x32xf32>
    %410 = arith.mulf %399, %409 : vector<4x32xf32>
    %411 = vector.extract_strided_slice %10 {offsets = [7, 0, 0], sizes = [1, 4, 32], strides = [1, 1, 1]} : vector<8x4x32xf32> to vector<1x4x32xf32>
    %412 = vector.shape_cast %411 : vector<1x4x32xf32> to vector<4x32xf32>
    %413 = arith.addf %410, %412 : vector<4x32xf32>
    %414 = arith.maximumf %370, %413 : vector<4x32xf32>
    %415 = vector.extract_strided_slice %8 {offsets = [6, 0, 0], sizes = [1, 4, 96], strides = [1, 1, 1]} : vector<8x4x96xf32> to vector<1x4x96xf32>
    %416 = vector.shape_cast %415 : vector<1x4x96xf32> to vector<4x96xf32>
    %417 = arith.truncf %409 : vector<4x32xf32> to vector<4x32xbf16>
    %cst_68 = arith.constant dense<0.000000e+00> : vector<4x96xf32>
    %418 = tpu.matmul %417, %367, %cst_68 {dimension_numbers = #tpu.dot_dimension_numbers<[1], [0], [0], [1], [0, 0, 1, 1], [], []>} : vector<4x32xbf16>, vector<32x96xbf16>, vector<4x96xf32> -> vector<4x96xf32>
    %419 = vector.broadcast %368 : vector<1x96xf32> to vector<4x96xf32>
    %420 = arith.addf %418, %419 : vector<4x96xf32>
    %421 = vector.extract_strided_slice %416 {offsets = [0, 0], sizes = [4, 32], strides = [1, 1]} : vector<4x96xf32> to vector<4x32xf32>
    %422 = vector.extract_strided_slice %420 {offsets = [0, 0], sizes = [4, 32], strides = [1, 1]} : vector<4x96xf32> to vector<4x32xf32>
    %423 = arith.addf %421, %422 : vector<4x32xf32>
    %424 = arith.negf %423 : vector<4x32xf32>
    %425 = math.exp %424 : vector<4x32xf32>
    %cst_69 = arith.constant 1.000000e+00 : f32
    %426 = vector.broadcast %cst_69 : f32 to vector<4x32xf32>
    %427 = arith.addf %426, %425 : vector<4x32xf32>
    %428 = arith.divf %426, %427 : vector<4x32xf32>
    %429 = vector.extract_strided_slice %416 {offsets = [0, 32], sizes = [4, 32], strides = [1, 1]} : vector<4x96xf32> to vector<4x32xf32>
    %430 = vector.extract_strided_slice %420 {offsets = [0, 32], sizes = [4, 32], strides = [1, 1]} : vector<4x96xf32> to vector<4x32xf32>
    %431 = arith.addf %429, %430 : vector<4x32xf32>
    %432 = arith.negf %431 : vector<4x32xf32>
    %433 = math.exp %432 : vector<4x32xf32>
    %cst_70 = arith.constant 1.000000e+00 : f32
    %434 = vector.broadcast %cst_70 : f32 to vector<4x32xf32>
    %435 = arith.addf %434, %433 : vector<4x32xf32>
    %436 = arith.divf %434, %435 : vector<4x32xf32>
    %437 = vector.extract_strided_slice %416 {offsets = [0, 64], sizes = [4, 32], strides = [1, 1]} : vector<4x96xf32> to vector<4x32xf32>
    %438 = vector.extract_strided_slice %420 {offsets = [0, 64], sizes = [4, 32], strides = [1, 1]} : vector<4x96xf32> to vector<4x32xf32>
    %439 = arith.mulf %428, %438 : vector<4x32xf32>
    %440 = arith.addf %437, %439 : vector<4x32xf32>
    %441 = math.tanh %440 : vector<4x32xf32>
    %442 = vector.extract_strided_slice %9 {offsets = [6, 0, 0], sizes = [1, 4, 32], strides = [1, 1, 1]} : vector<8x4x32xf32> to vector<1x4x32xf32>
    %443 = vector.shape_cast %442 : vector<1x4x32xf32> to vector<4x32xf32>
    %cst_71 = arith.constant 1.000000e+00 : f32
    %444 = vector.broadcast %cst_71 : f32 to vector<4x32xf32>
    %445 = arith.subf %444, %436 : vector<4x32xf32>
    %446 = arith.mulf %445, %441 : vector<4x32xf32>
    %447 = arith.mulf %436, %409 : vector<4x32xf32>
    %448 = arith.addf %446, %447 : vector<4x32xf32>
    %449 = arith.mulf %443, %448 : vector<4x32xf32>
    %cst_72 = arith.constant 1.000000e+00 : f32
    %450 = vector.broadcast %cst_72 : f32 to vector<4x32xf32>
    %451 = arith.subf %450, %443 : vector<4x32xf32>
    %452 = arith.mulf %451, %409 : vector<4x32xf32>
    %453 = arith.addf %449, %452 : vector<4x32xf32>
    %454 = arith.mulf %443, %453 : vector<4x32xf32>
    %455 = vector.extract_strided_slice %10 {offsets = [6, 0, 0], sizes = [1, 4, 32], strides = [1, 1, 1]} : vector<8x4x32xf32> to vector<1x4x32xf32>
    %456 = vector.shape_cast %455 : vector<1x4x32xf32> to vector<4x32xf32>
    %457 = arith.addf %454, %456 : vector<4x32xf32>
    %458 = arith.maximumf %414, %457 : vector<4x32xf32>
    %459 = vector.extract_strided_slice %8 {offsets = [5, 0, 0], sizes = [1, 4, 96], strides = [1, 1, 1]} : vector<8x4x96xf32> to vector<1x4x96xf32>
    %460 = vector.shape_cast %459 : vector<1x4x96xf32> to vector<4x96xf32>
    %461 = arith.truncf %453 : vector<4x32xf32> to vector<4x32xbf16>
    %cst_73 = arith.constant dense<0.000000e+00> : vector<4x96xf32>
    %462 = tpu.matmul %461, %367, %cst_73 {dimension_numbers = #tpu.dot_dimension_numbers<[1], [0], [0], [1], [0, 0, 1, 1], [], []>} : vector<4x32xbf16>, vector<32x96xbf16>, vector<4x96xf32> -> vector<4x96xf32>
    %463 = vector.broadcast %368 : vector<1x96xf32> to vector<4x96xf32>
    %464 = arith.addf %462, %463 : vector<4x96xf32>
    %465 = vector.extract_strided_slice %460 {offsets = [0, 0], sizes = [4, 32], strides = [1, 1]} : vector<4x96xf32> to vector<4x32xf32>
    %466 = vector.extract_strided_slice %464 {offsets = [0, 0], sizes = [4, 32], strides = [1, 1]} : vector<4x96xf32> to vector<4x32xf32>
    %467 = arith.addf %465, %466 : vector<4x32xf32>
    %468 = arith.negf %467 : vector<4x32xf32>
    %469 = math.exp %468 : vector<4x32xf32>
    %cst_74 = arith.constant 1.000000e+00 : f32
    %470 = vector.broadcast %cst_74 : f32 to vector<4x32xf32>
    %471 = arith.addf %470, %469 : vector<4x32xf32>
    %472 = arith.divf %470, %471 : vector<4x32xf32>
    %473 = vector.extract_strided_slice %460 {offsets = [0, 32], sizes = [4, 32], strides = [1, 1]} : vector<4x96xf32> to vector<4x32xf32>
    %474 = vector.extract_strided_slice %464 {offsets = [0, 32], sizes = [4, 32], strides = [1, 1]} : vector<4x96xf32> to vector<4x32xf32>
    %475 = arith.addf %473, %474 : vector<4x32xf32>
    %476 = arith.negf %475 : vector<4x32xf32>
    %477 = math.exp %476 : vector<4x32xf32>
    %cst_75 = arith.constant 1.000000e+00 : f32
    %478 = vector.broadcast %cst_75 : f32 to vector<4x32xf32>
    %479 = arith.addf %478, %477 : vector<4x32xf32>
    %480 = arith.divf %478, %479 : vector<4x32xf32>
    %481 = vector.extract_strided_slice %460 {offsets = [0, 64], sizes = [4, 32], strides = [1, 1]} : vector<4x96xf32> to vector<4x32xf32>
    %482 = vector.extract_strided_slice %464 {offsets = [0, 64], sizes = [4, 32], strides = [1, 1]} : vector<4x96xf32> to vector<4x32xf32>
    %483 = arith.mulf %472, %482 : vector<4x32xf32>
    %484 = arith.addf %481, %483 : vector<4x32xf32>
    %485 = math.tanh %484 : vector<4x32xf32>
    %486 = vector.extract_strided_slice %9 {offsets = [5, 0, 0], sizes = [1, 4, 32], strides = [1, 1, 1]} : vector<8x4x32xf32> to vector<1x4x32xf32>
    %487 = vector.shape_cast %486 : vector<1x4x32xf32> to vector<4x32xf32>
    %cst_76 = arith.constant 1.000000e+00 : f32
    %488 = vector.broadcast %cst_76 : f32 to vector<4x32xf32>
    %489 = arith.subf %488, %480 : vector<4x32xf32>
    %490 = arith.mulf %489, %485 : vector<4x32xf32>
    %491 = arith.mulf %480, %453 : vector<4x32xf32>
    %492 = arith.addf %490, %491 : vector<4x32xf32>
    %493 = arith.mulf %487, %492 : vector<4x32xf32>
    %cst_77 = arith.constant 1.000000e+00 : f32
    %494 = vector.broadcast %cst_77 : f32 to vector<4x32xf32>
    %495 = arith.subf %494, %487 : vector<4x32xf32>
    %496 = arith.mulf %495, %453 : vector<4x32xf32>
    %497 = arith.addf %493, %496 : vector<4x32xf32>
    %498 = arith.mulf %487, %497 : vector<4x32xf32>
    %499 = vector.extract_strided_slice %10 {offsets = [5, 0, 0], sizes = [1, 4, 32], strides = [1, 1, 1]} : vector<8x4x32xf32> to vector<1x4x32xf32>
    %500 = vector.shape_cast %499 : vector<1x4x32xf32> to vector<4x32xf32>
    %501 = arith.addf %498, %500 : vector<4x32xf32>
    %502 = arith.maximumf %458, %501 : vector<4x32xf32>
    %503 = vector.extract_strided_slice %8 {offsets = [4, 0, 0], sizes = [1, 4, 96], strides = [1, 1, 1]} : vector<8x4x96xf32> to vector<1x4x96xf32>
    %504 = vector.shape_cast %503 : vector<1x4x96xf32> to vector<4x96xf32>
    %505 = arith.truncf %497 : vector<4x32xf32> to vector<4x32xbf16>
    %cst_78 = arith.constant dense<0.000000e+00> : vector<4x96xf32>
    %506 = tpu.matmul %505, %367, %cst_78 {dimension_numbers = #tpu.dot_dimension_numbers<[1], [0], [0], [1], [0, 0, 1, 1], [], []>} : vector<4x32xbf16>, vector<32x96xbf16>, vector<4x96xf32> -> vector<4x96xf32>
    %507 = vector.broadcast %368 : vector<1x96xf32> to vector<4x96xf32>
    %508 = arith.addf %506, %507 : vector<4x96xf32>
    %509 = vector.extract_strided_slice %504 {offsets = [0, 0], sizes = [4, 32], strides = [1, 1]} : vector<4x96xf32> to vector<4x32xf32>
    %510 = vector.extract_strided_slice %508 {offsets = [0, 0], sizes = [4, 32], strides = [1, 1]} : vector<4x96xf32> to vector<4x32xf32>
    %511 = arith.addf %509, %510 : vector<4x32xf32>
    %512 = arith.negf %511 : vector<4x32xf32>
    %513 = math.exp %512 : vector<4x32xf32>
    %cst_79 = arith.constant 1.000000e+00 : f32
    %514 = vector.broadcast %cst_79 : f32 to vector<4x32xf32>
    %515 = arith.addf %514, %513 : vector<4x32xf32>
    %516 = arith.divf %514, %515 : vector<4x32xf32>
    %517 = vector.extract_strided_slice %504 {offsets = [0, 32], sizes = [4, 32], strides = [1, 1]} : vector<4x96xf32> to vector<4x32xf32>
    %518 = vector.extract_strided_slice %508 {offsets = [0, 32], sizes = [4, 32], strides = [1, 1]} : vector<4x96xf32> to vector<4x32xf32>
    %519 = arith.addf %517, %518 : vector<4x32xf32>
    %520 = arith.negf %519 : vector<4x32xf32>
    %521 = math.exp %520 : vector<4x32xf32>
    %cst_80 = arith.constant 1.000000e+00 : f32
    %522 = vector.broadcast %cst_80 : f32 to vector<4x32xf32>
    %523 = arith.addf %522, %521 : vector<4x32xf32>
    %524 = arith.divf %522, %523 : vector<4x32xf32>
    %525 = vector.extract_strided_slice %504 {offsets = [0, 64], sizes = [4, 32], strides = [1, 1]} : vector<4x96xf32> to vector<4x32xf32>
    %526 = vector.extract_strided_slice %508 {offsets = [0, 64], sizes = [4, 32], strides = [1, 1]} : vector<4x96xf32> to vector<4x32xf32>
    %527 = arith.mulf %516, %526 : vector<4x32xf32>
    %528 = arith.addf %525, %527 : vector<4x32xf32>
    %529 = math.tanh %528 : vector<4x32xf32>
    %530 = vector.extract_strided_slice %9 {offsets = [4, 0, 0], sizes = [1, 4, 32], strides = [1, 1, 1]} : vector<8x4x32xf32> to vector<1x4x32xf32>
    %531 = vector.shape_cast %530 : vector<1x4x32xf32> to vector<4x32xf32>
    %cst_81 = arith.constant 1.000000e+00 : f32
    %532 = vector.broadcast %cst_81 : f32 to vector<4x32xf32>
    %533 = arith.subf %532, %524 : vector<4x32xf32>
    %534 = arith.mulf %533, %529 : vector<4x32xf32>
    %535 = arith.mulf %524, %497 : vector<4x32xf32>
    %536 = arith.addf %534, %535 : vector<4x32xf32>
    %537 = arith.mulf %531, %536 : vector<4x32xf32>
    %cst_82 = arith.constant 1.000000e+00 : f32
    %538 = vector.broadcast %cst_82 : f32 to vector<4x32xf32>
    %539 = arith.subf %538, %531 : vector<4x32xf32>
    %540 = arith.mulf %539, %497 : vector<4x32xf32>
    %541 = arith.addf %537, %540 : vector<4x32xf32>
    %542 = arith.mulf %531, %541 : vector<4x32xf32>
    %543 = vector.extract_strided_slice %10 {offsets = [4, 0, 0], sizes = [1, 4, 32], strides = [1, 1, 1]} : vector<8x4x32xf32> to vector<1x4x32xf32>
    %544 = vector.shape_cast %543 : vector<1x4x32xf32> to vector<4x32xf32>
    %545 = arith.addf %542, %544 : vector<4x32xf32>
    %546 = arith.maximumf %502, %545 : vector<4x32xf32>
    %547 = vector.extract_strided_slice %8 {offsets = [3, 0, 0], sizes = [1, 4, 96], strides = [1, 1, 1]} : vector<8x4x96xf32> to vector<1x4x96xf32>
    %548 = vector.shape_cast %547 : vector<1x4x96xf32> to vector<4x96xf32>
    %549 = arith.truncf %541 : vector<4x32xf32> to vector<4x32xbf16>
    %cst_83 = arith.constant dense<0.000000e+00> : vector<4x96xf32>
    %550 = tpu.matmul %549, %367, %cst_83 {dimension_numbers = #tpu.dot_dimension_numbers<[1], [0], [0], [1], [0, 0, 1, 1], [], []>} : vector<4x32xbf16>, vector<32x96xbf16>, vector<4x96xf32> -> vector<4x96xf32>
    %551 = vector.broadcast %368 : vector<1x96xf32> to vector<4x96xf32>
    %552 = arith.addf %550, %551 : vector<4x96xf32>
    %553 = vector.extract_strided_slice %548 {offsets = [0, 0], sizes = [4, 32], strides = [1, 1]} : vector<4x96xf32> to vector<4x32xf32>
    %554 = vector.extract_strided_slice %552 {offsets = [0, 0], sizes = [4, 32], strides = [1, 1]} : vector<4x96xf32> to vector<4x32xf32>
    %555 = arith.addf %553, %554 : vector<4x32xf32>
    %556 = arith.negf %555 : vector<4x32xf32>
    %557 = math.exp %556 : vector<4x32xf32>
    %cst_84 = arith.constant 1.000000e+00 : f32
    %558 = vector.broadcast %cst_84 : f32 to vector<4x32xf32>
    %559 = arith.addf %558, %557 : vector<4x32xf32>
    %560 = arith.divf %558, %559 : vector<4x32xf32>
    %561 = vector.extract_strided_slice %548 {offsets = [0, 32], sizes = [4, 32], strides = [1, 1]} : vector<4x96xf32> to vector<4x32xf32>
    %562 = vector.extract_strided_slice %552 {offsets = [0, 32], sizes = [4, 32], strides = [1, 1]} : vector<4x96xf32> to vector<4x32xf32>
    %563 = arith.addf %561, %562 : vector<4x32xf32>
    %564 = arith.negf %563 : vector<4x32xf32>
    %565 = math.exp %564 : vector<4x32xf32>
    %cst_85 = arith.constant 1.000000e+00 : f32
    %566 = vector.broadcast %cst_85 : f32 to vector<4x32xf32>
    %567 = arith.addf %566, %565 : vector<4x32xf32>
    %568 = arith.divf %566, %567 : vector<4x32xf32>
    %569 = vector.extract_strided_slice %548 {offsets = [0, 64], sizes = [4, 32], strides = [1, 1]} : vector<4x96xf32> to vector<4x32xf32>
    %570 = vector.extract_strided_slice %552 {offsets = [0, 64], sizes = [4, 32], strides = [1, 1]} : vector<4x96xf32> to vector<4x32xf32>
    %571 = arith.mulf %560, %570 : vector<4x32xf32>
    %572 = arith.addf %569, %571 : vector<4x32xf32>
    %573 = math.tanh %572 : vector<4x32xf32>
    %574 = vector.extract_strided_slice %9 {offsets = [3, 0, 0], sizes = [1, 4, 32], strides = [1, 1, 1]} : vector<8x4x32xf32> to vector<1x4x32xf32>
    %575 = vector.shape_cast %574 : vector<1x4x32xf32> to vector<4x32xf32>
    %cst_86 = arith.constant 1.000000e+00 : f32
    %576 = vector.broadcast %cst_86 : f32 to vector<4x32xf32>
    %577 = arith.subf %576, %568 : vector<4x32xf32>
    %578 = arith.mulf %577, %573 : vector<4x32xf32>
    %579 = arith.mulf %568, %541 : vector<4x32xf32>
    %580 = arith.addf %578, %579 : vector<4x32xf32>
    %581 = arith.mulf %575, %580 : vector<4x32xf32>
    %cst_87 = arith.constant 1.000000e+00 : f32
    %582 = vector.broadcast %cst_87 : f32 to vector<4x32xf32>
    %583 = arith.subf %582, %575 : vector<4x32xf32>
    %584 = arith.mulf %583, %541 : vector<4x32xf32>
    %585 = arith.addf %581, %584 : vector<4x32xf32>
    %586 = arith.mulf %575, %585 : vector<4x32xf32>
    %587 = vector.extract_strided_slice %10 {offsets = [3, 0, 0], sizes = [1, 4, 32], strides = [1, 1, 1]} : vector<8x4x32xf32> to vector<1x4x32xf32>
    %588 = vector.shape_cast %587 : vector<1x4x32xf32> to vector<4x32xf32>
    %589 = arith.addf %586, %588 : vector<4x32xf32>
    %590 = arith.maximumf %546, %589 : vector<4x32xf32>
    %591 = vector.extract_strided_slice %8 {offsets = [2, 0, 0], sizes = [1, 4, 96], strides = [1, 1, 1]} : vector<8x4x96xf32> to vector<1x4x96xf32>
    %592 = vector.shape_cast %591 : vector<1x4x96xf32> to vector<4x96xf32>
    %593 = arith.truncf %585 : vector<4x32xf32> to vector<4x32xbf16>
    %cst_88 = arith.constant dense<0.000000e+00> : vector<4x96xf32>
    %594 = tpu.matmul %593, %367, %cst_88 {dimension_numbers = #tpu.dot_dimension_numbers<[1], [0], [0], [1], [0, 0, 1, 1], [], []>} : vector<4x32xbf16>, vector<32x96xbf16>, vector<4x96xf32> -> vector<4x96xf32>
    %595 = vector.broadcast %368 : vector<1x96xf32> to vector<4x96xf32>
    %596 = arith.addf %594, %595 : vector<4x96xf32>
    %597 = vector.extract_strided_slice %592 {offsets = [0, 0], sizes = [4, 32], strides = [1, 1]} : vector<4x96xf32> to vector<4x32xf32>
    %598 = vector.extract_strided_slice %596 {offsets = [0, 0], sizes = [4, 32], strides = [1, 1]} : vector<4x96xf32> to vector<4x32xf32>
    %599 = arith.addf %597, %598 : vector<4x32xf32>
    %600 = arith.negf %599 : vector<4x32xf32>
    %601 = math.exp %600 : vector<4x32xf32>
    %cst_89 = arith.constant 1.000000e+00 : f32
    %602 = vector.broadcast %cst_89 : f32 to vector<4x32xf32>
    %603 = arith.addf %602, %601 : vector<4x32xf32>
    %604 = arith.divf %602, %603 : vector<4x32xf32>
    %605 = vector.extract_strided_slice %592 {offsets = [0, 32], sizes = [4, 32], strides = [1, 1]} : vector<4x96xf32> to vector<4x32xf32>
    %606 = vector.extract_strided_slice %596 {offsets = [0, 32], sizes = [4, 32], strides = [1, 1]} : vector<4x96xf32> to vector<4x32xf32>
    %607 = arith.addf %605, %606 : vector<4x32xf32>
    %608 = arith.negf %607 : vector<4x32xf32>
    %609 = math.exp %608 : vector<4x32xf32>
    %cst_90 = arith.constant 1.000000e+00 : f32
    %610 = vector.broadcast %cst_90 : f32 to vector<4x32xf32>
    %611 = arith.addf %610, %609 : vector<4x32xf32>
    %612 = arith.divf %610, %611 : vector<4x32xf32>
    %613 = vector.extract_strided_slice %592 {offsets = [0, 64], sizes = [4, 32], strides = [1, 1]} : vector<4x96xf32> to vector<4x32xf32>
    %614 = vector.extract_strided_slice %596 {offsets = [0, 64], sizes = [4, 32], strides = [1, 1]} : vector<4x96xf32> to vector<4x32xf32>
    %615 = arith.mulf %604, %614 : vector<4x32xf32>
    %616 = arith.addf %613, %615 : vector<4x32xf32>
    %617 = math.tanh %616 : vector<4x32xf32>
    %618 = vector.extract_strided_slice %9 {offsets = [2, 0, 0], sizes = [1, 4, 32], strides = [1, 1, 1]} : vector<8x4x32xf32> to vector<1x4x32xf32>
    %619 = vector.shape_cast %618 : vector<1x4x32xf32> to vector<4x32xf32>
    %cst_91 = arith.constant 1.000000e+00 : f32
    %620 = vector.broadcast %cst_91 : f32 to vector<4x32xf32>
    %621 = arith.subf %620, %612 : vector<4x32xf32>
    %622 = arith.mulf %621, %617 : vector<4x32xf32>
    %623 = arith.mulf %612, %585 : vector<4x32xf32>
    %624 = arith.addf %622, %623 : vector<4x32xf32>
    %625 = arith.mulf %619, %624 : vector<4x32xf32>
    %cst_92 = arith.constant 1.000000e+00 : f32
    %626 = vector.broadcast %cst_92 : f32 to vector<4x32xf32>
    %627 = arith.subf %626, %619 : vector<4x32xf32>
    %628 = arith.mulf %627, %585 : vector<4x32xf32>
    %629 = arith.addf %625, %628 : vector<4x32xf32>
    %630 = arith.mulf %619, %629 : vector<4x32xf32>
    %631 = vector.extract_strided_slice %10 {offsets = [2, 0, 0], sizes = [1, 4, 32], strides = [1, 1, 1]} : vector<8x4x32xf32> to vector<1x4x32xf32>
    %632 = vector.shape_cast %631 : vector<1x4x32xf32> to vector<4x32xf32>
    %633 = arith.addf %630, %632 : vector<4x32xf32>
    %634 = arith.maximumf %590, %633 : vector<4x32xf32>
    %635 = vector.extract_strided_slice %8 {offsets = [1, 0, 0], sizes = [1, 4, 96], strides = [1, 1, 1]} : vector<8x4x96xf32> to vector<1x4x96xf32>
    %636 = vector.shape_cast %635 : vector<1x4x96xf32> to vector<4x96xf32>
    %637 = arith.truncf %629 : vector<4x32xf32> to vector<4x32xbf16>
    %cst_93 = arith.constant dense<0.000000e+00> : vector<4x96xf32>
    %638 = tpu.matmul %637, %367, %cst_93 {dimension_numbers = #tpu.dot_dimension_numbers<[1], [0], [0], [1], [0, 0, 1, 1], [], []>} : vector<4x32xbf16>, vector<32x96xbf16>, vector<4x96xf32> -> vector<4x96xf32>
    %639 = vector.broadcast %368 : vector<1x96xf32> to vector<4x96xf32>
    %640 = arith.addf %638, %639 : vector<4x96xf32>
    %641 = vector.extract_strided_slice %636 {offsets = [0, 0], sizes = [4, 32], strides = [1, 1]} : vector<4x96xf32> to vector<4x32xf32>
    %642 = vector.extract_strided_slice %640 {offsets = [0, 0], sizes = [4, 32], strides = [1, 1]} : vector<4x96xf32> to vector<4x32xf32>
    %643 = arith.addf %641, %642 : vector<4x32xf32>
    %644 = arith.negf %643 : vector<4x32xf32>
    %645 = math.exp %644 : vector<4x32xf32>
    %cst_94 = arith.constant 1.000000e+00 : f32
    %646 = vector.broadcast %cst_94 : f32 to vector<4x32xf32>
    %647 = arith.addf %646, %645 : vector<4x32xf32>
    %648 = arith.divf %646, %647 : vector<4x32xf32>
    %649 = vector.extract_strided_slice %636 {offsets = [0, 32], sizes = [4, 32], strides = [1, 1]} : vector<4x96xf32> to vector<4x32xf32>
    %650 = vector.extract_strided_slice %640 {offsets = [0, 32], sizes = [4, 32], strides = [1, 1]} : vector<4x96xf32> to vector<4x32xf32>
    %651 = arith.addf %649, %650 : vector<4x32xf32>
    %652 = arith.negf %651 : vector<4x32xf32>
    %653 = math.exp %652 : vector<4x32xf32>
    %cst_95 = arith.constant 1.000000e+00 : f32
    %654 = vector.broadcast %cst_95 : f32 to vector<4x32xf32>
    %655 = arith.addf %654, %653 : vector<4x32xf32>
    %656 = arith.divf %654, %655 : vector<4x32xf32>
    %657 = vector.extract_strided_slice %636 {offsets = [0, 64], sizes = [4, 32], strides = [1, 1]} : vector<4x96xf32> to vector<4x32xf32>
    %658 = vector.extract_strided_slice %640 {offsets = [0, 64], sizes = [4, 32], strides = [1, 1]} : vector<4x96xf32> to vector<4x32xf32>
    %659 = arith.mulf %648, %658 : vector<4x32xf32>
    %660 = arith.addf %657, %659 : vector<4x32xf32>
    %661 = math.tanh %660 : vector<4x32xf32>
    %662 = vector.extract_strided_slice %9 {offsets = [1, 0, 0], sizes = [1, 4, 32], strides = [1, 1, 1]} : vector<8x4x32xf32> to vector<1x4x32xf32>
    %663 = vector.shape_cast %662 : vector<1x4x32xf32> to vector<4x32xf32>
    %cst_96 = arith.constant 1.000000e+00 : f32
    %664 = vector.broadcast %cst_96 : f32 to vector<4x32xf32>
    %665 = arith.subf %664, %656 : vector<4x32xf32>
    %666 = arith.mulf %665, %661 : vector<4x32xf32>
    %667 = arith.mulf %656, %629 : vector<4x32xf32>
    %668 = arith.addf %666, %667 : vector<4x32xf32>
    %669 = arith.mulf %663, %668 : vector<4x32xf32>
    %cst_97 = arith.constant 1.000000e+00 : f32
    %670 = vector.broadcast %cst_97 : f32 to vector<4x32xf32>
    %671 = arith.subf %670, %663 : vector<4x32xf32>
    %672 = arith.mulf %671, %629 : vector<4x32xf32>
    %673 = arith.addf %669, %672 : vector<4x32xf32>
    %674 = arith.mulf %663, %673 : vector<4x32xf32>
    %675 = vector.extract_strided_slice %10 {offsets = [1, 0, 0], sizes = [1, 4, 32], strides = [1, 1, 1]} : vector<8x4x32xf32> to vector<1x4x32xf32>
    %676 = vector.shape_cast %675 : vector<1x4x32xf32> to vector<4x32xf32>
    %677 = arith.addf %674, %676 : vector<4x32xf32>
    %678 = arith.maximumf %634, %677 : vector<4x32xf32>
    %679 = vector.extract_strided_slice %8 {offsets = [0, 0, 0], sizes = [1, 4, 96], strides = [1, 1, 1]} : vector<8x4x96xf32> to vector<1x4x96xf32>
    %680 = vector.shape_cast %679 : vector<1x4x96xf32> to vector<4x96xf32>
    %681 = arith.truncf %673 : vector<4x32xf32> to vector<4x32xbf16>
    %cst_98 = arith.constant dense<0.000000e+00> : vector<4x96xf32>
    %682 = tpu.matmul %681, %367, %cst_98 {dimension_numbers = #tpu.dot_dimension_numbers<[1], [0], [0], [1], [0, 0, 1, 1], [], []>} : vector<4x32xbf16>, vector<32x96xbf16>, vector<4x96xf32> -> vector<4x96xf32>
    %683 = vector.broadcast %368 : vector<1x96xf32> to vector<4x96xf32>
    %684 = arith.addf %682, %683 : vector<4x96xf32>
    %685 = vector.extract_strided_slice %680 {offsets = [0, 0], sizes = [4, 32], strides = [1, 1]} : vector<4x96xf32> to vector<4x32xf32>
    %686 = vector.extract_strided_slice %684 {offsets = [0, 0], sizes = [4, 32], strides = [1, 1]} : vector<4x96xf32> to vector<4x32xf32>
    %687 = arith.addf %685, %686 : vector<4x32xf32>
    %688 = arith.negf %687 : vector<4x32xf32>
    %689 = math.exp %688 : vector<4x32xf32>
    %cst_99 = arith.constant 1.000000e+00 : f32
    %690 = vector.broadcast %cst_99 : f32 to vector<4x32xf32>
    %691 = arith.addf %690, %689 : vector<4x32xf32>
    %692 = arith.divf %690, %691 : vector<4x32xf32>
    %693 = vector.extract_strided_slice %680 {offsets = [0, 32], sizes = [4, 32], strides = [1, 1]} : vector<4x96xf32> to vector<4x32xf32>
    %694 = vector.extract_strided_slice %684 {offsets = [0, 32], sizes = [4, 32], strides = [1, 1]} : vector<4x96xf32> to vector<4x32xf32>
    %695 = arith.addf %693, %694 : vector<4x32xf32>
    %696 = arith.negf %695 : vector<4x32xf32>
    %697 = math.exp %696 : vector<4x32xf32>
    %cst_100 = arith.constant 1.000000e+00 : f32
    %698 = vector.broadcast %cst_100 : f32 to vector<4x32xf32>
    %699 = arith.addf %698, %697 : vector<4x32xf32>
    %700 = arith.divf %698, %699 : vector<4x32xf32>
    %701 = vector.extract_strided_slice %680 {offsets = [0, 64], sizes = [4, 32], strides = [1, 1]} : vector<4x96xf32> to vector<4x32xf32>
    %702 = vector.extract_strided_slice %684 {offsets = [0, 64], sizes = [4, 32], strides = [1, 1]} : vector<4x96xf32> to vector<4x32xf32>
    %703 = arith.mulf %692, %702 : vector<4x32xf32>
    %704 = arith.addf %701, %703 : vector<4x32xf32>
    %705 = math.tanh %704 : vector<4x32xf32>
    %706 = vector.extract_strided_slice %9 {offsets = [0, 0, 0], sizes = [1, 4, 32], strides = [1, 1, 1]} : vector<8x4x32xf32> to vector<1x4x32xf32>
    %707 = vector.shape_cast %706 : vector<1x4x32xf32> to vector<4x32xf32>
    %cst_101 = arith.constant 1.000000e+00 : f32
    %708 = vector.broadcast %cst_101 : f32 to vector<4x32xf32>
    %709 = arith.subf %708, %700 : vector<4x32xf32>
    %710 = arith.mulf %709, %705 : vector<4x32xf32>
    %711 = arith.mulf %700, %673 : vector<4x32xf32>
    %712 = arith.addf %710, %711 : vector<4x32xf32>
    %713 = arith.mulf %707, %712 : vector<4x32xf32>
    %cst_102 = arith.constant 1.000000e+00 : f32
    %714 = vector.broadcast %cst_102 : f32 to vector<4x32xf32>
    %715 = arith.subf %714, %707 : vector<4x32xf32>
    %716 = arith.mulf %715, %673 : vector<4x32xf32>
    %717 = arith.addf %713, %716 : vector<4x32xf32>
    %718 = arith.mulf %707, %717 : vector<4x32xf32>
    %719 = vector.extract_strided_slice %10 {offsets = [0, 0, 0], sizes = [1, 4, 32], strides = [1, 1, 1]} : vector<8x4x32xf32> to vector<1x4x32xf32>
    %720 = vector.shape_cast %719 : vector<1x4x32xf32> to vector<4x32xf32>
    %721 = arith.addf %718, %720 : vector<4x32xf32>
    %722 = arith.maximumf %678, %721 : vector<4x32xf32>
    %c0_103 = arith.constant 0 : index
    %c0_104 = arith.constant 0 : index
    %c0_105 = arith.constant 0 : index
    %723 = vector.load %arg9[%c0_103, %c0_104, %c0_105] : memref<2x128x2xbf16, #tpu.memory_space<vmem>>, vector<2x128x2xbf16>
    %c0_106 = arith.constant 0 : index
    %c0_107 = arith.constant 0 : index
    %c0_108 = arith.constant 0 : index
    %724 = vector.load %arg10[%c0_106, %c0_107, %c0_108] : memref<2x1x2xf32, #tpu.memory_space<vmem>>, vector<2x1x2xf32>
    %725 = vector.extract_strided_slice %366 {offsets = [0, 0], sizes = [2, 16], strides = [1, 1]} : vector<4x32xf32> to vector<2x16xf32>
    %726 = vector.extract_strided_slice %722 {offsets = [0, 0], sizes = [2, 16], strides = [1, 1]} : vector<4x32xf32> to vector<2x16xf32>
    %727 = tpu.concatenate %725, %726 in 1 : vector<2x16xf32>, vector<2x16xf32> -> vector<2x32xf32>
    %728 = vector.extract_strided_slice %366 {offsets = [2, 0], sizes = [2, 16], strides = [1, 1]} : vector<4x32xf32> to vector<2x16xf32>
    %729 = vector.extract_strided_slice %722 {offsets = [2, 0], sizes = [2, 16], strides = [1, 1]} : vector<4x32xf32> to vector<2x16xf32>
    %730 = tpu.concatenate %728, %729 in 1 : vector<2x16xf32>, vector<2x16xf32> -> vector<2x32xf32>
    %731 = arith.mulf %727, %730 : vector<2x32xf32>
    %732 = arith.subf %727, %730 : vector<2x32xf32>
    %733 = math.absf %732 : vector<2x32xf32>
    %734 = tpu.concatenate %727, %730, %731, %733 in 1 : vector<2x32xf32>, vector<2x32xf32>, vector<2x32xf32>, vector<2x32xf32> -> vector<2x128xf32>
    %735 = arith.truncf %734 : vector<2x128xf32> to vector<2x128xbf16>
    %736 = vector.extract_strided_slice %723 {offsets = [0, 0, 0], sizes = [1, 128, 2], strides = [1, 1, 1]} : vector<2x128x2xbf16> to vector<1x128x2xbf16>
    %737 = vector.shape_cast %736 : vector<1x128x2xbf16> to vector<128x2xbf16>
    %cst_109 = arith.constant dense<0.000000e+00> : vector<2x2xf32>
    %738 = tpu.matmul %735, %737, %cst_109 {dimension_numbers = #tpu.dot_dimension_numbers<[1], [0], [0], [1], [0, 0, 1, 1], [], []>} : vector<2x128xbf16>, vector<128x2xbf16>, vector<2x2xf32> -> vector<2x2xf32>
    %739 = vector.extract_strided_slice %724 {offsets = [0, 0, 0], sizes = [1, 1, 2], strides = [1, 1, 1]} : vector<2x1x2xf32> to vector<1x1x2xf32>
    %740 = vector.shape_cast %739 : vector<1x1x2xf32> to vector<1x2xf32>
    %741 = vector.broadcast %740 : vector<1x2xf32> to vector<2x2xf32>
    %742 = arith.addf %738, %741 : vector<2x2xf32>
    %c0_110 = arith.constant 0 : index
    %c0_111 = arith.constant 0 : index
    %c0_112 = arith.constant 0 : index
    %743 = vector.load %arg11[%c0_110, %c0_111, %c0_112] : memref<2x2x2xf32, #tpu.memory_space<vmem>>, vector<1x2x2xf32>
    %744 = vector.shape_cast %743 : vector<1x2x2xf32> to vector<2x2xf32>
    %745 = vector.shape_cast %742 : vector<2x2xf32> to vector<1x2x2xf32>
    tpu.vector_store %arg11[%c0_110, %c0_111, %c0_112], %745 {strides = array<i32>} : memref<2x2x2xf32, #tpu.memory_space<vmem>>, vector<1x2x2xf32>,
    %746 = vector.extract_strided_slice %366 {offsets = [0, 16], sizes = [2, 16], strides = [1, 1]} : vector<4x32xf32> to vector<2x16xf32>
    %747 = vector.extract_strided_slice %722 {offsets = [0, 16], sizes = [2, 16], strides = [1, 1]} : vector<4x32xf32> to vector<2x16xf32>
    %748 = tpu.concatenate %746, %747 in 1 : vector<2x16xf32>, vector<2x16xf32> -> vector<2x32xf32>
    %749 = vector.extract_strided_slice %366 {offsets = [2, 16], sizes = [2, 16], strides = [1, 1]} : vector<4x32xf32> to vector<2x16xf32>
    %750 = vector.extract_strided_slice %722 {offsets = [2, 16], sizes = [2, 16], strides = [1, 1]} : vector<4x32xf32> to vector<2x16xf32>
    %751 = tpu.concatenate %749, %750 in 1 : vector<2x16xf32>, vector<2x16xf32> -> vector<2x32xf32>
    %752 = arith.mulf %748, %751 : vector<2x32xf32>
    %753 = arith.subf %748, %751 : vector<2x32xf32>
    %754 = math.absf %753 : vector<2x32xf32>
    %755 = tpu.concatenate %748, %751, %752, %754 in 1 : vector<2x32xf32>, vector<2x32xf32>, vector<2x32xf32>, vector<2x32xf32> -> vector<2x128xf32>
    %756 = arith.truncf %755 : vector<2x128xf32> to vector<2x128xbf16>
    %757 = vector.extract_strided_slice %723 {offsets = [1, 0, 0], sizes = [1, 128, 2], strides = [1, 1, 1]} : vector<2x128x2xbf16> to vector<1x128x2xbf16>
    %758 = vector.shape_cast %757 : vector<1x128x2xbf16> to vector<128x2xbf16>
    %cst_113 = arith.constant dense<0.000000e+00> : vector<2x2xf32>
    %759 = tpu.matmul %756, %758, %cst_113 {dimension_numbers = #tpu.dot_dimension_numbers<[1], [0], [0], [1], [0, 0, 1, 1], [], []>} : vector<2x128xbf16>, vector<128x2xbf16>, vector<2x2xf32> -> vector<2x2xf32>
    %760 = vector.extract_strided_slice %724 {offsets = [1, 0, 0], sizes = [1, 1, 2], strides = [1, 1, 1]} : vector<2x1x2xf32> to vector<1x1x2xf32>
    %761 = vector.shape_cast %760 : vector<1x1x2xf32> to vector<1x2xf32>
    %762 = vector.broadcast %761 : vector<1x2xf32> to vector<2x2xf32>
    %763 = arith.addf %759, %762 : vector<2x2xf32>
    %c1 = arith.constant 1 : index
    %c0_114 = arith.constant 0 : index
    %c0_115 = arith.constant 0 : index
    %764 = vector.load %arg11[%c1, %c0_114, %c0_115] : memref<2x2x2xf32, #tpu.memory_space<vmem>>, vector<1x2x2xf32>
    %765 = vector.shape_cast %764 : vector<1x2x2xf32> to vector<2x2xf32>
    %766 = vector.shape_cast %763 : vector<2x2xf32> to vector<1x2x2xf32>
    tpu.vector_store %arg11[%c1, %c0_114, %c0_115], %766 {strides = array<i32>} : memref<2x2x2xf32, #tpu.memory_space<vmem>>, vector<1x2x2xf32>,
    return
  }
}

</mosaic_0001>

<llo_original>
// kernel: tpu_custom_call.1
$region0: #{tpu_custom_call.1}
  #allocation0 [shape = 'u32[]', space=smem, size = 0x4, offset = 0x4, fixed_abs, tag = 'smem constant byte address 0x4 - core index']
  #allocation1 [shape = 'u32[144,128]{1,0:T(1,128)}', space=vmem, size = 0x12000, scoped, tag = 'internal scratch']
  %s0 = inlined_call_operand.vmem [shape: bf16[32,32], index: 0, kind: input, shape index: {}]
  %s1 = inlined_call_operand.vmem [shape: f32[8,4,32], index: 1, kind: input, shape index: {}]
  %s2 = inlined_call_operand.vmem [shape: f32[8,4,32], index: 2, kind: input, shape index: {}]
  %s3 = inlined_call_operand.vmem [shape: bf16[32,192], index: 3, kind: input, shape index: {}]
  %s4 = inlined_call_operand.vmem [shape: f32[1,192], index: 4, kind: input, shape index: {}]
  %s5 = inlined_call_operand.vmem [shape: bf16[32,96], index: 5, kind: input, shape index: {}]
  %s6 = inlined_call_operand.hbm [shape: bf16[32,96], index: 6, kind: input, shape index: {}]
  %s7 = inlined_call_operand.vmem [shape: f32[1,96], index: 7, kind: input, shape index: {}]
  %s8 = inlined_call_operand.vmem [shape: f32[1,96], index: 8, kind: input, shape index: {}]
  %s9 = inlined_call_operand.vmem [shape: bf16[2,128,2], index: 9, kind: input, shape index: {}]
  %s10 = inlined_call_operand.vmem [shape: f32[2,1,2], index: 10, kind: input, shape index: {}]
  %s11 = inlined_call_operand.hbm [shape: f32[2,2,2], index: 11, kind: output, shape index: {}]
  %s12 = sld [smem:[#allocation0]]
  $region58: #{tpu_custom_call.1} parent=0
    _
  %s14 = ssub.s32 1, %s12
  %s15 = scalar_select 0, %s14, %s12
  $region1: #{tpu_custom_call.1} parent=0
    #allocation2 [shape = 'u8[8192]{0}', space=vmem, size = 0x2000, scoped, tag = 'input window, operand 6, single buffered']
    #allocation3 [shape = 's32[1]{0}', space=sflag, size = 0x4, scoped, tag = 'scoped memory for tpu_custom_call.1']
    #allocation4 [shape = 's32[1]{0}', space=sflag, size = 0x4, scoped, tag = 'scoped memory for tpu_custom_call.1']
    #allocation5 [shape = 'u8[2048]{0}', space=vmem, size = 0x800, scoped, tag = 'output window, operand 0, single buffered']
    %16 = vsyncpa [#allocation3], 0
    %17 = vsyncpa [#allocation4], 0
    // Predicated region
    $region2: #{tpu_custom_call.1} parent=1 // pred_check
      _
    $region3: #{tpu_custom_call.1} parent=1 // pred_check_branch
      %19 = sbr.rel (0) target = $region5
    $region4: #{tpu_custom_call.1} parent=1 // pred_region
      _
    $region5: #{tpu_custom_call.1} parent=1 // pred_fallthru
      _
    // Predicated region
    $region6: #{tpu_custom_call.1} parent=1 // pred_check
      _
    $region7: #{tpu_custom_call.1} parent=1 // pred_check_branch
      %21 = sbr.rel (0) target = $region9
    $region8: #{tpu_custom_call.1} parent=1 // pred_region
      _
    $region9: #{tpu_custom_call.1} parent=1 // pred_fallthru
      _
    // Predicated region
    $region10: #{tpu_custom_call.1} parent=1 // pred_check
      _
    $region11: #{tpu_custom_call.1} parent=1 // pred_check_branch
      %23 = sbr.rel (0) target = $region13
    $region12: #{tpu_custom_call.1} parent=1 // pred_region
      _
    $region13: #{tpu_custom_call.1} parent=1 // pred_fallthru
      _
    // Predicated region
    $region14: #{tpu_custom_call.1} parent=1 // pred_check
      _
    $region15: #{tpu_custom_call.1} parent=1 // pred_check_branch
      %25 = sbr.rel (0) target = $region17
    $region16: #{tpu_custom_call.1} parent=1 // pred_region
      _
    $region17: #{tpu_custom_call.1} parent=1 // pred_fallthru
      _
    // Predicated region
    $region18: #{tpu_custom_call.1} parent=1 // pred_check
      _
    $region19: #{tpu_custom_call.1} parent=1 // pred_check_branch
      %27 = sbr.rel (0) target = $region21
    $region20: #{tpu_custom_call.1} parent=1 // pred_region
      _
    $region21: #{tpu_custom_call.1} parent=1 // pred_fallthru
      _
    // Predicated region
    $region22: #{tpu_custom_call.1} parent=1 // pred_check
      _
    $region23: #{tpu_custom_call.1} parent=1 // pred_check_branch
      %29 = sbr.rel (0) target = $region25
    $region24: #{tpu_custom_call.1} parent=1 // pred_region
      _
    $region25: #{tpu_custom_call.1} parent=1 // pred_fallthru
      _
    // Predicated region
    $region26: #{tpu_custom_call.1} parent=1 // pred_check
      _
    $region27: #{tpu_custom_call.1} parent=1 // pred_check_branch
      %31 = sbr.rel (0) target = $region29
    $region28: #{tpu_custom_call.1} parent=1 // pred_region
      %s33 = ssub.s32 256, 256
      %34 = vsyncadd [#allocation3], %s33
      %s35 = sshll.u32 [#allocation2], 4
      %s36 = int_to_ptr.vmem [resolvable:$true] %s35
      %41 = dma.hbm_to_vmem [thread:$0]  %s6, 256, %s36, [#allocation3], 64, 64, 4
    $region29: #{tpu_custom_call.1} parent=1 // pred_fallthru
      _
    // Predicated region
    $region30: #{tpu_custom_call.1} parent=1 // pred_check
      _
    $region31: #{tpu_custom_call.1} parent=1 // pred_check_branch
      %43 = sbr.rel (0) target = $region33
    $region32: #{tpu_custom_call.1} parent=1 // pred_region
      _
    $region33: #{tpu_custom_call.1} parent=1 // pred_fallthru
      _
    // Predicated region
    $region34: #{tpu_custom_call.1} parent=1 // pred_check
      _
    $region35: #{tpu_custom_call.1} parent=1 // pred_check_branch
      %45 = sbr.rel (0) target = $region37
    $region36: #{tpu_custom_call.1} parent=1 // pred_region
      _
    $region37: #{tpu_custom_call.1} parent=1 // pred_fallthru
      _
    // Predicated region
    $region38: #{tpu_custom_call.1} parent=1 // pred_check
      _
    $region39: #{tpu_custom_call.1} parent=1 // pred_check_branch
      %47 = sbr.rel (0) target = $region41
    $region40: #{tpu_custom_call.1} parent=1 // pred_region
      _
    $region41: #{tpu_custom_call.1} parent=1 // pred_fallthru
      _
    // Predicated region
    $region42: #{tpu_custom_call.1} parent=1 // pred_check
      _
    $region43: #{tpu_custom_call.1} parent=1 // pred_check_branch
      %49 = sbr.rel (0) target = $region45
    $region44: #{tpu_custom_call.1} parent=1 // pred_region
      _
    $region45: #{tpu_custom_call.1} parent=1 // pred_fallthru
      _
    // Predicated region
    $region46: #{tpu_custom_call.1} parent=1 // pred_check
      _
    $region47: #{tpu_custom_call.1} parent=1 // pred_check_branch
      %51 = sbr.rel (0) target = $region49
    $region48: #{tpu_custom_call.1} parent=1 // pred_region
      %52 = dma.done [#allocation3], 256
    $region49: #{tpu_custom_call.1} parent=1 // pred_fallthru
      _
    %v54 = vld [vmem:[%s0] sm:$0xf]
    %v55 = vld [vmem:[%s0 + $0x4] sm:$0xf]
    %v56 = vld [vmem:[%s0 + $0x8] sm:$0xf]
    %v57 = vld [vmem:[%s0 + $0xc] sm:$0xf]
    %v58 = vld [vmem:[%s3] sm:$0xff]
    %v59 = vld [vmem:[%s3 + $0x8] sm:$0xff]
    %v60 = vld [vmem:[%s3 + $0x10] sm:$0xff]
    %v61 = vld [vmem:[%s3 + $0x18] sm:$0xff]
    %v62 = vld [vmem:[%s4] sm:$0x3]
    %v64 = vlaneseq
    %v65 = vshrl.u32 %v64, 7
    %v66 = vsub.s32 0, %v65
    %v67 = vrot.slane %v62, %v66
    %v68 = vlaneseq
    %v69 = vshrl.u32 %v68, 7
    %v70 = vsub.s32 1, %v69
    %v71 = vrot.slane %v62, %v70
    %v78 = vunpack.c.l.b16 %v54
    %v79 = vunpack.c.l.b16 %v55
    %v80 = vunpack.c.l.b16 %v56
    %v81 = vunpack.c.l.b16 %v57
    %v82 = vpack.c.b16 %v79, %v78
    %v83 = vpack.c.b16 %v81, %v80
    %v88 = vunpack.c.l.b16 %v58
    %v89 = vunpack.c.h.b16 %v58
    %v90 = vunpack.c.l.b16 %v59
    %v91 = vunpack.c.h.b16 %v59
    %v92 = vunpack.c.l.b16 %v60
    %v93 = vunpack.c.h.b16 %v60
    %v94 = vunpack.c.l.b16 %v61
    %v95 = vunpack.c.h.b16 %v61
    %v96 = vpack.c.b16 %v90, %v88
    %v97 = vpack.c.b16 %v91, %v89
    %v98 = vpack.c.b16 %v94, %v92
    %v99 = vpack.c.b16 %v95, %v93
    %vm104 = vcmask 261120
    %v106 = vsel %vm104, %v82, 0
    %v109 = vsel %vm104, %v83, 0
    %111 = vmatprep.subr.bf16.mxu0 0
    %112 = vmatpush1.bf16.msra.mxu0 0
    %113 = vmatprep.subr.bf16.mxu0 0
    %114 = vmatpush1.bf16.msra.mxu0 0
    %115 = vmatprep.subr.bf16.mxu0 0
    %116 = vmatpush1.bf16.msra.mxu0 0
    %117 = vmatprep.subr.bf16.mxu0 0
    %118 = vmatpush1.bf16.msra.mxu0 0
    %119 = vmatprep.subr.bf16.mxu0 0
    %120 = vmatpush1.bf16.msra.mxu0 0
    %121 = vmatprep.subr.bf16.mxu0 0
    %122 = vmatpush1.bf16.msra.mxu0 0
    %123 = vmatprep.subr.bf16.mxu0 %v99
    %124 = vmatpush1.bf16.msra.mxu0 %v98
    %125 = vmatprep.subr.bf16.mxu0 %v97
    %126 = vmatpush1.bf16.msra.mxu0 %v96
    %127 = vmatprep.subr.bf16.mxu0 0
    %128 = vmatpush2.bf16.msra.mxu0 0
    %129 = vmatprep.subr.bf16.mxu0 0
    %130 = vmatpush2.bf16.msra.mxu0 0
    %131 = vmatprep.subr.bf16.mxu0 0
    %132 = vmatpush2.bf16.msra.mxu0 0
    %133 = vmatprep.subr.bf16.mxu0 0
    %134 = vmatpush2.bf16.msra.mxu0 0
    %135 = vmatprep.subr.bf16.mxu0 0
    %136 = vmatpush2.bf16.msra.mxu0 0
    %137 = vmatprep.subr.bf16.mxu0 0
    %138 = vmatpush2.bf16.msra.mxu0 0
    %139 = vmatprep.subr.bf16.mxu0 0
    %140 = vmatpush2.bf16.msra.mxu0 0
    %141 = vmatprep.subr.bf16.mxu0 0
    %142 = vmatpush2.bf16.msra.mxu0 0
    %143 = vmatprep.mubr.bf16.mxu0 0
    %144 = vmatmul.mubr.bf16.gmra.mxu0 %v106
    %v145 = vpop.f32.mrf.mxu0
    %v146 = vadd.f32 %v67, %v145
    %v147 = vpop.f32.mrf.mxu0
    %v148 = vadd.f32 %v71, %v147
    %v149 = vpop.f32.mrf.mxu0
    %v150 = vadd.f32 %v67, %v149
    %v151 = vpop.f32.mrf.mxu0
    %v152 = vadd.f32 %v71, %v151
    %153 = vmatprep.mubr.bf16.mxu0 0
    %154 = vmatmul.mubr.bf16.gmra.mxu0 %v109
    %v155 = vpop.f32.mrf.mxu0
    %v156 = vadd.f32 %v67, %v155
    %v157 = vpop.f32.mrf.mxu0
    %v158 = vadd.f32 %v71, %v157
    %v159 = vpop.f32.mrf.mxu0
    %v160 = vadd.f32 %v67, %v159
    %v161 = vpop.f32.mrf.mxu0
    %v162 = vadd.f32 %v71, %v161
    %163 = vdwg.mxu0
    %v172 = vcombine.low %v146, %v148
    %v173 = vcombine.high %v146, %v148
    %v174 = vcombine.low %v150, %v152
    %v175 = vcombine.high %v150, %v152
    %v176 = vcombine.low %v156, %v158
    %v177 = vcombine.high %v156, %v158
    %v178 = vcombine.low %v160, %v162
    %v179 = vcombine.high %v160, %v162
    %v188 = vld [vmem:[%s1] sm:$0xf]
    %v189 = vld [vmem:[%s1 + $0x4] sm:$0xf]
    %v190 = vld [vmem:[%s1 + $0x8] sm:$0xf]
    %v191 = vld [vmem:[%s1 + $0xc] sm:$0xf]
    %v192 = vld [vmem:[%s1 + $0x10] sm:$0xf]
    %v193 = vld [vmem:[%s1 + $0x14] sm:$0xf]
    %v194 = vld [vmem:[%s1 + $0x18] sm:$0xf]
    %v195 = vld [vmem:[%s1 + $0x1c] sm:$0xf]
    %v196 = vld [vmem:[%s2] sm:$0xf]
    %v197 = vld [vmem:[%s2 + $0x4] sm:$0xf]
    %v198 = vld [vmem:[%s2 + $0x8] sm:$0xf]
    %v199 = vld [vmem:[%s2 + $0xc] sm:$0xf]
    %v200 = vld [vmem:[%s2 + $0x10] sm:$0xf]
    %v201 = vld [vmem:[%s2 + $0x14] sm:$0xf]
    %v202 = vld [vmem:[%s2 + $0x18] sm:$0xf]
    %v203 = vld [vmem:[%s2 + $0x1c] sm:$0xf]
    %v204 = vld [vmem:[%s5] sm:$0xf]
    %v205 = vld [vmem:[%s5 + $0x4] sm:$0xf]
    %v206 = vld [vmem:[%s5 + $0x8] sm:$0xf]
    %v207 = vld [vmem:[%s5 + $0xc] sm:$0xf]
    %v208 = vld [vmem:[%s7] sm:$0x1]
    %v210 = vlaneseq
    %v211 = vshrl.u32 %v210, 7
    %v212 = vsub.s32 0, %v211
    %v213 = vrot.slane %v208, %v212
    %v219 = vunpack.c.l.b16 %v204
    %v220 = vunpack.c.l.b16 %v205
    %v221 = vunpack.c.l.b16 %v206
    %v222 = vunpack.c.l.b16 %v207
    %v223 = vpack.c.b16 %v220, %v219
    %v224 = vpack.c.b16 %v222, %v221
    %v228 = vsel %vm104, 0, 0
    %230 = vmatprep.subr.bf16.mxu0 0
    %231 = vmatpush1.bf16.msra.mxu0 0
    %232 = vmatprep.subr.bf16.mxu0 0
    %233 = vmatpush1.bf16.msra.mxu0 0
    %234 = vmatprep.subr.bf16.mxu0 0
    %235 = vmatpush1.bf16.msra.mxu0 0
    %236 = vmatprep.subr.bf16.mxu0 0
    %237 = vmatpush1.bf16.msra.mxu0 0
    %238 = vmatprep.subr.bf16.mxu0 0
    %239 = vmatpush1.bf16.msra.mxu0 0
    %240 = vmatprep.subr.bf16.mxu0 0
    %241 = vmatpush1.bf16.msra.mxu0 0
    %242 = vmatprep.subr.bf16.mxu0 0
    %243 = vmatpush1.bf16.msra.mxu0 %v224
    %244 = vmatprep.subr.bf16.mxu0 0
    %245 = vmatpush1.bf16.msra.mxu0 %v223
    %246 = vmatprep.subr.bf16.mxu0 0
    %247 = vmatpush2.bf16.msra.mxu0 0
    %248 = vmatprep.subr.bf16.mxu0 0
    %249 = vmatpush2.bf16.msra.mxu0 0
    %250 = vmatprep.subr.bf16.mxu0 0
    %251 = vmatpush2.bf16.msra.mxu0 0
    %252 = vmatprep.subr.bf16.mxu0 0
    %253 = vmatpush2.bf16.msra.mxu0 0
    %254 = vmatprep.subr.bf16.mxu0 0
    %255 = vmatpush2.bf16.msra.mxu0 0
    %256 = vmatprep.subr.bf16.mxu0 0
    %257 = vmatpush2.bf16.msra.mxu0 0
    %258 = vmatprep.subr.bf16.mxu0 0
    %259 = vmatpush2.bf16.msra.mxu0 0
    %260 = vmatprep.subr.bf16.mxu0 0
    %261 = vmatpush2.bf16.msra.mxu0 0
    %262 = vmatprep.mubr.bf16.mxu0 0
    %263 = vmatmul.mubr.bf16.gmra.mxu0 %v228
    %v264 = vpop.f32.mrf.mxu0
    %v265 = vadd.f32 %v213, %v264
    %v266 = vpop.f32.mrf.mxu0
    %v267 = vpop.f32.mrf.mxu0
    %v268 = vpop.f32.mrf.mxu0
    %269 = vdwg.mxu0
    %v270 = vadd.f32 %v172, %v265
    %v271 = vxor.u32 %v270, 2147483648
    %v272 = vmul.f32 %v271, 1.442695
    %v273 = vpow.pop %v272
    %v274 = vadd.f32 %v273, 1.0
    %v275 = vrcp.pop %v274
    %v276 = vmul.f32 1.0, %v275
    %278 = vrot.lane.b32.xlu0 %v265, 64
    %v279 = vpop.permute.xlu0 %278
    %v281 = vmul.f32 %v276, %v279
    %283 = vrot.lane.b32.xlu0 %v281, 64
    %v284 = vpop.permute.xlu0 %283
    %v286 = vadd.f32 %v172, %v284
    %v287 = vtanh.pop %v286
    %v288 = vsub.f32 1.0, %v276
    %290 = vrot.lane.b32.xlu0 %v287, 96
    %v291 = vpop.permute.xlu0 %290
    %v293 = vmul.f32 %v288, %v291
    %v294 = vmul.f32 %v276, 0.0
    %v295 = vadd.f32 %v293, %v294
    %297 = vrot.lane.b32.xlu0 %v295, 96
    %v298 = vpop.permute.xlu0 %297
    %v300 = vmul.f32 %v188, %v298
    %v301 = vsub.f32 1.0, %v188
    %v302 = vmul.f32 %v301, 0.0
    %v303 = vadd.f32 %v300, %v302
    %v304 = vmul.f32 %v188, %v303
    %v305 = vadd.f32 %v304, %v196
    %v306 = vpack.c.bf16 %v303, %v303
    %v308 = vsel %vm104, %v306, 0
    %310 = vmatprep.subr.bf16.mxu0 0
    %311 = vmatpush1.bf16.msra.mxu0 0
    %312 = vmatprep.subr.bf16.mxu0 0
    %313 = vmatpush1.bf16.msra.mxu0 0
    %314 = vmatprep.subr.bf16.mxu0 0
    %315 = vmatpush1.bf16.msra.mxu0 0
    %316 = vmatprep.subr.bf16.mxu0 0
    %317 = vmatpush1.bf16.msra.mxu0 0
    %318 = vmatprep.subr.bf16.mxu0 0
    %319 = vmatpush1.bf16.msra.mxu0 0
    %320 = vmatprep.subr.bf16.mxu0 0
    %321 = vmatpush1.bf16.msra.mxu0 0
    %322 = vmatprep.subr.bf16.mxu0 0
    %323 = vmatpush1.bf16.msra.mxu0 %v224
    %324 = vmatprep.subr.bf16.mxu0 0
    %325 = vmatpush1.bf16.msra.mxu0 %v223
    %326 = vmatprep.subr.bf16.mxu0 0
    %327 = vmatpush2.bf16.msra.mxu0 0
    %328 = vmatprep.subr.bf16.mxu0 0
    %329 = vmatpush2.bf16.msra.mxu0 0
    %330 = vmatprep.subr.bf16.mxu0 0
    %331 = vmatpush2.bf16.msra.mxu0 0
    %332 = vmatprep.subr.bf16.mxu0 0
    %333 = vmatpush2.bf16.msra.mxu0 0
    %334 = vmatprep.subr.bf16.mxu0 0
    %335 = vmatpush2.bf16.msra.mxu0 0
    %336 = vmatprep.subr.bf16.mxu0 0
    %337 = vmatpush2.bf16.msra.mxu0 0
    %338 = vmatprep.subr.bf16.mxu0 0
    %339 = vmatpush2.bf16.msra.mxu0 0
    %340 = vmatprep.subr.bf16.mxu0 0
    %341 = vmatpush2.bf16.msra.mxu0 0
    %342 = vmatprep.mubr.bf16.mxu0 0
    %343 = vmatmul.mubr.bf16.gmra.mxu0 %v308
    %v344 = vpop.f32.mrf.mxu0
    %v345 = vadd.f32 %v213, %v344
    %v346 = vpop.f32.mrf.mxu0
    %v347 = vpop.f32.mrf.mxu0
    %v348 = vpop.f32.mrf.mxu0
    %349 = vdwg.mxu0
    %v350 = vadd.f32 %v173, %v345
    %v351 = vxor.u32 %v350, 2147483648
    %v352 = vmul.f32 %v351, 1.442695
    %v353 = vpow.pop %v352
    %v354 = vadd.f32 %v353, 1.0
    %v355 = vrcp.pop %v354
    %v356 = vmul.f32 1.0, %v355
    %358 = vrot.lane.b32.xlu0 %v345, 64
    %v359 = vpop.permute.xlu0 %358
    %v361 = vmul.f32 %v356, %v359
    %363 = vrot.lane.b32.xlu0 %v361, 64
    %v364 = vpop.permute.xlu0 %363
    %v366 = vadd.f32 %v173, %v364
    %v367 = vtanh.pop %v366
    %v368 = vsub.f32 1.0, %v356
    %370 = vrot.lane.b32.xlu0 %v367, 96
    %v371 = vpop.permute.xlu0 %370
    %v373 = vmul.f32 %v368, %v371
    %375 = vrot.lane.b32.xlu0 %v303, 32
    %v376 = vpop.permute.xlu0 %375
    %v378 = vmul.f32 %v356, %v376
    %v379 = vadd.f32 %v373, %v378
    %381 = vrot.lane.b32.xlu0 %v379, 96
    %v382 = vpop.permute.xlu0 %381
    %v384 = vmul.f32 %v189, %v382
    %v385 = vsub.f32 1.0, %v189
    %v386 = vmul.f32 %v385, %v303
    %v387 = vadd.f32 %v384, %v386
    %v388 = vmul.f32 %v189, %v387
    %v389 = vadd.f32 %v388, %v197
    %v390 = vmax.f32 %v305, %v389
    %v391 = vpack.c.bf16 %v387, %v387
    %v393 = vsel %vm104, %v391, 0
    %395 = vmatprep.subr.bf16.mxu0 0
    %396 = vmatpush1.bf16.msra.mxu0 0
    %397 = vmatprep.subr.bf16.mxu0 0
    %398 = vmatpush1.bf16.msra.mxu0 0
    %399 = vmatprep.subr.bf16.mxu0 0
    %400 = vmatpush1.bf16.msra.mxu0 0
    %401 = vmatprep.subr.bf16.mxu0 0
    %402 = vmatpush1.bf16.msra.mxu0 0
    %403 = vmatprep.subr.bf16.mxu0 0
    %404 = vmatpush1.bf16.msra.mxu0 0
    %405 = vmatprep.subr.bf16.mxu0 0
    %406 = vmatpush1.bf16.msra.mxu0 0
    %407 = vmatprep.subr.bf16.mxu0 0
    %408 = vmatpush1.bf16.msra.mxu0 %v224
    %409 = vmatprep.subr.bf16.mxu0 0
    %410 = vmatpush1.bf16.msra.mxu0 %v223
    %411 = vmatprep.subr.bf16.mxu0 0
    %412 = vmatpush2.bf16.msra.mxu0 0
    %413 = vmatprep.subr.bf16.mxu0 0
    %414 = vmatpush2.bf16.msra.mxu0 0
    %415 = vmatprep.subr.bf16.mxu0 0
    %416 = vmatpush2.bf16.msra.mxu0 0
    %417 = vmatprep.subr.bf16.mxu0 0
    %418 = vmatpush2.bf16.msra.mxu0 0
    %419 = vmatprep.subr.bf16.mxu0 0
    %420 = vmatpush2.bf16.msra.mxu0 0
    %421 = vmatprep.subr.bf16.mxu0 0
    %422 = vmatpush2.bf16.msra.mxu0 0
    %423 = vmatprep.subr.bf16.mxu0 0
    %424 = vmatpush2.bf16.msra.mxu0 0
    %425 = vmatprep.subr.bf16.mxu0 0
    %426 = vmatpush2.bf16.msra.mxu0 0
    %427 = vmatprep.mubr.bf16.mxu0 0
    %428 = vmatmul.mubr.bf16.gmra.mxu0 %v393
    %v429 = vpop.f32.mrf.mxu0
    %v430 = vadd.f32 %v213, %v429
    %v431 = vpop.f32.mrf.mxu0
    %v432 = vpop.f32.mrf.mxu0
    %v433 = vpop.f32.mrf.mxu0
    %434 = vdwg.mxu0
    %v435 = vadd.f32 %v174, %v430
    %v436 = vxor.u32 %v435, 2147483648
    %v437 = vmul.f32 %v436, 1.442695
    %v438 = vpow.pop %v437
    %v439 = vadd.f32 %v438, 1.0
    %v440 = vrcp.pop %v439
    %v441 = vmul.f32 1.0, %v440
    %443 = vrot.lane.b32.xlu0 %v430, 64
    %v444 = vpop.permute.xlu0 %443
    %v446 = vmul.f32 %v441, %v444
    %448 = vrot.lane.b32.xlu0 %v446, 64
    %v449 = vpop.permute.xlu0 %448
    %v451 = vadd.f32 %v174, %v449
    %v452 = vtanh.pop %v451
    %v453 = vsub.f32 1.0, %v441
    %455 = vrot.lane.b32.xlu0 %v452, 96
    %v456 = vpop.permute.xlu0 %455
    %v458 = vmul.f32 %v453, %v456
    %460 = vrot.lane.b32.xlu0 %v387, 32
    %v461 = vpop.permute.xlu0 %460
    %v463 = vmul.f32 %v441, %v461
    %v464 = vadd.f32 %v458, %v463
    %466 = vrot.lane.b32.xlu0 %v464, 96
    %v467 = vpop.permute.xlu0 %466
    %v469 = vmul.f32 %v190, %v467
    %v470 = vsub.f32 1.0, %v190
    %v471 = vmul.f32 %v470, %v387
    %v472 = vadd.f32 %v469, %v471
    %v473 = vmul.f32 %v190, %v472
    %v474 = vadd.f32 %v473, %v198
    %v475 = vmax.f32 %v390, %v474
    %v476 = vpack.c.bf16 %v472, %v472
    %v478 = vsel %vm104, %v476, 0
    %480 = vmatprep.subr.bf16.mxu0 0
    %481 = vmatpush1.bf16.msra.mxu0 0
    %482 = vmatprep.subr.bf16.mxu0 0
    %483 = vmatpush1.bf16.msra.mxu0 0
    %484 = vmatprep.subr.bf16.mxu0 0
    %485 = vmatpush1.bf16.msra.mxu0 0
    %486 = vmatprep.subr.bf16.mxu0 0
    %487 = vmatpush1.bf16.msra.mxu0 0
    %488 = vmatprep.subr.bf16.mxu0 0
    %489 = vmatpush1.bf16.msra.mxu0 0
    %490 = vmatprep.subr.bf16.mxu0 0
    %491 = vmatpush1.bf16.msra.mxu0 0
    %492 = vmatprep.subr.bf16.mxu0 0
    %493 = vmatpush1.bf16.msra.mxu0 %v224
    %494 = vmatprep.subr.bf16.mxu0 0
    %495 = vmatpush1.bf16.msra.mxu0 %v223
    %496 = vmatprep.subr.bf16.mxu0 0
    %497 = vmatpush2.bf16.msra.mxu0 0
    %498 = vmatprep.subr.bf16.mxu0 0
    %499 = vmatpush2.bf16.msra.mxu0 0
    %500 = vmatprep.subr.bf16.mxu0 0
    %501 = vmatpush2.bf16.msra.mxu0 0
    %502 = vmatprep.subr.bf16.mxu0 0
    %503 = vmatpush2.bf16.msra.mxu0 0
    %504 = vmatprep.subr.bf16.mxu0 0
    %505 = vmatpush2.bf16.msra.mxu0 0
    %506 = vmatprep.subr.bf16.mxu0 0
    %507 = vmatpush2.bf16.msra.mxu0 0
    %508 = vmatprep.subr.bf16.mxu0 0
    %509 = vmatpush2.bf16.msra.mxu0 0
    %510 = vmatprep.subr.bf16.mxu0 0
    %511 = vmatpush2.bf16.msra.mxu0 0
    %512 = vmatprep.mubr.bf16.mxu0 0
    %513 = vmatmul.mubr.bf16.gmra.mxu0 %v478
    %v514 = vpop.f32.mrf.mxu0
    %v515 = vadd.f32 %v213, %v514
    %v516 = vpop.f32.mrf.mxu0
    %v517 = vpop.f32.mrf.mxu0
    %v518 = vpop.f32.mrf.mxu0
    %519 = vdwg.mxu0
    %v520 = vadd.f32 %v175, %v515
    %v521 = vxor.u32 %v520, 2147483648
    %v522 = vmul.f32 %v521, 1.442695
    %v523 = vpow.pop %v522
    %v524 = vadd.f32 %v523, 1.0
    %v525 = vrcp.pop %v524
    %v526 = vmul.f32 1.0, %v525
    %528 = vrot.lane.b32.xlu0 %v515, 64
    %v529 = vpop.permute.xlu0 %528
    %v531 = vmul.f32 %v526, %v529
    %533 = vrot.lane.b32.xlu0 %v531, 64
    %v534 = vpop.permute.xlu0 %533
    %v536 = vadd.f32 %v175, %v534
    %v537 = vtanh.pop %v536
    %v538 = vsub.f32 1.0, %v526
    %540 = vrot.lane.b32.xlu0 %v537, 96
    %v541 = vpop.permute.xlu0 %540
    %v543 = vmul.f32 %v538, %v541
    %545 = vrot.lane.b32.xlu0 %v472, 32
    %v546 = vpop.permute.xlu0 %545
    %v548 = vmul.f32 %v526, %v546
    %v549 = vadd.f32 %v543, %v548
    %551 = vrot.lane.b32.xlu0 %v549, 96
    %v552 = vpop.permute.xlu0 %551
    %v554 = vmul.f32 %v191, %v552
    %v555 = vsub.f32 1.0, %v191
    %v556 = vmul.f32 %v555, %v472
    %v557 = vadd.f32 %v554, %v556
    %v558 = vmul.f32 %v191, %v557
    %v559 = vadd.f32 %v558, %v199
    %v560 = vmax.f32 %v475, %v559
    %v561 = vpack.c.bf16 %v557, %v557
    %v563 = vsel %vm104, %v561, 0
    %565 = vmatprep.subr.bf16.mxu0 0
    %566 = vmatpush1.bf16.msra.mxu0 0
    %567 = vmatprep.subr.bf16.mxu0 0
    %568 = vmatpush1.bf16.msra.mxu0 0
    %569 = vmatprep.subr.bf16.mxu0 0
    %570 = vmatpush1.bf16.msra.mxu0 0
    %571 = vmatprep.subr.bf16.mxu0 0
    %572 = vmatpush1.bf16.msra.mxu0 0
    %573 = vmatprep.subr.bf16.mxu0 0
    %574 = vmatpush1.bf16.msra.mxu0 0
    %575 = vmatprep.subr.bf16.mxu0 0
    %576 = vmatpush1.bf16.msra.mxu0 0
    %577 = vmatprep.subr.bf16.mxu0 0
    %578 = vmatpush1.bf16.msra.mxu0 %v224
    %579 = vmatprep.subr.bf16.mxu0 0
    %580 = vmatpush1.bf16.msra.mxu0 %v223
    %581 = vmatprep.subr.bf16.mxu0 0
    %582 = vmatpush2.bf16.msra.mxu0 0
    %583 = vmatprep.subr.bf16.mxu0 0
    %584 = vmatpush2.bf16.msra.mxu0 0
    %585 = vmatprep.subr.bf16.mxu0 0
    %586 = vmatpush2.bf16.msra.mxu0 0
    %587 = vmatprep.subr.bf16.mxu0 0
    %588 = vmatpush2.bf16.msra.mxu0 0
    %589 = vmatprep.subr.bf16.mxu0 0
    %590 = vmatpush2.bf16.msra.mxu0 0
    %591 = vmatprep.subr.bf16.mxu0 0
    %592 = vmatpush2.bf16.msra.mxu0 0
    %593 = vmatprep.subr.bf16.mxu0 0
    %594 = vmatpush2.bf16.msra.mxu0 0
    %595 = vmatprep.subr.bf16.mxu0 0
    %596 = vmatpush2.bf16.msra.mxu0 0
    %597 = vmatprep.mubr.bf16.mxu0 0
    %598 = vmatmul.mubr.bf16.gmra.mxu0 %v563
    %v599 = vpop.f32.mrf.mxu0
    %v600 = vadd.f32 %v213, %v599
    %v601 = vpop.f32.mrf.mxu0
    %v602 = vpop.f32.mrf.mxu0
    %v603 = vpop.f32.mrf.mxu0
    %604 = vdwg.mxu0
    %v605 = vadd.f32 %v176, %v600
    %v606 = vxor.u32 %v605, 2147483648
    %v607 = vmul.f32 %v606, 1.442695
    %v608 = vpow.pop %v607
    %v609 = vadd.f32 %v608, 1.0
    %v610 = vrcp.pop %v609
    %v611 = vmul.f32 1.0, %v610
    %613 = vrot.lane.b32.xlu0 %v600, 64
    %v614 = vpop.permute.xlu0 %613
    %v616 = vmul.f32 %v611, %v614
    %618 = vrot.lane.b32.xlu0 %v616, 64
    %v619 = vpop.permute.xlu0 %618
    %v621 = vadd.f32 %v176, %v619
    %v622 = vtanh.pop %v621
    %v623 = vsub.f32 1.0, %v611
    %625 = vrot.lane.b32.xlu0 %v622, 96
    %v626 = vpop.permute.xlu0 %625
    %v628 = vmul.f32 %v623, %v626
    %630 = vrot.lane.b32.xlu0 %v557, 32
    %v631 = vpop.permute.xlu0 %630
    %v633 = vmul.f32 %v611, %v631
    %v634 = vadd.f32 %v628, %v633
    %636 = vrot.lane.b32.xlu0 %v634, 96
    %v637 = vpop.permute.xlu0 %636
    %v639 = vmul.f32 %v192, %v637
    %v640 = vsub.f32 1.0, %v192
    %v641 = vmul.f32 %v640, %v557
    %v642 = vadd.f32 %v639, %v641
    %v643 = vmul.f32 %v192, %v642
    %v644 = vadd.f32 %v643, %v200
    %v645 = vmax.f32 %v560, %v644
    %v646 = vpack.c.bf16 %v642, %v642
    %v648 = vsel %vm104, %v646, 0
    %650 = vmatprep.subr.bf16.mxu0 0
    %651 = vmatpush1.bf16.msra.mxu0 0
    %652 = vmatprep.subr.bf16.mxu0 0
    %653 = vmatpush1.bf16.msra.mxu0 0
    %654 = vmatprep.subr.bf16.mxu0 0
    %655 = vmatpush1.bf16.msra.mxu0 0
    %656 = vmatprep.subr.bf16.mxu0 0
    %657 = vmatpush1.bf16.msra.mxu0 0
    %658 = vmatprep.subr.bf16.mxu0 0
    %659 = vmatpush1.bf16.msra.mxu0 0
    %660 = vmatprep.subr.bf16.mxu0 0
    %661 = vmatpush1.bf16.msra.mxu0 0
    %662 = vmatprep.subr.bf16.mxu0 0
    %663 = vmatpush1.bf16.msra.mxu0 %v224
    %664 = vmatprep.subr.bf16.mxu0 0
    %665 = vmatpush1.bf16.msra.mxu0 %v223
    %666 = vmatprep.subr.bf16.mxu0 0
    %667 = vmatpush2.bf16.msra.mxu0 0
    %668 = vmatprep.subr.bf16.mxu0 0
    %669 = vmatpush2.bf16.msra.mxu0 0
    %670 = vmatprep.subr.bf16.mxu0 0
    %671 = vmatpush2.bf16.msra.mxu0 0
    %672 = vmatprep.subr.bf16.mxu0 0
    %673 = vmatpush2.bf16.msra.mxu0 0
    %674 = vmatprep.subr.bf16.mxu0 0
    %675 = vmatpush2.bf16.msra.mxu0 0
    %676 = vmatprep.subr.bf16.mxu0 0
    %677 = vmatpush2.bf16.msra.mxu0 0
    %678 = vmatprep.subr.bf16.mxu0 0
    %679 = vmatpush2.bf16.msra.mxu0 0
    %680 = vmatprep.subr.bf16.mxu0 0
    %681 = vmatpush2.bf16.msra.mxu0 0
    %682 = vmatprep.mubr.bf16.mxu0 0
    %683 = vmatmul.mubr.bf16.gmra.mxu0 %v648
    %v684 = vpop.f32.mrf.mxu0
    %v685 = vadd.f32 %v213, %v684
    %v686 = vpop.f32.mrf.mxu0
    %v687 = vpop.f32.mrf.mxu0
    %v688 = vpop.f32.mrf.mxu0
    %689 = vdwg.mxu0
    %v690 = vadd.f32 %v177, %v685
    %v691 = vxor.u32 %v690, 2147483648
    %v692 = vmul.f32 %v691, 1.442695
    %v693 = vpow.pop %v692
    %v694 = vadd.f32 %v693, 1.0
    %v695 = vrcp.pop %v694
    %v696 = vmul.f32 1.0, %v695
    %698 = vrot.lane.b32.xlu0 %v685, 64
    %v699 = vpop.permute.xlu0 %698
    %v701 = vmul.f32 %v696, %v699
    %703 = vrot.lane.b32.xlu0 %v701, 64
    %v704 = vpop.permute.xlu0 %703
    %v706 = vadd.f32 %v177, %v704
    %v707 = vtanh.pop %v706
    %v708 = vsub.f32 1.0, %v696
    %710 = vrot.lane.b32.xlu0 %v707, 96
    %v711 = vpop.permute.xlu0 %710
    %v713 = vmul.f32 %v708, %v711
    %715 = vrot.lane.b32.xlu0 %v642, 32
    %v716 = vpop.permute.xlu0 %715
    %v718 = vmul.f32 %v696, %v716
    %v719 = vadd.f32 %v713, %v718
    %721 = vrot.lane.b32.xlu0 %v719, 96
    %v722 = vpop.permute.xlu0 %721
    %v724 = vmul.f32 %v193, %v722
    %v725 = vsub.f32 1.0, %v193
    %v726 = vmul.f32 %v725, %v642
    %v727 = vadd.f32 %v724, %v726
    %v728 = vmul.f32 %v193, %v727
    %v729 = vadd.f32 %v728, %v201
    %v730 = vmax.f32 %v645, %v729
    %v731 = vpack.c.bf16 %v727, %v727
    %v733 = vsel %vm104, %v731, 0
    %735 = vmatprep.subr.bf16.mxu0 0
    %736 = vmatpush1.bf16.msra.mxu0 0
    %737 = vmatprep.subr.bf16.mxu0 0
    %738 = vmatpush1.bf16.msra.mxu0 0
    %739 = vmatprep.subr.bf16.mxu0 0
    %740 = vmatpush1.bf16.msra.mxu0 0
    %741 = vmatprep.subr.bf16.mxu0 0
    %742 = vmatpush1.bf16.msra.mxu0 0
    %743 = vmatprep.subr.bf16.mxu0 0
    %744 = vmatpush1.bf16.msra.mxu0 0
    %745 = vmatprep.subr.bf16.mxu0 0
    %746 = vmatpush1.bf16.msra.mxu0 0
    %747 = vmatprep.subr.bf16.mxu0 0
    %748 = vmatpush1.bf16.msra.mxu0 %v224
    %749 = vmatprep.subr.bf16.mxu0 0
    %750 = vmatpush1.bf16.msra.mxu0 %v223
    %751 = vmatprep.subr.bf16.mxu0 0
    %752 = vmatpush2.bf16.msra.mxu0 0
    %753 = vmatprep.subr.bf16.mxu0 0
    %754 = vmatpush2.bf16.msra.mxu0 0
    %755 = vmatprep.subr.bf16.mxu0 0
    %756 = vmatpush2.bf16.msra.mxu0 0
    %757 = vmatprep.subr.bf16.mxu0 0
    %758 = vmatpush2.bf16.msra.mxu0 0
    %759 = vmatprep.subr.bf16.mxu0 0
    %760 = vmatpush2.bf16.msra.mxu0 0
    %761 = vmatprep.subr.bf16.mxu0 0
    %762 = vmatpush2.bf16.msra.mxu0 0
    %763 = vmatprep.subr.bf16.mxu0 0
    %764 = vmatpush2.bf16.msra.mxu0 0
    %765 = vmatprep.subr.bf16.mxu0 0
    %766 = vmatpush2.bf16.msra.mxu0 0
    %767 = vmatprep.mubr.bf16.mxu0 0
    %768 = vmatmul.mubr.bf16.gmra.mxu0 %v733
    %v769 = vpop.f32.mrf.mxu0
    %v770 = vadd.f32 %v213, %v769
    %v771 = vpop.f32.mrf.mxu0
    %v772 = vpop.f32.mrf.mxu0
    %v773 = vpop.f32.mrf.mxu0
    %774 = vdwg.mxu0
    %v775 = vadd.f32 %v178, %v770
    %v776 = vxor.u32 %v775, 2147483648
    %v777 = vmul.f32 %v776, 1.442695
    %v778 = vpow.pop %v777
    %v779 = vadd.f32 %v778, 1.0
    %v780 = vrcp.pop %v779
    %v781 = vmul.f32 1.0, %v780
    %783 = vrot.lane.b32.xlu0 %v770, 64
    %v784 = vpop.permute.xlu0 %783
    %v786 = vmul.f32 %v781, %v784
    %788 = vrot.lane.b32.xlu0 %v786, 64
    %v789 = vpop.permute.xlu0 %788
    %v791 = vadd.f32 %v178, %v789
    %v792 = vtanh.pop %v791
    %v793 = vsub.f32 1.0, %v781
    %795 = vrot.lane.b32.xlu0 %v792, 96
    %v796 = vpop.permute.xlu0 %795
    %v798 = vmul.f32 %v793, %v796
    %800 = vrot.lane.b32.xlu0 %v727, 32
    %v801 = vpop.permute.xlu0 %800
    %v803 = vmul.f32 %v781, %v801
    %v804 = vadd.f32 %v798, %v803
    %806 = vrot.lane.b32.xlu0 %v804, 96
    %v807 = vpop.permute.xlu0 %806
    %v809 = vmul.f32 %v194, %v807
    %v810 = vsub.f32 1.0, %v194
    %v811 = vmul.f32 %v810, %v727
    %v812 = vadd.f32 %v809, %v811
    %v813 = vmul.f32 %v194, %v812
    %v814 = vadd.f32 %v813, %v202
    %v815 = vmax.f32 %v730, %v814
    %v816 = vpack.c.bf16 %v812, %v812
    %v818 = vsel %vm104, %v816, 0
    %820 = vmatprep.subr.bf16.mxu0 0
    %821 = vmatpush1.bf16.msra.mxu0 0
    %822 = vmatprep.subr.bf16.mxu0 0
    %823 = vmatpush1.bf16.msra.mxu0 0
    %824 = vmatprep.subr.bf16.mxu0 0
    %825 = vmatpush1.bf16.msra.mxu0 0
    %826 = vmatprep.subr.bf16.mxu0 0
    %827 = vmatpush1.bf16.msra.mxu0 0
    %828 = vmatprep.subr.bf16.mxu0 0
    %829 = vmatpush1.bf16.msra.mxu0 0
    %830 = vmatprep.subr.bf16.mxu0 0
    %831 = vmatpush1.bf16.msra.mxu0 0
    %832 = vmatprep.subr.bf16.mxu0 0
    %833 = vmatpush1.bf16.msra.mxu0 %v224
    %834 = vmatprep.subr.bf16.mxu0 0
    %835 = vmatpush1.bf16.msra.mxu0 %v223
    %836 = vmatprep.subr.bf16.mxu0 0
    %837 = vmatpush2.bf16.msra.mxu0 0
    %838 = vmatprep.subr.bf16.mxu0 0
    %839 = vmatpush2.bf16.msra.mxu0 0
    %840 = vmatprep.subr.bf16.mxu0 0
    %841 = vmatpush2.bf16.msra.mxu0 0
    %842 = vmatprep.subr.bf16.mxu0 0
    %843 = vmatpush2.bf16.msra.mxu0 0
    %844 = vmatprep.subr.bf16.mxu0 0
    %845 = vmatpush2.bf16.msra.mxu0 0
    %846 = vmatprep.subr.bf16.mxu0 0
    %847 = vmatpush2.bf16.msra.mxu0 0
    %848 = vmatprep.subr.bf16.mxu0 0
    %849 = vmatpush2.bf16.msra.mxu0 0
    %850 = vmatprep.subr.bf16.mxu0 0
    %851 = vmatpush2.bf16.msra.mxu0 0
    %852 = vmatprep.mubr.bf16.mxu0 0
    %853 = vmatmul.mubr.bf16.gmra.mxu0 %v818
    %v854 = vpop.f32.mrf.mxu0
    %v855 = vadd.f32 %v213, %v854
    %v856 = vpop.f32.mrf.mxu0
    %v857 = vpop.f32.mrf.mxu0
    %v858 = vpop.f32.mrf.mxu0
    %859 = vdwg.mxu0
    %v860 = vadd.f32 %v179, %v855
    %v861 = vxor.u32 %v860, 2147483648
    %v862 = vmul.f32 %v861, 1.442695
    %v863 = vpow.pop %v862
    %v864 = vadd.f32 %v863, 1.0
    %v865 = vrcp.pop %v864
    %v866 = vmul.f32 1.0, %v865
    %868 = vrot.lane.b32.xlu0 %v855, 64
    %v869 = vpop.permute.xlu0 %868
    %v871 = vmul.f32 %v866, %v869
    %873 = vrot.lane.b32.xlu0 %v871, 64
    %v874 = vpop.permute.xlu0 %873
    %v876 = vadd.f32 %v179, %v874
    %v877 = vtanh.pop %v876
    %v878 = vsub.f32 1.0, %v866
    %880 = vrot.lane.b32.xlu0 %v877, 96
    %v881 = vpop.permute.xlu0 %880
    %v883 = vmul.f32 %v878, %v881
    %885 = vrot.lane.b32.xlu0 %v812, 32
    %v886 = vpop.permute.xlu0 %885
    %v888 = vmul.f32 %v866, %v886
    %v889 = vadd.f32 %v883, %v888
    %891 = vrot.lane.b32.xlu0 %v889, 96
    %v892 = vpop.permute.xlu0 %891
    %v894 = vmul.f32 %v195, %v892
    %v895 = vsub.f32 1.0, %v195
    %v896 = vmul.f32 %v895, %v812
    %v897 = vadd.f32 %v894, %v896
    %v898 = vmul.f32 %v195, %v897
    %v899 = vadd.f32 %v898, %v203
    %v900 = vmax.f32 %v815, %v899
    %v901 = vld [vmem:[#allocation2] sm:$0xf]
    %v902 = vld [vmem:[#allocation2 + $0x4] sm:$0xf]
    %v903 = vld [vmem:[#allocation2 + $0x8] sm:$0xf]
    %v904 = vld [vmem:[#allocation2 + $0xc] sm:$0xf]
    %v905 = vld [vmem:[%s8] sm:$0x1]
    %v907 = vlaneseq
    %v908 = vshrl.u32 %v907, 7
    %v909 = vsub.s32 0, %v908
    %v910 = vrot.slane %v905, %v909
    %v916 = vunpack.c.l.b16 %v901
    %v917 = vunpack.c.l.b16 %v902
    %v918 = vunpack.c.l.b16 %v903
    %v919 = vunpack.c.l.b16 %v904
    %v920 = vpack.c.b16 %v917, %v916
    %v921 = vpack.c.b16 %v919, %v918
    %924 = vmatprep.subr.bf16.mxu0 0
    %925 = vmatpush1.bf16.msra.mxu0 0
    %926 = vmatprep.subr.bf16.mxu0 0
    %927 = vmatpush1.bf16.msra.mxu0 0
    %928 = vmatprep.subr.bf16.mxu0 0
    %929 = vmatpush1.bf16.msra.mxu0 0
    %930 = vmatprep.subr.bf16.mxu0 0
    %931 = vmatpush1.bf16.msra.mxu0 0
    %932 = vmatprep.subr.bf16.mxu0 0
    %933 = vmatpush1.bf16.msra.mxu0 0
    %934 = vmatprep.subr.bf16.mxu0 0
    %935 = vmatpush1.bf16.msra.mxu0 0
    %936 = vmatprep.subr.bf16.mxu0 0
    %937 = vmatpush1.bf16.msra.mxu0 %v921
    %938 = vmatprep.subr.bf16.mxu0 0
    %939 = vmatpush1.bf16.msra.mxu0 %v920
    %940 = vmatprep.subr.bf16.mxu0 0
    %941 = vmatpush2.bf16.msra.mxu0 0
    %942 = vmatprep.subr.bf16.mxu0 0
    %943 = vmatpush2.bf16.msra.mxu0 0
    %944 = vmatprep.subr.bf16.mxu0 0
    %945 = vmatpush2.bf16.msra.mxu0 0
    %946 = vmatprep.subr.bf16.mxu0 0
    %947 = vmatpush2.bf16.msra.mxu0 0
    %948 = vmatprep.subr.bf16.mxu0 0
    %949 = vmatpush2.bf16.msra.mxu0 0
    %950 = vmatprep.subr.bf16.mxu0 0
    %951 = vmatpush2.bf16.msra.mxu0 0
    %952 = vmatprep.subr.bf16.mxu0 0
    %953 = vmatpush2.bf16.msra.mxu0 0
    %954 = vmatprep.subr.bf16.mxu0 0
    %955 = vmatpush2.bf16.msra.mxu0 0
    %956 = vmatprep.mubr.bf16.mxu0 0
    %957 = vmatmul.mubr.bf16.gmra.mxu0 %v228
    %v958 = vpop.f32.mrf.mxu0
    %v959 = vadd.f32 %v910, %v958
    %v960 = vpop.f32.mrf.mxu0
    %v961 = vpop.f32.mrf.mxu0
    %v962 = vpop.f32.mrf.mxu0
    %963 = vdwg.mxu0
    %965 = vrot.lane.b32.xlu0 %v959, 96
    %v966 = vpop.permute.xlu0 %965
    %v968 = vadd.f32 %v179, %v966
    %v969 = vxor.u32 %v968, 2147483648
    %v970 = vmul.f32 %v969, 1.442695
    %v971 = vpow.pop %v970
    %v972 = vadd.f32 %v971, 1.0
    %v973 = vrcp.pop %v972
    %v974 = vmul.f32 1.0, %v973
    %v975 = vrot.slane %v179, 4
    %v977 = vadd.f32 %v975, %v966
    %v978 = vxor.u32 %v977, 2147483648
    %v979 = vmul.f32 %v978, 1.442695
    %v980 = vpow.pop %v979
    %v981 = vadd.f32 %v980, 1.0
    %v982 = vrcp.pop %v981
    %v983 = vmul.f32 1.0, %v982
    %984 = vrot.lane.b32.xlu0 %v959, 32
    %v985 = vpop.permute.xlu0 %984
    %v987 = vmul.f32 %v974, %v985
    %988 = vrot.lane.b32.xlu0 %v179, 96
    %v989 = vpop.permute.xlu0 %988
    %v990 = vrot.slane %v989, 4
    %993 = vrot.lane.b32.xlu0 %v987, 32
    %v994 = vpop.permute.xlu0 %993
    %v996 = vadd.f32 %v990, %v994
    %v997 = vtanh.pop %v996
    %v998 = vsub.f32 1.0, %v983
    %v999 = vmul.f32 %v998, %v997
    %v1000 = vmul.f32 %v983, 0.0
    %v1001 = vadd.f32 %v999, %v1000
    %v1002 = vmul.f32 %v195, %v1001
    %v1003 = vmul.f32 %v895, 0.0
    %v1004 = vadd.f32 %v1002, %v1003
    %v1005 = vmul.f32 %v195, %v1004
    %v1006 = vadd.f32 %v1005, %v203
    %v1007 = vpack.c.bf16 %v1004, %v1004
    %v1009 = vsel %vm104, %v1007, 0
    %1011 = vmatprep.subr.bf16.mxu0 0
    %1012 = vmatpush1.bf16.msra.mxu0 0
    %1013 = vmatprep.subr.bf16.mxu0 0
    %1014 = vmatpush1.bf16.msra.mxu0 0
    %1015 = vmatprep.subr.bf16.mxu0 0
    %1016 = vmatpush1.bf16.msra.mxu0 0
    %1017 = vmatprep.subr.bf16.mxu0 0
    %1018 = vmatpush1.bf16.msra.mxu0 0
    %1019 = vmatprep.subr.bf16.mxu0 0
    %1020 = vmatpush1.bf16.msra.mxu0 0
    %1021 = vmatprep.subr.bf16.mxu0 0
    %1022 = vmatpush1.bf16.msra.mxu0 0
    %1023 = vmatprep.subr.bf16.mxu0 0
    %1024 = vmatpush1.bf16.msra.mxu0 %v921
    %1025 = vmatprep.subr.bf16.mxu0 0
    %1026 = vmatpush1.bf16.msra.mxu0 %v920
    %1027 = vmatprep.subr.bf16.mxu0 0
    %1028 = vmatpush2.bf16.msra.mxu0 0
    %1029 = vmatprep.subr.bf16.mxu0 0
    %1030 = vmatpush2.bf16.msra.mxu0 0
    %1031 = vmatprep.subr.bf16.mxu0 0
    %1032 = vmatpush2.bf16.msra.mxu0 0
    %1033 = vmatprep.subr.bf16.mxu0 0
    %1034 = vmatpush2.bf16.msra.mxu0 0
    %1035 = vmatprep.subr.bf16.mxu0 0
    %1036 = vmatpush2.bf16.msra.mxu0 0
    %1037 = vmatprep.subr.bf16.mxu0 0
    %1038 = vmatpush2.bf16.msra.mxu0 0
    %1039 = vmatprep.subr.bf16.mxu0 0
    %1040 = vmatpush2.bf16.msra.mxu0 0
    %1041 = vmatprep.subr.bf16.mxu0 0
    %1042 = vmatpush2.bf16.msra.mxu0 0
    %1043 = vmatprep.mubr.bf16.mxu0 0
    %1044 = vmatmul.mubr.bf16.gmra.mxu0 %v1009
    %v1045 = vpop.f32.mrf.mxu0
    %v1046 = vadd.f32 %v910, %v1045
    %v1047 = vpop.f32.mrf.mxu0
    %v1048 = vpop.f32.mrf.mxu0
    %v1049 = vpop.f32.mrf.mxu0
    %1050 = vdwg.mxu0
    %1052 = vrot.lane.b32.xlu0 %v1046, 96
    %v1053 = vpop.permute.xlu0 %1052
    %v1055 = vadd.f32 %v178, %v1053
    %v1056 = vxor.u32 %v1055, 2147483648
    %v1057 = vmul.f32 %v1056, 1.442695
    %v1058 = vpow.pop %v1057
    %v1059 = vadd.f32 %v1058, 1.0
    %v1060 = vrcp.pop %v1059
    %v1061 = vmul.f32 1.0, %v1060
    %v1062 = vrot.slane %v178, 4
    %v1064 = vadd.f32 %v1062, %v1053
    %v1065 = vxor.u32 %v1064, 2147483648
    %v1066 = vmul.f32 %v1065, 1.442695
    %v1067 = vpow.pop %v1066
    %v1068 = vadd.f32 %v1067, 1.0
    %v1069 = vrcp.pop %v1068
    %v1070 = vmul.f32 1.0, %v1069
    %1071 = vrot.lane.b32.xlu0 %v1046, 32
    %v1072 = vpop.permute.xlu0 %1071
    %v1074 = vmul.f32 %v1061, %v1072
    %1075 = vrot.lane.b32.xlu0 %v178, 96
    %v1076 = vpop.permute.xlu0 %1075
    %v1077 = vrot.slane %v1076, 4
    %1080 = vrot.lane.b32.xlu0 %v1074, 32
    %v1081 = vpop.permute.xlu0 %1080
    %v1083 = vadd.f32 %v1077, %v1081
    %v1084 = vtanh.pop %v1083
    %v1085 = vsub.f32 1.0, %v1070
    %v1086 = vmul.f32 %v1085, %v1084
    %v1087 = vmul.f32 %v1070, %v1004
    %v1088 = vadd.f32 %v1086, %v1087
    %v1089 = vmul.f32 %v194, %v1088
    %v1090 = vmul.f32 %v810, %v1004
    %v1091 = vadd.f32 %v1089, %v1090
    %v1092 = vmul.f32 %v194, %v1091
    %v1093 = vadd.f32 %v1092, %v202
    %v1094 = vmax.f32 %v1006, %v1093
    %v1095 = vpack.c.bf16 %v1091, %v1091
    %v1097 = vsel %vm104, %v1095, 0
    %1099 = vmatprep.subr.bf16.mxu0 0
    %1100 = vmatpush1.bf16.msra.mxu0 0
    %1101 = vmatprep.subr.bf16.mxu0 0
    %1102 = vmatpush1.bf16.msra.mxu0 0
    %1103 = vmatprep.subr.bf16.mxu0 0
    %1104 = vmatpush1.bf16.msra.mxu0 0
    %1105 = vmatprep.subr.bf16.mxu0 0
    %1106 = vmatpush1.bf16.msra.mxu0 0
    %1107 = vmatprep.subr.bf16.mxu0 0
    %1108 = vmatpush1.bf16.msra.mxu0 0
    %1109 = vmatprep.subr.bf16.mxu0 0
    %1110 = vmatpush1.bf16.msra.mxu0 0
    %1111 = vmatprep.subr.bf16.mxu0 0
    %1112 = vmatpush1.bf16.msra.mxu0 %v921
    %1113 = vmatprep.subr.bf16.mxu0 0
    %1114 = vmatpush1.bf16.msra.mxu0 %v920
    %1115 = vmatprep.subr.bf16.mxu0 0
    %1116 = vmatpush2.bf16.msra.mxu0 0
    %1117 = vmatprep.subr.bf16.mxu0 0
    %1118 = vmatpush2.bf16.msra.mxu0 0
    %1119 = vmatprep.subr.bf16.mxu0 0
    %1120 = vmatpush2.bf16.msra.mxu0 0
    %1121 = vmatprep.subr.bf16.mxu0 0
    %1122 = vmatpush2.bf16.msra.mxu0 0
    %1123 = vmatprep.subr.bf16.mxu0 0
    %1124 = vmatpush2.bf16.msra.mxu0 0
    %1125 = vmatprep.subr.bf16.mxu0 0
    %1126 = vmatpush2.bf16.msra.mxu0 0
    %1127 = vmatprep.subr.bf16.mxu0 0
    %1128 = vmatpush2.bf16.msra.mxu0 0
    %1129 = vmatprep.subr.bf16.mxu0 0
    %1130 = vmatpush2.bf16.msra.mxu0 0
    %1131 = vmatprep.mubr.bf16.mxu0 0
    %1132 = vmatmul.mubr.bf16.gmra.mxu0 %v1097
    %v1133 = vpop.f32.mrf.mxu0
    %v1134 = vadd.f32 %v910, %v1133
    %v1135 = vpop.f32.mrf.mxu0
    %v1136 = vpop.f32.mrf.mxu0
    %v1137 = vpop.f32.mrf.mxu0
    %1138 = vdwg.mxu0
    %1140 = vrot.lane.b32.xlu0 %v1134, 96
    %v1141 = vpop.permute.xlu0 %1140
    %v1143 = vadd.f32 %v177, %v1141
    %v1144 = vxor.u32 %v1143, 2147483648
    %v1145 = vmul.f32 %v1144, 1.442695
    %v1146 = vpow.pop %v1145
    %v1147 = vadd.f32 %v1146, 1.0
    %v1148 = vrcp.pop %v1147
    %v1149 = vmul.f32 1.0, %v1148
    %v1150 = vrot.slane %v177, 4
    %v1152 = vadd.f32 %v1150, %v1141
    %v1153 = vxor.u32 %v1152, 2147483648
    %v1154 = vmul.f32 %v1153, 1.442695
    %v1155 = vpow.pop %v1154
    %v1156 = vadd.f32 %v1155, 1.0
    %v1157 = vrcp.pop %v1156
    %v1158 = vmul.f32 1.0, %v1157
    %1159 = vrot.lane.b32.xlu0 %v1134, 32
    %v1160 = vpop.permute.xlu0 %1159
    %v1162 = vmul.f32 %v1149, %v1160
    %1163 = vrot.lane.b32.xlu0 %v177, 96
    %v1164 = vpop.permute.xlu0 %1163
    %v1165 = vrot.slane %v1164, 4
    %1168 = vrot.lane.b32.xlu0 %v1162, 32
    %v1169 = vpop.permute.xlu0 %1168
    %v1171 = vadd.f32 %v1165, %v1169
    %v1172 = vtanh.pop %v1171
    %v1173 = vsub.f32 1.0, %v1158
    %v1174 = vmul.f32 %v1173, %v1172
    %v1175 = vmul.f32 %v1158, %v1091
    %v1176 = vadd.f32 %v1174, %v1175
    %v1177 = vmul.f32 %v193, %v1176
    %v1178 = vmul.f32 %v725, %v1091
    %v1179 = vadd.f32 %v1177, %v1178
    %v1180 = vmul.f32 %v193, %v1179
    %v1181 = vadd.f32 %v1180, %v201
    %v1182 = vmax.f32 %v1094, %v1181
    %v1183 = vpack.c.bf16 %v1179, %v1179
    %v1185 = vsel %vm104, %v1183, 0
    %1187 = vmatprep.subr.bf16.mxu0 0
    %1188 = vmatpush1.bf16.msra.mxu0 0
    %1189 = vmatprep.subr.bf16.mxu0 0
    %1190 = vmatpush1.bf16.msra.mxu0 0
    %1191 = vmatprep.subr.bf16.mxu0 0
    %1192 = vmatpush1.bf16.msra.mxu0 0
    %1193 = vmatprep.subr.bf16.mxu0 0
    %1194 = vmatpush1.bf16.msra.mxu0 0
    %1195 = vmatprep.subr.bf16.mxu0 0
    %1196 = vmatpush1.bf16.msra.mxu0 0
    %1197 = vmatprep.subr.bf16.mxu0 0
    %1198 = vmatpush1.bf16.msra.mxu0 0
    %1199 = vmatprep.subr.bf16.mxu0 0
    %1200 = vmatpush1.bf16.msra.mxu0 %v921
    %1201 = vmatprep.subr.bf16.mxu0 0
    %1202 = vmatpush1.bf16.msra.mxu0 %v920
    %1203 = vmatprep.subr.bf16.mxu0 0
    %1204 = vmatpush2.bf16.msra.mxu0 0
    %1205 = vmatprep.subr.bf16.mxu0 0
    %1206 = vmatpush2.bf16.msra.mxu0 0
    %1207 = vmatprep.subr.bf16.mxu0 0
    %1208 = vmatpush2.bf16.msra.mxu0 0
    %1209 = vmatprep.subr.bf16.mxu0 0
    %1210 = vmatpush2.bf16.msra.mxu0 0
    %1211 = vmatprep.subr.bf16.mxu0 0
    %1212 = vmatpush2.bf16.msra.mxu0 0
    %1213 = vmatprep.subr.bf16.mxu0 0
    %1214 = vmatpush2.bf16.msra.mxu0 0
    %1215 = vmatprep.subr.bf16.mxu0 0
    %1216 = vmatpush2.bf16.msra.mxu0 0
    %1217 = vmatprep.subr.bf16.mxu0 0
    %1218 = vmatpush2.bf16.msra.mxu0 0
    %1219 = vmatprep.mubr.bf16.mxu0 0
    %1220 = vmatmul.mubr.bf16.gmra.mxu0 %v1185
    %v1221 = vpop.f32.mrf.mxu0
    %v1222 = vadd.f32 %v910, %v1221
    %v1223 = vpop.f32.mrf.mxu0
    %v1224 = vpop.f32.mrf.mxu0
    %v1225 = vpop.f32.mrf.mxu0
    %1226 = vdwg.mxu0
    %1228 = vrot.lane.b32.xlu0 %v1222, 96
    %v1229 = vpop.permute.xlu0 %1228
    %v1231 = vadd.f32 %v176, %v1229
    %v1232 = vxor.u32 %v1231, 2147483648
    %v1233 = vmul.f32 %v1232, 1.442695
    %v1234 = vpow.pop %v1233
    %v1235 = vadd.f32 %v1234, 1.0
    %v1236 = vrcp.pop %v1235
    %v1237 = vmul.f32 1.0, %v1236
    %v1238 = vrot.slane %v176, 4
    %v1240 = vadd.f32 %v1238, %v1229
    %v1241 = vxor.u32 %v1240, 2147483648
    %v1242 = vmul.f32 %v1241, 1.442695
    %v1243 = vpow.pop %v1242
    %v1244 = vadd.f32 %v1243, 1.0
    %v1245 = vrcp.pop %v1244
    %v1246 = vmul.f32 1.0, %v1245
    %1247 = vrot.lane.b32.xlu0 %v1222, 32
    %v1248 = vpop.permute.xlu0 %1247
    %v1250 = vmul.f32 %v1237, %v1248
    %1251 = vrot.lane.b32.xlu0 %v176, 96
    %v1252 = vpop.permute.xlu0 %1251
    %v1253 = vrot.slane %v1252, 4
    %1256 = vrot.lane.b32.xlu0 %v1250, 32
    %v1257 = vpop.permute.xlu0 %1256
    %v1259 = vadd.f32 %v1253, %v1257
    %v1260 = vtanh.pop %v1259
    %v1261 = vsub.f32 1.0, %v1246
    %v1262 = vmul.f32 %v1261, %v1260
    %v1263 = vmul.f32 %v1246, %v1179
    %v1264 = vadd.f32 %v1262, %v1263
    %v1265 = vmul.f32 %v192, %v1264
    %v1266 = vmul.f32 %v640, %v1179
    %v1267 = vadd.f32 %v1265, %v1266
    %v1268 = vmul.f32 %v192, %v1267
    %v1269 = vadd.f32 %v1268, %v200
    %v1270 = vmax.f32 %v1182, %v1269
    %v1271 = vpack.c.bf16 %v1267, %v1267
    %v1273 = vsel %vm104, %v1271, 0
    %1275 = vmatprep.subr.bf16.mxu0 0
    %1276 = vmatpush1.bf16.msra.mxu0 0
    %1277 = vmatprep.subr.bf16.mxu0 0
    %1278 = vmatpush1.bf16.msra.mxu0 0
    %1279 = vmatprep.subr.bf16.mxu0 0
    %1280 = vmatpush1.bf16.msra.mxu0 0
    %1281 = vmatprep.subr.bf16.mxu0 0
    %1282 = vmatpush1.bf16.msra.mxu0 0
    %1283 = vmatprep.subr.bf16.mxu0 0
    %1284 = vmatpush1.bf16.msra.mxu0 0
    %1285 = vmatprep.subr.bf16.mxu0 0
    %1286 = vmatpush1.bf16.msra.mxu0 0
    %1287 = vmatprep.subr.bf16.mxu0 0
    %1288 = vmatpush1.bf16.msra.mxu0 %v921
    %1289 = vmatprep.subr.bf16.mxu0 0
    %1290 = vmatpush1.bf16.msra.mxu0 %v920
    %1291 = vmatprep.subr.bf16.mxu0 0
    %1292 = vmatpush2.bf16.msra.mxu0 0
    %1293 = vmatprep.subr.bf16.mxu0 0
    %1294 = vmatpush2.bf16.msra.mxu0 0
    %1295 = vmatprep.subr.bf16.mxu0 0
    %1296 = vmatpush2.bf16.msra.mxu0 0
    %1297 = vmatprep.subr.bf16.mxu0 0
    %1298 = vmatpush2.bf16.msra.mxu0 0
    %1299 = vmatprep.subr.bf16.mxu0 0
    %1300 = vmatpush2.bf16.msra.mxu0 0
    %1301 = vmatprep.subr.bf16.mxu0 0
    %1302 = vmatpush2.bf16.msra.mxu0 0
    %1303 = vmatprep.subr.bf16.mxu0 0
    %1304 = vmatpush2.bf16.msra.mxu0 0
    %1305 = vmatprep.subr.bf16.mxu0 0
    %1306 = vmatpush2.bf16.msra.mxu0 0
    %1307 = vmatprep.mubr.bf16.mxu0 0
    %1308 = vmatmul.mubr.bf16.gmra.mxu0 %v1273
    %v1309 = vpop.f32.mrf.mxu0
    %v1310 = vadd.f32 %v910, %v1309
    %v1311 = vpop.f32.mrf.mxu0
    %v1312 = vpop.f32.mrf.mxu0
    %v1313 = vpop.f32.mrf.mxu0
    %1314 = vdwg.mxu0
    %1316 = vrot.lane.b32.xlu0 %v1310, 96
    %v1317 = vpop.permute.xlu0 %1316
    %v1319 = vadd.f32 %v175, %v1317
    %v1320 = vxor.u32 %v1319, 2147483648
    %v1321 = vmul.f32 %v1320, 1.442695
    %v1322 = vpow.pop %v1321
    %v1323 = vadd.f32 %v1322, 1.0
    %v1324 = vrcp.pop %v1323
    %v1325 = vmul.f32 1.0, %v1324
    %v1326 = vrot.slane %v175, 4
    %v1328 = vadd.f32 %v1326, %v1317
    %v1329 = vxor.u32 %v1328, 2147483648
    %v1330 = vmul.f32 %v1329, 1.442695
    %v1331 = vpow.pop %v1330
    %v1332 = vadd.f32 %v1331, 1.0
    %v1333 = vrcp.pop %v1332
    %v1334 = vmul.f32 1.0, %v1333
    %1335 = vrot.lane.b32.xlu0 %v1310, 32
    %v1336 = vpop.permute.xlu0 %1335
    %v1338 = vmul.f32 %v1325, %v1336
    %1339 = vrot.lane.b32.xlu0 %v175, 96
    %v1340 = vpop.permute.xlu0 %1339
    %v1341 = vrot.slane %v1340, 4
    %1344 = vrot.lane.b32.xlu0 %v1338, 32
    %v1345 = vpop.permute.xlu0 %1344
    %v1347 = vadd.f32 %v1341, %v1345
    %v1348 = vtanh.pop %v1347
    %v1349 = vsub.f32 1.0, %v1334
    %v1350 = vmul.f32 %v1349, %v1348
    %v1351 = vmul.f32 %v1334, %v1267
    %v1352 = vadd.f32 %v1350, %v1351
    %v1353 = vmul.f32 %v191, %v1352
    %v1354 = vmul.f32 %v555, %v1267
    %v1355 = vadd.f32 %v1353, %v1354
    %v1356 = vmul.f32 %v191, %v1355
    %v1357 = vadd.f32 %v1356, %v199
    %v1358 = vmax.f32 %v1270, %v1357
    %v1359 = vpack.c.bf16 %v1355, %v1355
    %v1361 = vsel %vm104, %v1359, 0
    %1363 = vmatprep.subr.bf16.mxu0 0
    %1364 = vmatpush1.bf16.msra.mxu0 0
    %1365 = vmatprep.subr.bf16.mxu0 0
    %1366 = vmatpush1.bf16.msra.mxu0 0
    %1367 = vmatprep.subr.bf16.mxu0 0
    %1368 = vmatpush1.bf16.msra.mxu0 0
    %1369 = vmatprep.subr.bf16.mxu0 0
    %1370 = vmatpush1.bf16.msra.mxu0 0
    %1371 = vmatprep.subr.bf16.mxu0 0
    %1372 = vmatpush1.bf16.msra.mxu0 0
    %1373 = vmatprep.subr.bf16.mxu0 0
    %1374 = vmatpush1.bf16.msra.mxu0 0
    %1375 = vmatprep.subr.bf16.mxu0 0
    %1376 = vmatpush1.bf16.msra.mxu0 %v921
    %1377 = vmatprep.subr.bf16.mxu0 0
    %1378 = vmatpush1.bf16.msra.mxu0 %v920
    %1379 = vmatprep.subr.bf16.mxu0 0
    %1380 = vmatpush2.bf16.msra.mxu0 0
    %1381 = vmatprep.subr.bf16.mxu0 0
    %1382 = vmatpush2.bf16.msra.mxu0 0
    %1383 = vmatprep.subr.bf16.mxu0 0
    %1384 = vmatpush2.bf16.msra.mxu0 0
    %1385 = vmatprep.subr.bf16.mxu0 0
    %1386 = vmatpush2.bf16.msra.mxu0 0
    %1387 = vmatprep.subr.bf16.mxu0 0
    %1388 = vmatpush2.bf16.msra.mxu0 0
    %1389 = vmatprep.subr.bf16.mxu0 0
    %1390 = vmatpush2.bf16.msra.mxu0 0
    %1391 = vmatprep.subr.bf16.mxu0 0
    %1392 = vmatpush2.bf16.msra.mxu0 0
    %1393 = vmatprep.subr.bf16.mxu0 0
    %1394 = vmatpush2.bf16.msra.mxu0 0
    %1395 = vmatprep.mubr.bf16.mxu0 0
    %1396 = vmatmul.mubr.bf16.gmra.mxu0 %v1361
    %v1397 = vpop.f32.mrf.mxu0
    %v1398 = vadd.f32 %v910, %v1397
    %v1399 = vpop.f32.mrf.mxu0
    %v1400 = vpop.f32.mrf.mxu0
    %v1401 = vpop.f32.mrf.mxu0
    %1402 = vdwg.mxu0
    %1404 = vrot.lane.b32.xlu0 %v1398, 96
    %v1405 = vpop.permute.xlu0 %1404
    %v1407 = vadd.f32 %v174, %v1405
    %v1408 = vxor.u32 %v1407, 2147483648
    %v1409 = vmul.f32 %v1408, 1.442695
    %v1410 = vpow.pop %v1409
    %v1411 = vadd.f32 %v1410, 1.0
    %v1412 = vrcp.pop %v1411
    %v1413 = vmul.f32 1.0, %v1412
    %v1414 = vrot.slane %v174, 4
    %v1416 = vadd.f32 %v1414, %v1405
    %v1417 = vxor.u32 %v1416, 2147483648
    %v1418 = vmul.f32 %v1417, 1.442695
    %v1419 = vpow.pop %v1418
    %v1420 = vadd.f32 %v1419, 1.0
    %v1421 = vrcp.pop %v1420
    %v1422 = vmul.f32 1.0, %v1421
    %1423 = vrot.lane.b32.xlu0 %v1398, 32
    %v1424 = vpop.permute.xlu0 %1423
    %v1426 = vmul.f32 %v1413, %v1424
    %1427 = vrot.lane.b32.xlu0 %v174, 96
    %v1428 = vpop.permute.xlu0 %1427
    %v1429 = vrot.slane %v1428, 4
    %1432 = vrot.lane.b32.xlu0 %v1426, 32
    %v1433 = vpop.permute.xlu0 %1432
    %v1435 = vadd.f32 %v1429, %v1433
    %v1436 = vtanh.pop %v1435
    %v1437 = vsub.f32 1.0, %v1422
    %v1438 = vmul.f32 %v1437, %v1436
    %v1439 = vmul.f32 %v1422, %v1355
    %v1440 = vadd.f32 %v1438, %v1439
    %v1441 = vmul.f32 %v190, %v1440
    %v1442 = vmul.f32 %v470, %v1355
    %v1443 = vadd.f32 %v1441, %v1442
    %v1444 = vmul.f32 %v190, %v1443
    %v1445 = vadd.f32 %v1444, %v198
    %v1446 = vmax.f32 %v1358, %v1445
    %v1447 = vpack.c.bf16 %v1443, %v1443
    %v1449 = vsel %vm104, %v1447, 0
    %1451 = vmatprep.subr.bf16.mxu0 0
    %1452 = vmatpush1.bf16.msra.mxu0 0
    %1453 = vmatprep.subr.bf16.mxu0 0
    %1454 = vmatpush1.bf16.msra.mxu0 0
    %1455 = vmatprep.subr.bf16.mxu0 0
    %1456 = vmatpush1.bf16.msra.mxu0 0
    %1457 = vmatprep.subr.bf16.mxu0 0
    %1458 = vmatpush1.bf16.msra.mxu0 0
    %1459 = vmatprep.subr.bf16.mxu0 0
    %1460 = vmatpush1.bf16.msra.mxu0 0
    %1461 = vmatprep.subr.bf16.mxu0 0
    %1462 = vmatpush1.bf16.msra.mxu0 0
    %1463 = vmatprep.subr.bf16.mxu0 0
    %1464 = vmatpush1.bf16.msra.mxu0 %v921
    %1465 = vmatprep.subr.bf16.mxu0 0
    %1466 = vmatpush1.bf16.msra.mxu0 %v920
    %1467 = vmatprep.subr.bf16.mxu0 0
    %1468 = vmatpush2.bf16.msra.mxu0 0
    %1469 = vmatprep.subr.bf16.mxu0 0
    %1470 = vmatpush2.bf16.msra.mxu0 0
    %1471 = vmatprep.subr.bf16.mxu0 0
    %1472 = vmatpush2.bf16.msra.mxu0 0
    %1473 = vmatprep.subr.bf16.mxu0 0
    %1474 = vmatpush2.bf16.msra.mxu0 0
    %1475 = vmatprep.subr.bf16.mxu0 0
    %1476 = vmatpush2.bf16.msra.mxu0 0
    %1477 = vmatprep.subr.bf16.mxu0 0
    %1478 = vmatpush2.bf16.msra.mxu0 0
    %1479 = vmatprep.subr.bf16.mxu0 0
    %1480 = vmatpush2.bf16.msra.mxu0 0
    %1481 = vmatprep.subr.bf16.mxu0 0
    %1482 = vmatpush2.bf16.msra.mxu0 0
    %1483 = vmatprep.mubr.bf16.mxu0 0
    %1484 = vmatmul.mubr.bf16.gmra.mxu0 %v1449
    %v1485 = vpop.f32.mrf.mxu0
    %v1486 = vadd.f32 %v910, %v1485
    %v1487 = vpop.f32.mrf.mxu0
    %v1488 = vpop.f32.mrf.mxu0
    %v1489 = vpop.f32.mrf.mxu0
    %1490 = vdwg.mxu0
    %1492 = vrot.lane.b32.xlu0 %v1486, 96
    %v1493 = vpop.permute.xlu0 %1492
    %v1495 = vadd.f32 %v173, %v1493
    %v1496 = vxor.u32 %v1495, 2147483648
    %v1497 = vmul.f32 %v1496, 1.442695
    %v1498 = vpow.pop %v1497
    %v1499 = vadd.f32 %v1498, 1.0
    %v1500 = vrcp.pop %v1499
    %v1501 = vmul.f32 1.0, %v1500
    %v1502 = vrot.slane %v173, 4
    %v1504 = vadd.f32 %v1502, %v1493
    %v1505 = vxor.u32 %v1504, 2147483648
    %v1506 = vmul.f32 %v1505, 1.442695
    %v1507 = vpow.pop %v1506
    %v1508 = vadd.f32 %v1507, 1.0
    %v1509 = vrcp.pop %v1508
    %v1510 = vmul.f32 1.0, %v1509
    %1511 = vrot.lane.b32.xlu0 %v1486, 32
    %v1512 = vpop.permute.xlu0 %1511
    %v1514 = vmul.f32 %v1501, %v1512
    %1515 = vrot.lane.b32.xlu0 %v173, 96
    %v1516 = vpop.permute.xlu0 %1515
    %v1517 = vrot.slane %v1516, 4
    %1520 = vrot.lane.b32.xlu0 %v1514, 32
    %v1521 = vpop.permute.xlu0 %1520
    %v1523 = vadd.f32 %v1517, %v1521
    %v1524 = vtanh.pop %v1523
    %v1525 = vsub.f32 1.0, %v1510
    %v1526 = vmul.f32 %v1525, %v1524
    %v1527 = vmul.f32 %v1510, %v1443
    %v1528 = vadd.f32 %v1526, %v1527
    %v1529 = vmul.f32 %v189, %v1528
    %v1530 = vmul.f32 %v385, %v1443
    %v1531 = vadd.f32 %v1529, %v1530
    %v1532 = vmul.f32 %v189, %v1531
    %v1533 = vadd.f32 %v1532, %v197
    %v1534 = vmax.f32 %v1446, %v1533
    %v1535 = vpack.c.bf16 %v1531, %v1531
    %v1537 = vsel %vm104, %v1535, 0
    %1539 = vmatprep.subr.bf16.mxu0 0
    %1540 = vmatpush1.bf16.msra.mxu0 0
    %1541 = vmatprep.subr.bf16.mxu0 0
    %1542 = vmatpush1.bf16.msra.mxu0 0
    %1543 = vmatprep.subr.bf16.mxu0 0
    %1544 = vmatpush1.bf16.msra.mxu0 0
    %1545 = vmatprep.subr.bf16.mxu0 0
    %1546 = vmatpush1.bf16.msra.mxu0 0
    %1547 = vmatprep.subr.bf16.mxu0 0
    %1548 = vmatpush1.bf16.msra.mxu0 0
    %1549 = vmatprep.subr.bf16.mxu0 0
    %1550 = vmatpush1.bf16.msra.mxu0 0
    %1551 = vmatprep.subr.bf16.mxu0 0
    %1552 = vmatpush1.bf16.msra.mxu0 %v921
    %1553 = vmatprep.subr.bf16.mxu0 0
    %1554 = vmatpush1.bf16.msra.mxu0 %v920
    %1555 = vmatprep.subr.bf16.mxu0 0
    %1556 = vmatpush2.bf16.msra.mxu0 0
    %1557 = vmatprep.subr.bf16.mxu0 0
    %1558 = vmatpush2.bf16.msra.mxu0 0
    %1559 = vmatprep.subr.bf16.mxu0 0
    %1560 = vmatpush2.bf16.msra.mxu0 0
    %1561 = vmatprep.subr.bf16.mxu0 0
    %1562 = vmatpush2.bf16.msra.mxu0 0
    %1563 = vmatprep.subr.bf16.mxu0 0
    %1564 = vmatpush2.bf16.msra.mxu0 0
    %1565 = vmatprep.subr.bf16.mxu0 0
    %1566 = vmatpush2.bf16.msra.mxu0 0
    %1567 = vmatprep.subr.bf16.mxu0 0
    %1568 = vmatpush2.bf16.msra.mxu0 0
    %1569 = vmatprep.subr.bf16.mxu0 0
    %1570 = vmatpush2.bf16.msra.mxu0 0
    %1571 = vmatprep.mubr.bf16.mxu0 0
    %1572 = vmatmul.mubr.bf16.gmra.mxu0 %v1537
    %v1573 = vpop.f32.mrf.mxu0
    %v1574 = vadd.f32 %v910, %v1573
    %v1575 = vpop.f32.mrf.mxu0
    %v1576 = vpop.f32.mrf.mxu0
    %v1577 = vpop.f32.mrf.mxu0
    %1578 = vdwg.mxu0
    %1580 = vrot.lane.b32.xlu0 %v1574, 96
    %v1581 = vpop.permute.xlu0 %1580
    %v1583 = vadd.f32 %v172, %v1581
    %v1584 = vxor.u32 %v1583, 2147483648
    %v1585 = vmul.f32 %v1584, 1.442695
    %v1586 = vpow.pop %v1585
    %v1587 = vadd.f32 %v1586, 1.0
    %v1588 = vrcp.pop %v1587
    %v1589 = vmul.f32 1.0, %v1588
    %v1590 = vrot.slane %v172, 4
    %v1592 = vadd.f32 %v1590, %v1581
    %v1593 = vxor.u32 %v1592, 2147483648
    %v1594 = vmul.f32 %v1593, 1.442695
    %v1595 = vpow.pop %v1594
    %v1596 = vadd.f32 %v1595, 1.0
    %v1597 = vrcp.pop %v1596
    %v1598 = vmul.f32 1.0, %v1597
    %1599 = vrot.lane.b32.xlu0 %v1574, 32
    %v1600 = vpop.permute.xlu0 %1599
    %v1602 = vmul.f32 %v1589, %v1600
    %1603 = vrot.lane.b32.xlu0 %v172, 96
    %v1604 = vpop.permute.xlu0 %1603
    %v1605 = vrot.slane %v1604, 4
    %1608 = vrot.lane.b32.xlu0 %v1602, 32
    %v1609 = vpop.permute.xlu0 %1608
    %v1611 = vadd.f32 %v1605, %v1609
    %v1612 = vtanh.pop %v1611
    %v1613 = vsub.f32 1.0, %v1598
    %v1614 = vmul.f32 %v1613, %v1612
    %v1615 = vmul.f32 %v1598, %v1531
    %v1616 = vadd.f32 %v1614, %v1615
    %v1617 = vmul.f32 %v188, %v1616
    %v1618 = vmul.f32 %v301, %v1531
    %v1619 = vadd.f32 %v1617, %v1618
    %v1620 = vmul.f32 %v188, %v1619
    %v1621 = vadd.f32 %v1620, %v196
    %v1622 = vmax.f32 %v1534, %v1621
    %v1623 = vld [vmem:[%s9] sm:$0xf]
    %v1624 = vld [vmem:[%s9 + $0x4] sm:$0xf]
    %v1625 = vld [vmem:[%s9 + $0x8] sm:$0xf]
    %v1626 = vld [vmem:[%s9 + $0xc] sm:$0xf]
    %v1627 = vld [vmem:[%s9 + $0x10] sm:$0xf]
    %v1628 = vld [vmem:[%s9 + $0x14] sm:$0xf]
    %v1629 = vld [vmem:[%s9 + $0x18] sm:$0xf]
    %v1630 = vld [vmem:[%s9 + $0x1c] sm:$0xf]
    %v1631 = vld [vmem:[%s9 + $0x20] sm:$0xf]
    %v1632 = vld [vmem:[%s9 + $0x24] sm:$0xf]
    %v1633 = vld [vmem:[%s9 + $0x28] sm:$0xf]
    %v1634 = vld [vmem:[%s9 + $0x2c] sm:$0xf]
    %v1635 = vld [vmem:[%s9 + $0x30] sm:$0xf]
    %v1636 = vld [vmem:[%s9 + $0x34] sm:$0xf]
    %v1637 = vld [vmem:[%s9 + $0x38] sm:$0xf]
    %v1638 = vld [vmem:[%s9 + $0x3c] sm:$0xf]
    %v1639 = vld [vmem:[%s9 + $0x40] sm:$0xf]
    %v1640 = vld [vmem:[%s9 + $0x44] sm:$0xf]
    %v1641 = vld [vmem:[%s9 + $0x48] sm:$0xf]
    %v1642 = vld [vmem:[%s9 + $0x4c] sm:$0xf]
    %v1643 = vld [vmem:[%s9 + $0x50] sm:$0xf]
    %v1644 = vld [vmem:[%s9 + $0x54] sm:$0xf]
    %v1645 = vld [vmem:[%s9 + $0x58] sm:$0xf]
    %v1646 = vld [vmem:[%s9 + $0x5c] sm:$0xf]
    %v1647 = vld [vmem:[%s9 + $0x60] sm:$0xf]
    %v1648 = vld [vmem:[%s9 + $0x64] sm:$0xf]
    %v1649 = vld [vmem:[%s9 + $0x68] sm:$0xf]
    %v1650 = vld [vmem:[%s9 + $0x6c] sm:$0xf]
    %v1651 = vld [vmem:[%s9 + $0x70] sm:$0xf]
    %v1652 = vld [vmem:[%s9 + $0x74] sm:$0xf]
    %v1653 = vld [vmem:[%s9 + $0x78] sm:$0xf]
    %v1654 = vld [vmem:[%s9 + $0x7c] sm:$0xf]
    %v1655 = vld [vmem:[%s10] sm:$0x1]
    %v1656 = vld [vmem:[%s10 + $0x1] sm:$0x1]
    %1658 = vrot.lane.b32.xlu0 %v1622, 16
    %v1659 = vpop.permute.xlu0 %1658
    %vm1661 = vcmask 130048
    %v1662 = vsel %vm1661, %v900, %v1659
    %v1664 = vrot.slane %v1662, 2
    %v1666 = vmul.f32 %v1662, %v1664
    %v1667 = vsub.f32 %v1662, %v1664
    %v1668 = vand.u32 2147483647, %v1667
    %1669 = vrot.lane.b32.xlu0 %v1664, 32
    %v1670 = vpop.permute.xlu0 %1669
    %1673 = vrot.lane.b32.xlu0 %v1666, 64
    %v1674 = vpop.permute.xlu0 %1673
    %1677 = vrot.lane.b32.xlu0 %v1668, 96
    %v1678 = vpop.permute.xlu0 %1677
    %v1680 = vsel %vm104, %v1662, %v1670
    %vm1681 = vcmask 523264
    %v1682 = vsel %vm1681, %v1680, %v1674
    %vm1683 = vcmask 785408
    %v1684 = vsel %vm1683, %v1682, %v1678
    %v1685 = vpack.c.bf16 %v1684, %v1684
    %v1687 = vlaneseq
    %v1688 = vshrl.u32 %v1687, 7
    %v1689 = vsub.s32 0, %v1688
    %v1690 = vrot.slane %v1655, %v1689
    %v1708 = vunpack.c.l.b16 %v1623
    %v1709 = vunpack.c.l.b16 %v1624
    %v1710 = vunpack.c.l.b16 %v1625
    %v1711 = vunpack.c.l.b16 %v1626
    %v1712 = vunpack.c.l.b16 %v1627
    %v1713 = vunpack.c.l.b16 %v1628
    %v1714 = vunpack.c.l.b16 %v1629
    %v1715 = vunpack.c.l.b16 %v1630
    %v1716 = vunpack.c.l.b16 %v1631
    %v1717 = vunpack.c.l.b16 %v1632
    %v1718 = vunpack.c.l.b16 %v1633
    %v1719 = vunpack.c.l.b16 %v1634
    %v1720 = vunpack.c.l.b16 %v1635
    %v1721 = vunpack.c.l.b16 %v1636
    %v1722 = vunpack.c.l.b16 %v1637
    %v1723 = vunpack.c.l.b16 %v1638
    %v1724 = vpack.c.b16 %v1709, %v1708
    %v1725 = vpack.c.b16 %v1711, %v1710
    %v1726 = vpack.c.b16 %v1713, %v1712
    %v1727 = vpack.c.b16 %v1715, %v1714
    %v1728 = vpack.c.b16 %v1717, %v1716
    %v1729 = vpack.c.b16 %v1719, %v1718
    %v1730 = vpack.c.b16 %v1721, %v1720
    %v1731 = vpack.c.b16 %v1723, %v1722
    %1740 = vmatprep.subr.bf16.mxu0 0
    %1741 = vmatpush1.bf16.msra.mxu0 %v1731
    %1742 = vmatprep.subr.bf16.mxu0 0
    %1743 = vmatpush1.bf16.msra.mxu0 %v1730
    %1744 = vmatprep.subr.bf16.mxu0 0
    %1745 = vmatpush1.bf16.msra.mxu0 %v1729
    %1746 = vmatprep.subr.bf16.mxu0 0
    %1747 = vmatpush1.bf16.msra.mxu0 %v1728
    %1748 = vmatprep.subr.bf16.mxu0 0
    %1749 = vmatpush1.bf16.msra.mxu0 %v1727
    %1750 = vmatprep.subr.bf16.mxu0 0
    %1751 = vmatpush1.bf16.msra.mxu0 %v1726
    %1752 = vmatprep.subr.bf16.mxu0 0
    %1753 = vmatpush1.bf16.msra.mxu0 %v1725
    %1754 = vmatprep.subr.bf16.mxu0 0
    %1755 = vmatpush1.bf16.msra.mxu0 %v1724
    %1756 = vmatprep.subr.bf16.mxu0 0
    %1757 = vmatpush2.bf16.msra.mxu0 0
    %1758 = vmatprep.subr.bf16.mxu0 0
    %1759 = vmatpush2.bf16.msra.mxu0 0
    %1760 = vmatprep.subr.bf16.mxu0 0
    %1761 = vmatpush2.bf16.msra.mxu0 0
    %1762 = vmatprep.subr.bf16.mxu0 0
    %1763 = vmatpush2.bf16.msra.mxu0 0
    %1764 = vmatprep.subr.bf16.mxu0 0
    %1765 = vmatpush2.bf16.msra.mxu0 0
    %1766 = vmatprep.subr.bf16.mxu0 0
    %1767 = vmatpush2.bf16.msra.mxu0 0
    %1768 = vmatprep.subr.bf16.mxu0 0
    %1769 = vmatpush2.bf16.msra.mxu0 0
    %1770 = vmatprep.subr.bf16.mxu0 0
    %1771 = vmatpush2.bf16.msra.mxu0 0
    %1772 = vmatprep.mubr.bf16.mxu0 0
    %1773 = vmatmul.mubr.bf16.gmra.mxu0 %v1685
    %v1774 = vpop.f32.mrf.mxu0
    %v1775 = vadd.f32 %v1690, %v1774
    %v1776 = vpop.f32.mrf.mxu0
    %v1777 = vpop.f32.mrf.mxu0
    %v1778 = vpop.f32.mrf.mxu0
    %1779 = vdwg.mxu0
    %vm1780 = vcmask 9216
    %1781 = vst.msk [vmem:[#allocation5] sm:$0x3] %vm1780, %v1775
    %1783 = vrot.lane.b32.xlu0 %v900, 112
    %v1784 = vpop.permute.xlu0 %1783
    %v1786 = vsel %vm1661, %v1784, %v1622
    %v1788 = vrot.slane %v1786, 2
    %v1790 = vmul.f32 %v1786, %v1788
    %v1791 = vsub.f32 %v1786, %v1788
    %v1792 = vand.u32 2147483647, %v1791
    %1793 = vrot.lane.b32.xlu0 %v1788, 32
    %v1794 = vpop.permute.xlu0 %1793
    %1797 = vrot.lane.b32.xlu0 %v1790, 64
    %v1798 = vpop.permute.xlu0 %1797
    %1801 = vrot.lane.b32.xlu0 %v1792, 96
    %v1802 = vpop.permute.xlu0 %1801
    %v1804 = vsel %vm104, %v1786, %v1794
    %v1805 = vsel %vm1681, %v1804, %v1798
    %v1806 = vsel %vm1683, %v1805, %v1802
    %v1807 = vpack.c.bf16 %v1806, %v1806
    %v1809 = vlaneseq
    %v1810 = vshrl.u32 %v1809, 7
    %v1811 = vsub.s32 0, %v1810
    %v1812 = vrot.slane %v1656, %v1811
    %v1830 = vunpack.c.l.b16 %v1639
    %v1831 = vunpack.c.l.b16 %v1640
    %v1832 = vunpack.c.l.b16 %v1641
    %v1833 = vunpack.c.l.b16 %v1642
    %v1834 = vunpack.c.l.b16 %v1643
    %v1835 = vunpack.c.l.b16 %v1644
    %v1836 = vunpack.c.l.b16 %v1645
    %v1837 = vunpack.c.l.b16 %v1646
    %v1838 = vunpack.c.l.b16 %v1647
    %v1839 = vunpack.c.l.b16 %v1648
    %v1840 = vunpack.c.l.b16 %v1649
    %v1841 = vunpack.c.l.b16 %v1650
    %v1842 = vunpack.c.l.b16 %v1651
    %v1843 = vunpack.c.l.b16 %v1652
    %v1844 = vunpack.c.l.b16 %v1653
    %v1845 = vunpack.c.l.b16 %v1654
    %v1846 = vpack.c.b16 %v1831, %v1830
    %v1847 = vpack.c.b16 %v1833, %v1832
    %v1848 = vpack.c.b16 %v1835, %v1834
    %v1849 = vpack.c.b16 %v1837, %v1836
    %v1850 = vpack.c.b16 %v1839, %v1838
    %v1851 = vpack.c.b16 %v1841, %v1840
    %v1852 = vpack.c.b16 %v1843, %v1842
    %v1853 = vpack.c.b16 %v1845, %v1844
    %1862 = vmatprep.subr.bf16.mxu0 0
    %1863 = vmatpush1.bf16.msra.mxu0 %v1853
    %1864 = vmatprep.subr.bf16.mxu0 0
    %1865 = vmatpush1.bf16.msra.mxu0 %v1852
    %1866 = vmatprep.subr.bf16.mxu0 0
    %1867 = vmatpush1.bf16.msra.mxu0 %v1851
    %1868 = vmatprep.subr.bf16.mxu0 0
    %1869 = vmatpush1.bf16.msra.mxu0 %v1850
    %1870 = vmatprep.subr.bf16.mxu0 0
    %1871 = vmatpush1.bf16.msra.mxu0 %v1849
    %1872 = vmatprep.subr.bf16.mxu0 0
    %1873 = vmatpush1.bf16.msra.mxu0 %v1848
    %1874 = vmatprep.subr.bf16.mxu0 0
    %1875 = vmatpush1.bf16.msra.mxu0 %v1847
    %1876 = vmatprep.subr.bf16.mxu0 0
    %1877 = vmatpush1.bf16.msra.mxu0 %v1846
    %1878 = vmatprep.subr.bf16.mxu0 0
    %1879 = vmatpush2.bf16.msra.mxu0 0
    %1880 = vmatprep.subr.bf16.mxu0 0
    %1881 = vmatpush2.bf16.msra.mxu0 0
    %1882 = vmatprep.subr.bf16.mxu0 0
    %1883 = vmatpush2.bf16.msra.mxu0 0
    %1884 = vmatprep.subr.bf16.mxu0 0
    %1885 = vmatpush2.bf16.msra.mxu0 0
    %1886 = vmatprep.subr.bf16.mxu0 0
    %1887 = vmatpush2.bf16.msra.mxu0 0
    %1888 = vmatprep.subr.bf16.mxu0 0
    %1889 = vmatpush2.bf16.msra.mxu0 0
    %1890 = vmatprep.subr.bf16.mxu0 0
    %1891 = vmatpush2.bf16.msra.mxu0 0
    %1892 = vmatprep.subr.bf16.mxu0 0
    %1893 = vmatpush2.bf16.msra.mxu0 0
    %1894 = vmatprep.mubr.bf16.mxu0 0
    %1895 = vmatmul.mubr.bf16.gmra.mxu0 %v1807
    %v1896 = vpop.f32.mrf.mxu0
    %v1897 = vadd.f32 %v1812, %v1896
    %v1898 = vpop.f32.mrf.mxu0
    %v1899 = vpop.f32.mrf.mxu0
    %v1900 = vpop.f32.mrf.mxu0
    %1901 = vdwg.mxu0
    %s1902 = scalar_lea.vmem [#allocation5], 2
    %1903 = vst.msk [vmem:[%s1902] sm:$0x3] %vm1780, %v1897
    // Predicated region
    $region50: #{tpu_custom_call.1} parent=1 // pred_check
      _
    $region51: #{tpu_custom_call.1} parent=1 // pred_check_branch
      %1905 = sbr.rel (0) target = $region53
    $region52: #{tpu_custom_call.1} parent=1 // pred_region
      %s1907 = ssub.s32 64, 64
      %1908 = vsyncadd [#allocation4], %s1907
      %s1909 = sshll.u32 [#allocation5], 4
      %s1910 = int_to_ptr.vmem [resolvable:$true] %s1909
      %1915 = dma.vmem_to_hbm [thread:$0]  %s1910, 64, %s11, [#allocation4], 32, 32, 2
    $region53: #{tpu_custom_call.1} parent=1 // pred_fallthru
      _
    // Predicated region
    $region54: #{tpu_custom_call.1} parent=1 // pred_check
      _
    $region55: #{tpu_custom_call.1} parent=1 // pred_check_branch
      %1917 = sbr.rel (0) target = $region57
    $region56: #{tpu_custom_call.1} parent=1 // pred_region
      %1918 = dma.done [#allocation4], 64
    $region57: #{tpu_custom_call.1} parent=1 // pred_fallthru
      _
    %1919 = vsyncpa [#allocation3], 1
    %1920 = vsyncpa [#allocation4], 1

</llo_original>
